<compile_context>
chip_gen: v7x
topology: tpu7x:2x2x1
jax: 0.10.0
libtpu: 0.0.40
codegen_flags: <defaults>
</compile_context>

<pallas_src>
import functools

import jax
import jax.numpy as jnp
from jax import lax
from jax.experimental import pallas as pl
from jax.experimental.pallas import tpu as pltpu


def _cross_attention_kernel(x_ref, ctx_ref, wq_ref, wkv_ref, wo_ref, bo_ref, g_ref,
                            o_ref, *, heads, dim_head, qv_scale, eps):
    # x_ref  : (C, Nq)          flattened query features (channels-first)
    # ctx_ref: (C, Nk)          flattened context features
    # wq_ref : (hidden, C)      fused to_q weight            (hidden = heads*dim_head)
    # wkv_ref: (2*hidden, C)    fused to_kv weight (k rows then v rows)
    # wo_ref : (Cout, hidden)   to_out conv weight
    # bo_ref / g_ref : (Cout, 1) to_out bias / LayerNorm gain (broadcast over lanes)
    # o_ref  : (Cout, Nq)       output block (already channels-first)
    hidden = heads * dim_head

    x = x_ref[...]
    c = ctx_ref[...]

    # Fused 1x1x1-conv projections, lane-dense on the spatial axis.
    q = jnp.dot(wq_ref[...], x, preferred_element_type=jnp.float32)     # (hidden, Nq)
    kv = jnp.dot(wkv_ref[...], c, preferred_element_type=jnp.float32)   # (2*hidden, Nk)
    k = kv[:hidden]                                                      # (hidden, Nk)
    v = kv[hidden:]                                                      # (hidden, Nk)

    # k: softmax over the context positions (lane axis) -- no transpose needed.
    k = k - jnp.max(k, axis=1, keepdims=True)
    k = jnp.exp(k)
    k = k / jnp.sum(k, axis=1, keepdims=True)

    # q: softmax over dim_head within each head (32-sublane groups).
    # qv_scale = dim_head**-0.5 / (H*W): the v/(H*W) scale is folded in here
    # because the attention output is bilinear in (q, v).
    qh = q.reshape(heads, dim_head, -1)                                  # (h, dh, Nq)
    qh = qh - jnp.max(qh, axis=1, keepdims=True)
    qh = jnp.exp(qh)
    qh = qh * (qv_scale / jnp.sum(qh, axis=1, keepdims=True))

    kh = k.reshape(heads, dim_head, -1)                                  # (h, dh, Nk)
    vh = v.reshape(heads, dim_head, -1)                                  # (h, dh, Nk)

    # ctxT[h, e, d] = sum_n v[h, e, n] * k[h, d, n]
    ctx_t = jnp.einsum("hen,hdn->hed", vh, kh,
                       preferred_element_type=jnp.float32)               # (h, dh, dh)
    # out[h, e, n] = sum_d ctxT[h, e, d] * q[h, d, n]
    out_h = jnp.einsum("hed,hdn->hen", ctx_t, qh,
                       preferred_element_type=jnp.float32)               # (h, dh, Nq)
    out = out_h.reshape(hidden, -1)                                      # (hidden, Nq)

    # to_out 1x1x1 conv (+ bias): one full-K (Cout,hidden)@(hidden,Nq) matmul.
    y = jnp.dot(wo_ref[...], out, preferred_element_type=jnp.float32)    # (Cout, Nq)
    y = y + bo_ref[...]

    # Channel LayerNorm (gain only): reduce over the Cout sublane rows.
    mean = jnp.mean(y, axis=0, keepdims=True)
    cen = y - mean
    var = jnp.mean(cen * cen, axis=0, keepdims=True)                     # two-pass var
    o_ref[...] = (cen * lax.rsqrt(var + eps) * g_ref[...]).astype(o_ref.dtype)


def cross_attention_forward(x, context, params, *, heads=4, dim_head=32):
    """x: (B, dim, H, W, D), context: (B, dim, Hc, Wc, Dc) -> (B, dim, H, W, D)."""
    B, C, H, W, D = x.shape
    Bc, Cc, Hc, Wc, Dc = context.shape
    assert B == Bc and C == Cc
    hidden = heads * dim_head
    Nq = H * W * D
    Nk = Hc * Wc * Dc

    wq, wkv, wo, bo, g = (params["wq"], params["wkv"], params["wo"],
                          params["bo"], params["g"])
    Cout = wo.shape[0]

    # Channels-first + flattened spatial is already the natural layout of x /
    # context: no transposes; Nq / Nk land on the 128-lane axis.
    x_flat = x.reshape(B, C, Nq).astype(jnp.float32)
    ctx_flat = context.reshape(B, C, Nk).astype(jnp.float32)

    # 1x1x1 Conv3d weights used directly as (out_ch, in_ch) matmul operands.
    wq2 = wq.astype(jnp.float32)                  # (hidden, C)
    wkv2 = wkv.astype(jnp.float32)                # (2*hidden, C): k rows then v rows
    wo2 = wo.astype(jnp.float32)                  # (Cout, hidden)
    bo2 = bo.reshape(Cout, 1).astype(jnp.float32)
    g2 = g.reshape(Cout, 1).astype(jnp.float32)

    kernel = functools.partial(
        _cross_attention_kernel,
        heads=heads, dim_head=dim_head,
        # matches the module's `v = v / (h * w)` (depth D intentionally excluded)
        qv_scale=float(dim_head) ** -0.5 / float(H * W),
        eps=1e-5)                                 # LayerNorm eps for float32

    out_flat = pl.pallas_call(
        kernel,
        out_shape=jax.ShapeDtypeStruct((B, Cout, Nq), jnp.float32),
        grid=(B,),
        in_specs=[
            pl.BlockSpec((None, C, Nq), lambda b: (b, 0, 0)),
            pl.BlockSpec((None, C, Nk), lambda b: (b, 0, 0)),
            pl.BlockSpec((hidden, C), lambda b: (0, 0)),
            pl.BlockSpec((2 * hidden, C), lambda b: (0, 0)),
            pl.BlockSpec((Cout, hidden), lambda b: (0, 0)),
            pl.BlockSpec((Cout, 1), lambda b: (0, 0)),
            pl.BlockSpec((Cout, 1), lambda b: (0, 0)),
        ],
        out_specs=pl.BlockSpec((None, Cout, Nq), lambda b: (b, 0, 0)),
        compiler_params=pltpu.CompilerParams(
            dimension_semantics=("parallel",)),
    )(x_flat, ctx_flat, wq2, wkv2, wo2, bo2, g2)

    # Already channels-first; just restore the 3-D spatial dims.
    return out_flat.reshape(B, Cout, H, W, D)


def cross_attention_reference(x, context, params, heads, dim_head):
    """Pure-JAX reference mirroring the PyTorch module semantics."""
    B, C, H, W, D = x.shape
    hidden = heads * dim_head
    wq, wkv, wo, bo, g = (params["wq"], params["wkv"], params["wo"],
                          params["bo"], params["g"])

    def conv1x1(t, w):   # 1x1x1 Conv3d without bias
        return jnp.einsum("oc,bcxyz->boxyz", w, t)

    kv = conv1x1(context, wkv)
    k, v = kv[:, :hidden], kv[:, hidden:]
    q = conv1x1(x, wq)

    def split_heads(t):  # 'b (h c) x y z -> b h c (x y z)'
        return t.reshape(t.shape[0], heads, dim_head, -1)

    q, k, v = split_heads(q), split_heads(k), split_heads(v)
    q = jax.nn.softmax(q, axis=-2)
    k = jax.nn.softmax(k, axis=-1)
    q = q * (dim_head ** -0.5)
    v = v / (H * W)
    ctx_m = jnp.einsum("bhdn,bhen->bhde", k, v)
    out = jnp.einsum("bhde,bhdn->bhen", ctx_m, q)
    out = out.reshape(B, hidden, H, W, D)            # 'b h c (x y z) -> b (h c) x y z'
    y = jnp.einsum("oc,bcxyz->boxyz", wo, out) + bo.reshape(1, -1, 1, 1, 1)
    mean = y.mean(axis=1, keepdims=True)
    var = ((y - mean) ** 2).mean(axis=1, keepdims=True)   # unbiased=False
    return (y - mean) * lax.rsqrt(var + 1e-5) * g.reshape(1, -1, 1, 1, 1)


if __name__ == "__main__":
    # CrossAttention(dim=8, heads=4, dim_head=32) -> hidden = 128 (one full lane tile)
    B, dim, heads, dim_head = 2, 8, 4, 32
    H, W, D = 8, 8, 8          # query volume   -> Nq = 512
    Hc, Wc, Dc = 4, 4, 4       # context volume -> Nk = 64
    hidden = heads * dim_head

    key = jax.random.PRNGKey(0)
    kx, kc, k1, k2, k3, k4, k5 = jax.random.split(key, 7)

    x = jax.random.normal(kx, (B, dim, H, W, D), jnp.float32)
    context = jax.random.normal(kc, (B, dim, Hc, Wc, Dc), jnp.float32)
    wq = 0.2 * jax.random.normal(k1, (hidden, dim), jnp.float32)       # to_q weight
    wkv = 0.2 * jax.random.normal(k2, (2 * hidden, dim), jnp.float32)  # to_kv weight
    wo = 0.2 * jax.random.normal(k3, (dim, hidden), jnp.float32)       # to_out conv weight
    bo = 0.05 * jax.random.normal(k4, (dim,), jnp.float32)             # to_out conv bias
    g = 1.0 + 0.1 * jax.random.normal(k5, (dim,), jnp.float32)         # LayerNorm gain
    params = dict(wq=wq, wkv=wkv, wo=wo, bo=bo, g=g)

    out = jax.block_until_ready(
        cross_attention_forward(x, context, params, heads=heads, dim_head=dim_head))
    ref = cross_attention_reference(x, context, params, heads, dim_head)

    assert out.shape == (B, dim, H, W, D)
    err = float(jnp.max(jnp.abs(out - ref)))
    assert err < 3e-3, f"max abs err = {err}"
    print("KERNEL_OK")
</pallas_src>

<mosaic_0001>
module attributes {stable_mosaic.version = 11 : i64} {
  func.func @_cross_attention_kernel(%arg0: i32, %arg1: memref<1x8x512xf32, #tpu.memory_space<vmem>>, %arg2: memref<1x8x64xf32, #tpu.memory_space<vmem>>, %arg3: memref<128x8xf32, #tpu.memory_space<vmem>>, %arg4: memref<256x8xf32, #tpu.memory_space<vmem>>, %arg5: memref<8x128xf32, #tpu.memory_space<vmem>>, %arg6: memref<8x1xf32, #tpu.memory_space<vmem>>, %arg7: memref<8x1xf32, #tpu.memory_space<vmem>>, %arg8: memref<1x8x512xf32, #tpu.memory_space<vmem>>) attributes {dimension_semantics = [#tpu.dimension_semantics<parallel>], iteration_bounds = array<i64: 2>, scalar_prefetch = 0 : i64, scratch_operands = 0 : i64, tpu.core_type = #tpu.core_type<tc>, window_params = [{transform_indices = @transform_0, window_bounds = array<i64: 1, 8, 512>}, {transform_indices = @transform_1, window_bounds = array<i64: 1, 8, 64>}, {pipeline_mode = #tpu.pipeline_mode<synchronous>, transform_indices = @transform_2, window_bounds = array<i64: 128, 8>}, {pipeline_mode = #tpu.pipeline_mode<synchronous>, transform_indices = @transform_3, window_bounds = array<i64: 256, 8>}, {pipeline_mode = #tpu.pipeline_mode<synchronous>, transform_indices = @transform_4, window_bounds = array<i64: 8, 128>}, {pipeline_mode = #tpu.pipeline_mode<synchronous>, transform_indices = @transform_5, window_bounds = array<i64: 8, 1>}, {pipeline_mode = #tpu.pipeline_mode<synchronous>, transform_indices = @transform_6, window_bounds = array<i64: 8, 1>}, {transform_indices = @transform_7, window_bounds = array<i64: 1, 8, 512>}]} {
    %c0 = arith.constant 0 : index
    %c0_0 = arith.constant 0 : index
    %c0_1 = arith.constant 0 : index
    %0 = vector.load %arg1[%c0, %c0_0, %c0_1] : memref<1x8x512xf32, #tpu.memory_space<vmem>>, vector<1x8x512xf32>
    %1 = vector.shape_cast %0 : vector<1x8x512xf32> to vector<8x512xf32>
    %c0_2 = arith.constant 0 : index
    %c0_3 = arith.constant 0 : index
    %c0_4 = arith.constant 0 : index
    %2 = vector.load %arg2[%c0_2, %c0_3, %c0_4] : memref<1x8x64xf32, #tpu.memory_space<vmem>>, vector<1x8x64xf32>
    %3 = vector.shape_cast %2 : vector<1x8x64xf32> to vector<8x64xf32>
    %c0_5 = arith.constant 0 : index
    %c0_6 = arith.constant 0 : index
    %4 = vector.load %arg3[%c0_5, %c0_6] : memref<128x8xf32, #tpu.memory_space<vmem>>, vector<128x8xf32>
    %cst = arith.constant dense<0.000000e+00> : vector<128x512xf32>
    %5 = tpu.matmul %4, %1, %cst {dimension_numbers = #tpu.dot_dimension_numbers<[1], [0], [0], [1], [0, 0, 1, 1], [], []>} : vector<128x8xf32>, vector<8x512xf32>, vector<128x512xf32> -> vector<128x512xf32>
    %c0_7 = arith.constant 0 : index
    %c0_8 = arith.constant 0 : index
    %6 = vector.load %arg4[%c0_7, %c0_8] : memref<256x8xf32, #tpu.memory_space<vmem>>, vector<256x8xf32>
    %cst_9 = arith.constant dense<0.000000e+00> : vector<256x64xf32>
    %7 = tpu.matmul %6, %3, %cst_9 {dimension_numbers = #tpu.dot_dimension_numbers<[1], [0], [0], [1], [0, 0, 1, 1], [], []>} : vector<256x8xf32>, vector<8x64xf32>, vector<256x64xf32> -> vector<256x64xf32>
    %8 = vector.extract_strided_slice %7 {offsets = [0, 0], sizes = [128, 64], strides = [1, 1]} : vector<256x64xf32> to vector<128x64xf32>
    %9 = vector.extract_strided_slice %7 {offsets = [128, 0], sizes = [128, 64], strides = [1, 1]} : vector<256x64xf32> to vector<128x64xf32>
    %cst_10 = arith.constant dense<0xFF800000> : vector<128xf32>
    %10 = vector.multi_reduction <maximumf>, %8, %cst_10 [1] : vector<128x64xf32> to vector<128xf32>
    %11 = vector.shape_cast %10 : vector<128xf32> to vector<128x1xf32>
    %12 = vector.broadcast %11 : vector<128x1xf32> to vector<128x64xf32>
    %13 = arith.subf %8, %12 : vector<128x64xf32>
    %14 = math.exp %13 : vector<128x64xf32>
    %cst_11 = arith.constant dense<0.000000e+00> : vector<128xf32>
    %15 = vector.multi_reduction <add>, %14, %cst_11 [1] : vector<128x64xf32> to vector<128xf32>
    %16 = vector.shape_cast %15 : vector<128xf32> to vector<128x1xf32>
    %17 = vector.broadcast %16 : vector<128x1xf32> to vector<128x64xf32>
    %18 = arith.divf %14, %17 : vector<128x64xf32>
    %19 = vector.shape_cast %5 : vector<128x512xf32> to vector<4x32x512xf32>
    %cst_12 = arith.constant dense<0xFF800000> : vector<4x512xf32>
    %20 = vector.multi_reduction <maximumf>, %19, %cst_12 [1] : vector<4x32x512xf32> to vector<4x512xf32>
    %21 = vector.shape_cast %20 : vector<4x512xf32> to vector<4x1x512xf32>
    %22 = vector.broadcast %21 : vector<4x1x512xf32> to vector<4x32x512xf32>
    %23 = arith.subf %19, %22 : vector<4x32x512xf32>
    %24 = math.exp %23 : vector<4x32x512xf32>
    %cst_13 = arith.constant dense<0.000000e+00> : vector<4x512xf32>
    %25 = vector.multi_reduction <add>, %24, %cst_13 [1] : vector<4x32x512xf32> to vector<4x512xf32>
    %26 = vector.shape_cast %25 : vector<4x512xf32> to vector<4x1x512xf32>
    %cst_14 = arith.constant 0.00276213582 : f32
    %27 = vector.broadcast %cst_14 : f32 to vector<4x1x512xf32>
    %28 = arith.divf %27, %26 : vector<4x1x512xf32>
    %29 = vector.broadcast %28 : vector<4x1x512xf32> to vector<4x32x512xf32>
    %30 = arith.mulf %24, %29 : vector<4x32x512xf32>
    %31 = vector.shape_cast %18 : vector<128x64xf32> to vector<4x32x64xf32>
    %32 = vector.shape_cast %9 : vector<128x64xf32> to vector<4x32x64xf32>
    "tpu.trace_start"() <{level = 10 : i32, message = "hen,hdn->hed"}> : () -> ()
    %cst_15 = arith.constant dense<0.000000e+00> : vector<4x32x32xf32>
    %33 = tpu.matmul %32, %31, %cst_15 {dimension_numbers = #tpu.dot_dimension_numbers<[2], [2], [1], [1], [0, 0, 0, 1, 1, 1], [0], [0]>} : vector<4x32x64xf32>, vector<4x32x64xf32>, vector<4x32x32xf32> -> vector<4x32x32xf32>
    "tpu.trace_stop"() : () -> ()
    "tpu.trace_start"() <{level = 10 : i32, message = "hed,hdn->hen"}> : () -> ()
    %cst_16 = arith.constant dense<0.000000e+00> : vector<4x32x512xf32>
    %34 = tpu.matmul %33, %30, %cst_16 {dimension_numbers = #tpu.dot_dimension_numbers<[2], [1], [1], [2], [0, 0, 0, 1, 1, 2], [0], [0]>} : vector<4x32x32xf32>, vector<4x32x512xf32>, vector<4x32x512xf32> -> vector<4x32x512xf32>
    "tpu.trace_stop"() : () -> ()
    %35 = vector.shape_cast %34 : vector<4x32x512xf32> to vector<128x512xf32>
    %c0_17 = arith.constant 0 : index
    %c0_18 = arith.constant 0 : index
    %36 = vector.load %arg5[%c0_17, %c0_18] : memref<8x128xf32, #tpu.memory_space<vmem>>, vector<8x128xf32>
    %cst_19 = arith.constant dense<0.000000e+00> : vector<8x512xf32>
    %37 = tpu.matmul %36, %35, %cst_19 {dimension_numbers = #tpu.dot_dimension_numbers<[1], [0], [0], [1], [0, 0, 1, 1], [], []>} : vector<8x128xf32>, vector<128x512xf32>, vector<8x512xf32> -> vector<8x512xf32>
    %c0_20 = arith.constant 0 : index
    %c0_21 = arith.constant 0 : index
    %38 = vector.load %arg6[%c0_20, %c0_21] : memref<8x1xf32, #tpu.memory_space<vmem>>, vector<8x1xf32>
    %39 = vector.broadcast %38 : vector<8x1xf32> to vector<8x512xf32>
    %40 = arith.addf %37, %39 : vector<8x512xf32>
    %cst_22 = arith.constant dense<0.000000e+00> : vector<512xf32>
    %41 = vector.multi_reduction <add>, %40, %cst_22 [0] : vector<8x512xf32> to vector<512xf32>
    %42 = vector.shape_cast %41 : vector<512xf32> to vector<1x512xf32>
    %cst_23 = arith.constant 8.000000e+00 : f32
    %43 = vector.broadcast %cst_23 : f32 to vector<1x512xf32>
    %44 = arith.divf %42, %43 : vector<1x512xf32>
    %45 = vector.broadcast %44 : vector<1x512xf32> to vector<8x512xf32>
    %46 = arith.subf %40, %45 : vector<8x512xf32>
    %47 = arith.mulf %46, %46 : vector<8x512xf32>
    %cst_24 = arith.constant dense<0.000000e+00> : vector<512xf32>
    %48 = vector.multi_reduction <add>, %47, %cst_24 [0] : vector<8x512xf32> to vector<512xf32>
    %49 = vector.shape_cast %48 : vector<512xf32> to vector<1x512xf32>
    %cst_25 = arith.constant 8.000000e+00 : f32
    %50 = vector.broadcast %cst_25 : f32 to vector<1x512xf32>
    %51 = arith.divf %49, %50 : vector<1x512xf32>
    %cst_26 = arith.constant 9.99999974E-6 : f32
    %52 = vector.broadcast %cst_26 : f32 to vector<1x512xf32>
    %53 = arith.addf %51, %52 : vector<1x512xf32>
    %54 = math.rsqrt %53 : vector<1x512xf32>
    %55 = vector.broadcast %54 : vector<1x512xf32> to vector<8x512xf32>
    %56 = arith.mulf %46, %55 : vector<8x512xf32>
    %c0_27 = arith.constant 0 : index
    %c0_28 = arith.constant 0 : index
    %57 = vector.load %arg7[%c0_27, %c0_28] : memref<8x1xf32, #tpu.memory_space<vmem>>, vector<8x1xf32>
    %58 = vector.broadcast %57 : vector<8x1xf32> to vector<8x512xf32>
    %59 = arith.mulf %56, %58 : vector<8x512xf32>
    %c0_29 = arith.constant 0 : index
    %c0_30 = arith.constant 0 : index
    %c0_31 = arith.constant 0 : index
    %60 = vector.load %arg8[%c0_29, %c0_30, %c0_31] : memref<1x8x512xf32, #tpu.memory_space<vmem>>, vector<1x8x512xf32>
    %61 = vector.shape_cast %60 : vector<1x8x512xf32> to vector<8x512xf32>
    %62 = vector.shape_cast %59 : vector<8x512xf32> to vector<1x8x512xf32>
    tpu.vector_store %arg8[%c0_29, %c0_30, %c0_31], %62 {strides = array<i32>} : memref<1x8x512xf32, #tpu.memory_space<vmem>>, vector<1x8x512xf32>,
    return
  }
  func.func @transform_0(%arg0: i32) -> (i32, i32, i32) {
    %c0_i32 = arith.constant 0 : i32
    %c0_i32_0 = arith.constant 0 : i32
    %c0_i32_1 = arith.constant 0 : i32
    return %arg0, %c0_i32, %c0_i32_0 : i32, i32, i32
  }
  func.func @transform_1(%arg0: i32) -> (i32, i32, i32) {
    %c0_i32 = arith.constant 0 : i32
    %c0_i32_0 = arith.constant 0 : i32
    %c0_i32_1 = arith.constant 0 : i32
    return %arg0, %c0_i32, %c0_i32_0 : i32, i32, i32
  }
  func.func @transform_2(%arg0: i32) -> (i32, i32) {
    %c0_i32 = arith.constant 0 : i32
    %c0_i32_0 = arith.constant 0 : i32
    %c0_i32_1 = arith.constant 0 : i32
    return %c0_i32, %c0_i32_0 : i32, i32
  }
  func.func @transform_3(%arg0: i32) -> (i32, i32) {
    %c0_i32 = arith.constant 0 : i32
    %c0_i32_0 = arith.constant 0 : i32
    %c0_i32_1 = arith.constant 0 : i32
    return %c0_i32, %c0_i32_0 : i32, i32
  }
  func.func @transform_4(%arg0: i32) -> (i32, i32) {
    %c0_i32 = arith.constant 0 : i32
    %c0_i32_0 = arith.constant 0 : i32
    %c0_i32_1 = arith.constant 0 : i32
    return %c0_i32, %c0_i32_0 : i32, i32
  }
  func.func @transform_5(%arg0: i32) -> (i32, i32) {
    %c0_i32 = arith.constant 0 : i32
    %c0_i32_0 = arith.constant 0 : i32
    %c0_i32_1 = arith.constant 0 : i32
    return %c0_i32, %c0_i32_0 : i32, i32
  }
  func.func @transform_6(%arg0: i32) -> (i32, i32) {
    %c0_i32 = arith.constant 0 : i32
    %c0_i32_0 = arith.constant 0 : i32
    %c0_i32_1 = arith.constant 0 : i32
    return %c0_i32, %c0_i32_0 : i32, i32
  }
  func.func @transform_7(%arg0: i32) -> (i32, i32, i32) {
    %c0_i32 = arith.constant 0 : i32
    %c0_i32_0 = arith.constant 0 : i32
    %c0_i32_1 = arith.constant 0 : i32
    return %arg0, %c0_i32, %c0_i32_0 : i32, i32, i32
  }
}

</mosaic_0001>

<llo_original>
// kernel: tpu_custom_call.1
$region0: #{tpu_custom_call.1}
  #allocation0 [shape = 'u32[]', space=smem, size = 0x4, offset = 0x4, fixed_abs, tag = 'smem constant byte address 0x4 - core index']
  #allocation1 [shape = 'u32[144,128]{1,0:T(1,128)}', space=vmem, size = 0x12000, scoped, tag = 'internal scratch']
  %s0 = inlined_call_operand.vmem [shape: f32[2,8,512], index: 0, kind: input, shape index: {}]
  %s1 = inlined_call_operand.vmem [shape: f32[2,8,64], index: 1, kind: input, shape index: {}]
  %s2 = inlined_call_operand.vmem [shape: f32[128,8], index: 2, kind: input, shape index: {}]
  %s3 = inlined_call_operand.vmem [shape: f32[256,8], index: 3, kind: input, shape index: {}]
  %s4 = inlined_call_operand.vmem [shape: f32[8,128], index: 4, kind: input, shape index: {}]
  %s5 = inlined_call_operand.vmem [shape: f32[8,1], index: 5, kind: input, shape index: {}]
  %s6 = inlined_call_operand.vmem [shape: f32[8,1], index: 6, kind: input, shape index: {}]
  %s7 = inlined_call_operand.hbm [shape: f32[2,8,512], index: 7, kind: output, shape index: {}]
  %s8 = sld [smem:[#allocation0]]
  $region61: #{tpu_custom_call.1} parent=0
    _
  %s10 = ssub.s32 1, %s8
  %s11 = scalar_select 0, %s10, %s8
  $region1: #{tpu_custom_call.1} parent=0
    #allocation2 [shape = 'u8[32768]{0}', space=vmem, size = 0x8000, scoped, tag = 'output window, operand 0']
    #allocation3 [shape = 's32[2]{0}', space=sflag, size = 0x8, scoped, tag = 'scoped memory for tpu_custom_call.1']
    %12 = vsyncpa [#allocation3], 0
    %s13 = scalar_lea.sflag [#allocation3], 1
    %14 = vsyncpa %s13, 0
    loop: start=0, step=1, limit=4
    $region2: #{tpu_custom_call.1} parent=1 // loop_pre_header
      _
    $region3: #{tpu_custom_call.1} parent=1 // loop_header
      %s16 = sphi 0, %s20
      %p17 = scmp.ge.s32.totalorder %s16, 4
      %s26 = sphi 0, %s28
      %s29 = sphi 0, %s26
      %s30 = sphi 0, %s29
      %s46 = sphi 0, %s30
      %s52 = sphi 0, %s54
      %s55 = sphi 0, %s52
      %s56 = sphi 0, %s55
      %s72 = sphi 0, %s56
      %s76 = sphi 0, %s76
      %s78 = sphi 0, %s76
      %s79 = sphi 0, %s78
      %s93 = sphi 0, %s79
      %s97 = sphi 0, %s97
      %s99 = sphi 0, %s97
      %s100 = sphi 0, %s99
      %s114 = sphi 0, %s100
      %s118 = sphi 0, %s118
      %s120 = sphi 0, %s118
      %s121 = sphi 0, %s120
      %s135 = sphi 0, %s121
      %s139 = sphi 0, %s139
      %s141 = sphi 0, %s139
      %s142 = sphi 0, %s141
      %s156 = sphi 0, %s142
      %s160 = sphi 0, %s160
      %s162 = sphi 0, %s160
      %s163 = sphi 0, %s162
      %s177 = sphi 0, %s163
      %s183 = sphi 0, %s185
      %s186 = sphi 0, %s183
      %s187 = sphi 0, %s186
      %s203 = sphi 0, %s187
    $region4: #{tpu_custom_call.1} parent=1 // loop_header_branch
      %19 = sbr.rel (%p17) target = $region8
    $region5: #{tpu_custom_call.1} parent=1 // loop_body
      %s21 = ssub.s32 %s16, 1
      %s22 = ssub.s32 %s16, 2
      %s23 = sadd.s32 %s16, 1
      %s24 = ssub.s32 %s16, %s23
      %p25 = scmp.eq.s32.totalorder %s24, 0
      %s27 = sadd.s32 %s26, 1
      %s28 = scalar_select %p25, %s26, %s27
      %p31 = pneg %p25
      %p32 = scmp.eq.s32.totalorder %s16, 1
      %p33 = por %p31, %p32
      %p34 = scmp.ne.s32.totalorder %s26, %s29
      %p35 = scmp.eq.s32.totalorder %s16, 0
      %p36 = por %p34, %p35
      %p37 = scmp.ne.s32.totalorder %s26, %s29
      %p38 = scmp.eq.s32.totalorder %s21, 1
      %p39 = por %p37, %p38
      %p40 = scmp.ne.s32.totalorder %s29, %s30
      %p41 = scmp.eq.s32.totalorder %s21, 0
      %p42 = por %p40, %p41
      %p43 = scmp.ne.s32.totalorder %s29, %s30
      %p44 = scmp.eq.s32.totalorder %s22, 1
      %p45 = por %p43, %p44
      %p47 = scmp.ne.s32.totalorder %s30, %s46
      %p48 = scmp.eq.s32.totalorder %s22, 0
      %p49 = por %p47, %p48
      %s50 = ssub.s32 %s16, %s23
      %p51 = scmp.eq.s32.totalorder %s50, 0
      %s53 = sadd.s32 %s52, 1
      %s54 = scalar_select %p51, %s52, %s53
      %p57 = pneg %p51
      %p58 = scmp.eq.s32.totalorder %s16, 1
      %p59 = por %p57, %p58
      %p60 = scmp.ne.s32.totalorder %s52, %s55
      %p61 = scmp.eq.s32.totalorder %s16, 0
      %p62 = por %p60, %p61
      %p63 = scmp.ne.s32.totalorder %s52, %s55
      %p64 = scmp.eq.s32.totalorder %s21, 1
      %p65 = por %p63, %p64
      %p66 = scmp.ne.s32.totalorder %s55, %s56
      %p67 = scmp.eq.s32.totalorder %s21, 0
      %p68 = por %p66, %p67
      %p69 = scmp.ne.s32.totalorder %s55, %s56
      %p70 = scmp.eq.s32.totalorder %s22, 1
      %p71 = por %p69, %p70
      %p73 = scmp.ne.s32.totalorder %s56, %s72
      %p74 = scmp.eq.s32.totalorder %s22, 0
      %p75 = por %p73, %p74
      %s77 = sadd.s32 %s76, 1
      %p80 = scmp.eq.s32.totalorder %s16, 1
      %p81 = scmp.ne.s32.totalorder %s76, %s78
      %p82 = scmp.eq.s32.totalorder %s16, 0
      %p83 = por %p81, %p82
      %p84 = scmp.ne.s32.totalorder %s76, %s78
      %p85 = scmp.eq.s32.totalorder %s21, 1
      %p86 = por %p84, %p85
      %p87 = scmp.ne.s32.totalorder %s78, %s79
      %p88 = scmp.eq.s32.totalorder %s21, 0
      %p89 = por %p87, %p88
      %p90 = scmp.ne.s32.totalorder %s78, %s79
      %p91 = scmp.eq.s32.totalorder %s22, 1
      %p92 = por %p90, %p91
      %p94 = scmp.ne.s32.totalorder %s79, %s93
      %p95 = scmp.eq.s32.totalorder %s22, 0
      %p96 = por %p94, %p95
      %s98 = sadd.s32 %s97, 1
      %p101 = scmp.eq.s32.totalorder %s16, 1
      %p102 = scmp.ne.s32.totalorder %s97, %s99
      %p103 = scmp.eq.s32.totalorder %s16, 0
      %p104 = por %p102, %p103
      %p105 = scmp.ne.s32.totalorder %s97, %s99
      %p106 = scmp.eq.s32.totalorder %s21, 1
      %p107 = por %p105, %p106
      %p108 = scmp.ne.s32.totalorder %s99, %s100
      %p109 = scmp.eq.s32.totalorder %s21, 0
      %p110 = por %p108, %p109
      %p111 = scmp.ne.s32.totalorder %s99, %s100
      %p112 = scmp.eq.s32.totalorder %s22, 1
      %p113 = por %p111, %p112
      %p115 = scmp.ne.s32.totalorder %s100, %s114
      %p116 = scmp.eq.s32.totalorder %s22, 0
      %p117 = por %p115, %p116
      %s119 = sadd.s32 %s118, 1
      %p122 = scmp.eq.s32.totalorder %s16, 1
      %p123 = scmp.ne.s32.totalorder %s118, %s120
      %p124 = scmp.eq.s32.totalorder %s16, 0
      %p125 = por %p123, %p124
      %p126 = scmp.ne.s32.totalorder %s118, %s120
      %p127 = scmp.eq.s32.totalorder %s21, 1
      %p128 = por %p126, %p127
      %p129 = scmp.ne.s32.totalorder %s120, %s121
      %p130 = scmp.eq.s32.totalorder %s21, 0
      %p131 = por %p129, %p130
      %p132 = scmp.ne.s32.totalorder %s120, %s121
      %p133 = scmp.eq.s32.totalorder %s22, 1
      %p134 = por %p132, %p133
      %p136 = scmp.ne.s32.totalorder %s121, %s135
      %p137 = scmp.eq.s32.totalorder %s22, 0
      %p138 = por %p136, %p137
      %s140 = sadd.s32 %s139, 1
      %p143 = scmp.eq.s32.totalorder %s16, 1
      %p144 = scmp.ne.s32.totalorder %s139, %s141
      %p145 = scmp.eq.s32.totalorder %s16, 0
      %p146 = por %p144, %p145
      %p147 = scmp.ne.s32.totalorder %s139, %s141
      %p148 = scmp.eq.s32.totalorder %s21, 1
      %p149 = por %p147, %p148
      %p150 = scmp.ne.s32.totalorder %s141, %s142
      %p151 = scmp.eq.s32.totalorder %s21, 0
      %p152 = por %p150, %p151
      %p153 = scmp.ne.s32.totalorder %s141, %s142
      %p154 = scmp.eq.s32.totalorder %s22, 1
      %p155 = por %p153, %p154
      %p157 = scmp.ne.s32.totalorder %s142, %s156
      %p158 = scmp.eq.s32.totalorder %s22, 0
      %p159 = por %p157, %p158
      %s161 = sadd.s32 %s160, 1
      %p164 = scmp.eq.s32.totalorder %s16, 1
      %p165 = scmp.ne.s32.totalorder %s160, %s162
      %p166 = scmp.eq.s32.totalorder %s16, 0
      %p167 = por %p165, %p166
      %p168 = scmp.ne.s32.totalorder %s160, %s162
      %p169 = scmp.eq.s32.totalorder %s21, 1
      %p170 = por %p168, %p169
      %p171 = scmp.ne.s32.totalorder %s162, %s163
      %p172 = scmp.eq.s32.totalorder %s21, 0
      %p173 = por %p171, %p172
      %p174 = scmp.ne.s32.totalorder %s162, %s163
      %p175 = scmp.eq.s32.totalorder %s22, 1
      %p176 = por %p174, %p175
      %p178 = scmp.ne.s32.totalorder %s163, %s177
      %p179 = scmp.eq.s32.totalorder %s22, 0
      %p180 = por %p178, %p179
      %s181 = ssub.s32 %s16, %s23
      %p182 = scmp.eq.s32.totalorder %s181, 0
      %s184 = sadd.s32 %s183, 1
      %s185 = scalar_select %p182, %s183, %s184
      %p188 = pneg %p182
      %p189 = scmp.eq.s32.totalorder %s16, 1
      %p190 = por %p188, %p189
      %p191 = scmp.ne.s32.totalorder %s183, %s186
      %p192 = scmp.eq.s32.totalorder %s16, 0
      %p193 = por %p191, %p192
      %p194 = scmp.ne.s32.totalorder %s183, %s186
      %p195 = scmp.eq.s32.totalorder %s21, 1
      %p196 = por %p194, %p195
      %p197 = scmp.ne.s32.totalorder %s186, %s187
      %p198 = scmp.eq.s32.totalorder %s21, 0
      %p199 = por %p197, %p198
      %p200 = scmp.ne.s32.totalorder %s186, %s187
      %p201 = scmp.eq.s32.totalorder %s22, 1
      %p202 = por %p200, %p201
      %p204 = scmp.ne.s32.totalorder %s187, %s203
      %p205 = scmp.eq.s32.totalorder %s22, 0
      %p206 = por %p204, %p205
      %p207 = scmp.le.s32.totalorder 1, %s16
      %p208 = scmp.lt.s32.totalorder %s16, 3
      %p209 = pnand %p207, %p208
      %p210 = pneg %p209
      // Predicated region
      $region9: #{tpu_custom_call.1} parent=5 // pred_check
        _
      $region10: #{tpu_custom_call.1} parent=5 // pred_check_branch
        %212 = sbr.rel (%p209) target = $region12
      $region11: #{tpu_custom_call.1} parent=5 // pred_region
        %s213 = ssub.s32 %s16, 1
        // Predicated region
        $region13: #{tpu_custom_call.1} parent=11 // pred_check
          %p214 = pneg %p89
        $region14: #{tpu_custom_call.1} parent=11 // pred_check_branch
          %216 = sbr.rel (%p214) target = $region16
        $region15: #{tpu_custom_call.1} parent=11 // pred_region
          _
        $region16: #{tpu_custom_call.1} parent=11 // pred_fallthru
          _
        // Predicated region
        $region17: #{tpu_custom_call.1} parent=11 // pred_check
          %p217 = pneg %p110
        $region18: #{tpu_custom_call.1} parent=11 // pred_check_branch
          %219 = sbr.rel (%p217) target = $region20
        $region19: #{tpu_custom_call.1} parent=11 // pred_region
          _
        $region20: #{tpu_custom_call.1} parent=11 // pred_fallthru
          _
        // Predicated region
        $region21: #{tpu_custom_call.1} parent=11 // pred_check
          %p220 = pneg %p131
        $region22: #{tpu_custom_call.1} parent=11 // pred_check_branch
          %222 = sbr.rel (%p220) target = $region24
        $region23: #{tpu_custom_call.1} parent=11 // pred_region
          _
        $region24: #{tpu_custom_call.1} parent=11 // pred_fallthru
          _
        // Predicated region
        $region25: #{tpu_custom_call.1} parent=11 // pred_check
          %p223 = pneg %p152
        $region26: #{tpu_custom_call.1} parent=11 // pred_check_branch
          %225 = sbr.rel (%p223) target = $region28
        $region27: #{tpu_custom_call.1} parent=11 // pred_region
          _
        $region28: #{tpu_custom_call.1} parent=11 // pred_fallthru
          _
        // Predicated region
        $region29: #{tpu_custom_call.1} parent=11 // pred_check
          %p226 = pneg %p173
        $region30: #{tpu_custom_call.1} parent=11 // pred_check_branch
          %228 = sbr.rel (%p226) target = $region32
        $region31: #{tpu_custom_call.1} parent=11 // pred_region
          _
        $region32: #{tpu_custom_call.1} parent=11 // pred_fallthru
          _
      $region12: #{tpu_custom_call.1} parent=5 // pred_fallthru
        _
      %p229 = scmp.lt.s32.totalorder %s16, 2
      // Predicated region
      $region33: #{tpu_custom_call.1} parent=5 // pred_check
        %p230 = pneg %p229
      $region34: #{tpu_custom_call.1} parent=5 // pred_check_branch
        %232 = sbr.rel (%p230) target = $region36
      $region35: #{tpu_custom_call.1} parent=5 // pred_region
        // Predicated region
        $region37: #{tpu_custom_call.1} parent=35 // pred_check
          %p233 = pneg %p36
        $region38: #{tpu_custom_call.1} parent=35 // pred_check_branch
          %235 = sbr.rel (%p233) target = $region40
        $region39: #{tpu_custom_call.1} parent=35 // pred_region
          %p236 = scmp.lt.s32.totalorder %s16, 1
          %s237 = scalar_select %p236, %s16, 1
          %s238 = smul.addr %s237, 4
          %s239 = smul.addr %s238, 8
          %s240 = scalar_lea.vmem %s0, %s239
        $region40: #{tpu_custom_call.1} parent=35 // pred_fallthru
          _
        // Predicated region
        $region41: #{tpu_custom_call.1} parent=35 // pred_check
          %p241 = pneg %p62
        $region42: #{tpu_custom_call.1} parent=35 // pred_check_branch
          %243 = sbr.rel (%p241) target = $region44
        $region43: #{tpu_custom_call.1} parent=35 // pred_region
          %p244 = scmp.lt.s32.totalorder %s16, 1
          %s245 = scalar_select %p244, %s16, 1
          %s246 = smul.addr %s245, 8
          %s247 = scalar_lea.vmem %s1, %s246
        $region44: #{tpu_custom_call.1} parent=35 // pred_fallthru
          _
      $region36: #{tpu_custom_call.1} parent=5 // pred_fallthru
        _
      %p248 = scmp.le.s32.totalorder 1, %s16
      %p249 = scmp.lt.s32.totalorder %s16, 3
      %p250 = pnand %p248, %p249
      %p251 = pneg %p250
      // Predicated region
      $region45: #{tpu_custom_call.1} parent=5 // pred_check
        _
      $region46: #{tpu_custom_call.1} parent=5 // pred_check_branch
        %253 = sbr.rel (%p250) target = $region48
      $region47: #{tpu_custom_call.1} parent=5 // pred_region
        %s254 = ssub.s32 %s16, 1
        %p255 = scmp.lt.s32.totalorder %s21, 1
        %s256 = scalar_select %p255, %s21, 1
        %s257 = smul.addr %s256, 4
        %s258 = smul.addr %s257, 8
        %s259 = scalar_lea.vmem %s0, %s258
        %p260 = pneg %p42
        %p261 = pneg %p39
        %p262 = scmp.lt.s32.totalorder %s21, 1
        %s263 = scalar_select %p262, %s21, 1
        %s264 = smul.addr %s263, 8
        %s265 = scalar_lea.vmem %s1, %s264
        %p266 = pneg %p68
        %p267 = pneg %p65
        %p268 = pneg %p89
        %p269 = pneg %p86
        %p270 = pneg %p110
        %p271 = pneg %p107
        %p272 = pneg %p131
        %p273 = pneg %p128
        %p274 = pneg %p152
        %p275 = pneg %p149
        %p276 = pneg %p173
        %p277 = pneg %p170
        %p278 = pneg %p199
        %p279 = pneg %p196
        %s280 = sand.u32 %s186, 1
        %s281 = scalar_lea.sflag [#allocation3], %s280
        %s282 = sand.u32 %s186, 1
        %s283 = smul.addr %s282, 32
        %s284 = scalar_lea.vmem [#allocation2], %s283
        %p285 = scmp.lt.s32.totalorder %s21, 1
        %s286 = scalar_select %p285, %s21, 1
        %s287 = smul.addr %s286, 4
        %s288 = smul.addr %s287, 8
        %s289 = scalar_lea.vmem %s0, %s288
        %p290 = scmp.lt.s32.totalorder %s21, 1
        %s291 = scalar_select %p290, %s21, 1
        %s292 = smul.addr %s291, 8
        %s293 = scalar_lea.vmem %s1, %s292
        %v294 = vld [vmem:[%s289] sm:$0xff]
        %v295 = vld [vmem:[%s289 + $0x8] sm:$0xff]
        %v296 = vld [vmem:[%s289 + $0x10] sm:$0xff]
        %v297 = vld [vmem:[%s289 + $0x18] sm:$0xff]
        %v298 = vld [vmem:[%s293] sm:$0xff]
        %v299 = vld [vmem:[%s2] sm:$0xff]
        %v300 = vld [vmem:[%s2 + $0x8] sm:$0xff]
        %v301 = vld [vmem:[%s2 + $0x10] sm:$0xff]
        %v302 = vld [vmem:[%s2 + $0x18] sm:$0xff]
        %v303 = vld [vmem:[%s2 + $0x20] sm:$0xff]
        %v304 = vld [vmem:[%s2 + $0x28] sm:$0xff]
        %v305 = vld [vmem:[%s2 + $0x30] sm:$0xff]
        %v306 = vld [vmem:[%s2 + $0x38] sm:$0xff]
        %v307 = vld [vmem:[%s2 + $0x40] sm:$0xff]
        %v308 = vld [vmem:[%s2 + $0x48] sm:$0xff]
        %v309 = vld [vmem:[%s2 + $0x50] sm:$0xff]
        %v310 = vld [vmem:[%s2 + $0x58] sm:$0xff]
        %v311 = vld [vmem:[%s2 + $0x60] sm:$0xff]
        %v312 = vld [vmem:[%s2 + $0x68] sm:$0xff]
        %v313 = vld [vmem:[%s2 + $0x70] sm:$0xff]
        %v314 = vld [vmem:[%s2 + $0x78] sm:$0xff]
        %vm315 = vcmask 64512
        %v317 = vsel %vm315, %v299, 0
        %v320 = vsel %vm315, %v300, 0
        %v323 = vsel %vm315, %v301, 0
        %v326 = vsel %vm315, %v302, 0
        %v329 = vsel %vm315, %v303, 0
        %v332 = vsel %vm315, %v304, 0
        %v335 = vsel %vm315, %v305, 0
        %v338 = vsel %vm315, %v306, 0
        %v341 = vsel %vm315, %v307, 0
        %v344 = vsel %vm315, %v308, 0
        %v347 = vsel %vm315, %v309, 0
        %v350 = vsel %vm315, %v310, 0
        %v353 = vsel %vm315, %v311, 0
        %v356 = vsel %vm315, %v312, 0
        %v359 = vsel %vm315, %v313, 0
        %v362 = vsel %vm315, %v314, 0
        %364 = vmatprep.subr.mxu0 %v295
        %365 = vmatpush1.msra.mxu0 %v294
        %366 = vmatprep.subr.mxu0 0.0
        %367 = vmatpush1.msra.mxu0 0.0
        %368 = vmatprep.subr.mxu0 0.0
        %369 = vmatpush1.msra.mxu0 0.0
        %370 = vmatprep.subr.mxu0 0.0
        %371 = vmatpush1.msra.mxu0 0.0
        %372 = vmatprep.subr.mxu0 0.0
        %373 = vmatpush1.msra.mxu0 0.0
        %374 = vmatprep.subr.mxu0 0.0
        %375 = vmatpush1.msra.mxu0 0.0
        %376 = vmatprep.subr.mxu0 0.0
        %377 = vmatpush1.msra.mxu0 0.0
        %378 = vmatprep.subr.mxu0 0.0
        %379 = vmatpush1.msra.mxu0 0.0
        %380 = vmatprep.subr.mxu0 0.0
        %381 = vmatpush1.msra.mxu0 0.0
        %382 = vmatprep.subr.mxu0 0.0
        %383 = vmatpush1.msra.mxu0 0.0
        %384 = vmatprep.subr.mxu0 0.0
        %385 = vmatpush1.msra.mxu0 0.0
        %386 = vmatprep.subr.mxu0 0.0
        %387 = vmatpush1.msra.mxu0 0.0
        %388 = vmatprep.subr.mxu0 0.0
        %389 = vmatpush1.msra.mxu0 0.0
        %390 = vmatprep.subr.mxu0 0.0
        %391 = vmatpush1.msra.mxu0 0.0
        %392 = vmatprep.subr.mxu0 0.0
        %393 = vmatpush1.msra.mxu0 0.0
        %394 = vmatprep.subr.mxu0 0.0
        %395 = vmatpush1.msra.mxu0 0.0
        %396 = vmatprep.subr.mxu0 0.0
        %397 = vmatpush1.msra.mxu0 0.0
        %398 = vmatprep.subr.mxu0 0.0
        %399 = vmatpush1.msra.mxu0 0.0
        %400 = vmatprep.subr.mxu0 0.0
        %401 = vmatpush1.msra.mxu0 0.0
        %402 = vmatprep.subr.mxu0 0.0
        %403 = vmatpush1.msra.mxu0 0.0
        %404 = vmatprep.subr.mxu0 0.0
        %405 = vmatpush1.msra.mxu0 0.0
        %406 = vmatprep.subr.mxu0 0.0
        %407 = vmatpush1.msra.mxu0 0.0
        %408 = vmatprep.subr.mxu0 0.0
        %409 = vmatpush1.msra.mxu0 0.0
        %410 = vmatprep.subr.mxu0 0.0
        %411 = vmatpush1.msra.mxu0 0.0
        %412 = vmatprep.subr.mxu0 0.0
        %413 = vmatpush1.msra.mxu0 0.0
        %414 = vmatprep.subr.mxu0 0.0
        %415 = vmatpush1.msra.mxu0 0.0
        %416 = vmatprep.subr.mxu0 0.0
        %417 = vmatpush1.msra.mxu0 0.0
        %418 = vmatprep.subr.mxu0 0.0
        %419 = vmatpush1.msra.mxu0 0.0
        %420 = vmatprep.subr.mxu0 0.0
        %421 = vmatpush1.msra.mxu0 0.0
        %422 = vmatprep.subr.mxu0 0.0
        %423 = vmatpush1.msra.mxu0 0.0
        %424 = vmatprep.subr.mxu0 0.0
        %425 = vmatpush1.msra.mxu0 0.0
        %426 = vmatprep.subr.mxu0 0.0
        %427 = vmatpush1.msra.mxu0 0.0
        %428 = vmatprep.mubr.f32.mxu0 0.0
        %429 = vmatmul.mubr.f32.gmra.mrb[0].mxu0 %v317
        %v430 = vpop.f32.mrb[0].mxu0
        %v431 = vadd.f32 0.0, %v430
        %v432 = vpop.f32.mrb[0].mxu0
        %v433 = vadd.f32 0.0, %v432
        %434 = vmatprep.mubr.f32.mxu0 0.0
        %435 = vmatmul.mubr.f32.gmra.mrb[0].mxu0 %v320
        %v436 = vpop.f32.mrb[0].mxu0
        %v437 = vadd.f32 0.0, %v436
        %v438 = vpop.f32.mrb[0].mxu0
        %v439 = vadd.f32 0.0, %v438
        %440 = vmatprep.mubr.f32.mxu0 0.0
        %441 = vmatmul.mubr.f32.gmra.mrb[0].mxu0 %v323
        %v442 = vpop.f32.mrb[0].mxu0
        %v443 = vadd.f32 0.0, %v442
        %v444 = vpop.f32.mrb[0].mxu0
        %v445 = vadd.f32 0.0, %v444
        %446 = vmatprep.mubr.f32.mxu0 0.0
        %447 = vmatmul.mubr.f32.gmra.mrb[0].mxu0 %v326
        %v448 = vpop.f32.mrb[0].mxu0
        %v449 = vadd.f32 0.0, %v448
        %v450 = vpop.f32.mrb[0].mxu0
        %v451 = vadd.f32 0.0, %v450
        %452 = vmatprep.mubr.f32.mxu0 0.0
        %453 = vmatmul.mubr.f32.gmra.mrb[0].mxu0 %v329
        %v454 = vpop.f32.mrb[0].mxu0
        %v455 = vadd.f32 0.0, %v454
        %v456 = vpop.f32.mrb[0].mxu0
        %v457 = vadd.f32 0.0, %v456
        %458 = vmatprep.mubr.f32.mxu0 0.0
        %459 = vmatmul.mubr.f32.gmra.mrb[0].mxu0 %v332
        %v460 = vpop.f32.mrb[0].mxu0
        %v461 = vadd.f32 0.0, %v460
        %v462 = vpop.f32.mrb[0].mxu0
        %v463 = vadd.f32 0.0, %v462
        %464 = vmatprep.mubr.f32.mxu0 0.0
        %465 = vmatmul.mubr.f32.gmra.mrb[0].mxu0 %v335
        %v466 = vpop.f32.mrb[0].mxu0
        %v467 = vadd.f32 0.0, %v466
        %v468 = vpop.f32.mrb[0].mxu0
        %v469 = vadd.f32 0.0, %v468
        %470 = vmatprep.mubr.f32.mxu0 0.0
        %471 = vmatmul.mubr.f32.gmra.mrb[0].mxu0 %v338
        %v472 = vpop.f32.mrb[0].mxu0
        %v473 = vadd.f32 0.0, %v472
        %v474 = vpop.f32.mrb[0].mxu0
        %v475 = vadd.f32 0.0, %v474
        %476 = vmatprep.mubr.f32.mxu0 0.0
        %477 = vmatmul.mubr.f32.gmra.mrb[0].mxu0 %v341
        %v478 = vpop.f32.mrb[0].mxu0
        %v479 = vadd.f32 0.0, %v478
        %v480 = vpop.f32.mrb[0].mxu0
        %v481 = vadd.f32 0.0, %v480
        %482 = vmatprep.mubr.f32.mxu0 0.0
        %483 = vmatmul.mubr.f32.gmra.mrb[0].mxu0 %v344
        %v484 = vpop.f32.mrb[0].mxu0
        %v485 = vadd.f32 0.0, %v484
        %v486 = vpop.f32.mrb[0].mxu0
        %v487 = vadd.f32 0.0, %v486
        %488 = vmatprep.mubr.f32.mxu0 0.0
        %489 = vmatmul.mubr.f32.gmra.mrb[0].mxu0 %v347
        %v490 = vpop.f32.mrb[0].mxu0
        %v491 = vadd.f32 0.0, %v490
        %v492 = vpop.f32.mrb[0].mxu0
        %v493 = vadd.f32 0.0, %v492
        %494 = vmatprep.mubr.f32.mxu0 0.0
        %495 = vmatmul.mubr.f32.gmra.mrb[0].mxu0 %v350
        %v496 = vpop.f32.mrb[0].mxu0
        %v497 = vadd.f32 0.0, %v496
        %v498 = vpop.f32.mrb[0].mxu0
        %v499 = vadd.f32 0.0, %v498
        %500 = vmatprep.mubr.f32.mxu0 0.0
        %501 = vmatmul.mubr.f32.gmra.mrb[0].mxu0 %v353
        %v502 = vpop.f32.mrb[0].mxu0
        %v503 = vadd.f32 0.0, %v502
        %v504 = vpop.f32.mrb[0].mxu0
        %v505 = vadd.f32 0.0, %v504
        %506 = vmatprep.mubr.f32.mxu0 0.0
        %507 = vmatmul.mubr.f32.gmra.mrb[0].mxu0 %v356
        %v508 = vpop.f32.mrb[0].mxu0
        %v509 = vadd.f32 0.0, %v508
        %v510 = vpop.f32.mrb[0].mxu0
        %v511 = vadd.f32 0.0, %v510
        %512 = vmatprep.mubr.f32.mxu0 0.0
        %513 = vmatmul.mubr.f32.gmra.mrb[0].mxu0 %v359
        %v514 = vpop.f32.mrb[0].mxu0
        %v515 = vadd.f32 0.0, %v514
        %v516 = vpop.f32.mrb[0].mxu0
        %v517 = vadd.f32 0.0, %v516
        %518 = vmatprep.mubr.f32.mxu0 0.0
        %519 = vmatmul.mubr.f32.gmra.mrb[0].mxu0 %v362
        %v520 = vpop.f32.mrb[0].mxu0
        %v521 = vadd.f32 0.0, %v520
        %v522 = vpop.f32.mrb[0].mxu0
        %v523 = vadd.f32 0.0, %v522
        %524 = vdwg.mxu0
        %525 = vmatprep.subr.mxu0 %v297
        %526 = vmatpush1.msra.mxu0 %v296
        %527 = vmatprep.subr.mxu0 0.0
        %528 = vmatpush1.msra.mxu0 0.0
        %529 = vmatprep.subr.mxu0 0.0
        %530 = vmatpush1.msra.mxu0 0.0
        %531 = vmatprep.subr.mxu0 0.0
        %532 = vmatpush1.msra.mxu0 0.0
        %533 = vmatprep.subr.mxu0 0.0
        %534 = vmatpush1.msra.mxu0 0.0
        %535 = vmatprep.subr.mxu0 0.0
        %536 = vmatpush1.msra.mxu0 0.0
        %537 = vmatprep.subr.mxu0 0.0
        %538 = vmatpush1.msra.mxu0 0.0
        %539 = vmatprep.subr.mxu0 0.0
        %540 = vmatpush1.msra.mxu0 0.0
        %541 = vmatprep.subr.mxu0 0.0
        %542 = vmatpush1.msra.mxu0 0.0
        %543 = vmatprep.subr.mxu0 0.0
        %544 = vmatpush1.msra.mxu0 0.0
        %545 = vmatprep.subr.mxu0 0.0
        %546 = vmatpush1.msra.mxu0 0.0
        %547 = vmatprep.subr.mxu0 0.0
        %548 = vmatpush1.msra.mxu0 0.0
        %549 = vmatprep.subr.mxu0 0.0
        %550 = vmatpush1.msra.mxu0 0.0
        %551 = vmatprep.subr.mxu0 0.0
        %552 = vmatpush1.msra.mxu0 0.0
        %553 = vmatprep.subr.mxu0 0.0
        %554 = vmatpush1.msra.mxu0 0.0
        %555 = vmatprep.subr.mxu0 0.0
        %556 = vmatpush1.msra.mxu0 0.0
        %557 = vmatprep.subr.mxu0 0.0
        %558 = vmatpush1.msra.mxu0 0.0
        %559 = vmatprep.subr.mxu0 0.0
        %560 = vmatpush1.msra.mxu0 0.0
        %561 = vmatprep.subr.mxu0 0.0
        %562 = vmatpush1.msra.mxu0 0.0
        %563 = vmatprep.subr.mxu0 0.0
        %564 = vmatpush1.msra.mxu0 0.0
        %565 = vmatprep.subr.mxu0 0.0
        %566 = vmatpush1.msra.mxu0 0.0
        %567 = vmatprep.subr.mxu0 0.0
        %568 = vmatpush1.msra.mxu0 0.0
        %569 = vmatprep.subr.mxu0 0.0
        %570 = vmatpush1.msra.mxu0 0.0
        %571 = vmatprep.subr.mxu0 0.0
        %572 = vmatpush1.msra.mxu0 0.0
        %573 = vmatprep.subr.mxu0 0.0
        %574 = vmatpush1.msra.mxu0 0.0
        %575 = vmatprep.subr.mxu0 0.0
        %576 = vmatpush1.msra.mxu0 0.0
        %577 = vmatprep.subr.mxu0 0.0
        %578 = vmatpush1.msra.mxu0 0.0
        %579 = vmatprep.subr.mxu0 0.0
        %580 = vmatpush1.msra.mxu0 0.0
        %581 = vmatprep.subr.mxu0 0.0
        %582 = vmatpush1.msra.mxu0 0.0
        %583 = vmatprep.subr.mxu0 0.0
        %584 = vmatpush1.msra.mxu0 0.0
        %585 = vmatprep.subr.mxu0 0.0
        %586 = vmatpush1.msra.mxu0 0.0
        %587 = vmatprep.subr.mxu0 0.0
        %588 = vmatpush1.msra.mxu0 0.0
        %589 = vmatprep.mubr.f32.mxu0 0.0
        %590 = vmatmul.mubr.f32.gmra.mrb[0].mxu0 %v317
        %v591 = vpop.f32.mrb[0].mxu0
        %v592 = vadd.f32 0.0, %v591
        %v593 = vpop.f32.mrb[0].mxu0
        %v594 = vadd.f32 0.0, %v593
        %595 = vmatprep.mubr.f32.mxu0 0.0
        %596 = vmatmul.mubr.f32.gmra.mrb[0].mxu0 %v320
        %v597 = vpop.f32.mrb[0].mxu0
        %v598 = vadd.f32 0.0, %v597
        %v599 = vpop.f32.mrb[0].mxu0
        %v600 = vadd.f32 0.0, %v599
        %601 = vmatprep.mubr.f32.mxu0 0.0
        %602 = vmatmul.mubr.f32.gmra.mrb[0].mxu0 %v323
        %v603 = vpop.f32.mrb[0].mxu0
        %v604 = vadd.f32 0.0, %v603
        %v605 = vpop.f32.mrb[0].mxu0
        %v606 = vadd.f32 0.0, %v605
        %607 = vmatprep.mubr.f32.mxu0 0.0
        %608 = vmatmul.mubr.f32.gmra.mrb[0].mxu0 %v326
        %v609 = vpop.f32.mrb[0].mxu0
        %v610 = vadd.f32 0.0, %v609
        %v611 = vpop.f32.mrb[0].mxu0
        %v612 = vadd.f32 0.0, %v611
        %613 = vmatprep.mubr.f32.mxu0 0.0
        %614 = vmatmul.mubr.f32.gmra.mrb[0].mxu0 %v329
        %v615 = vpop.f32.mrb[0].mxu0
        %v616 = vadd.f32 0.0, %v615
        %v617 = vpop.f32.mrb[0].mxu0
        %v618 = vadd.f32 0.0, %v617
        %619 = vmatprep.mubr.f32.mxu0 0.0
        %620 = vmatmul.mubr.f32.gmra.mrb[0].mxu0 %v332
        %v621 = vpop.f32.mrb[0].mxu0
        %v622 = vadd.f32 0.0, %v621
        %v623 = vpop.f32.mrb[0].mxu0
        %v624 = vadd.f32 0.0, %v623
        %625 = vmatprep.mubr.f32.mxu0 0.0
        %626 = vmatmul.mubr.f32.gmra.mrb[0].mxu0 %v335
        %v627 = vpop.f32.mrb[0].mxu0
        %v628 = vadd.f32 0.0, %v627
        %v629 = vpop.f32.mrb[0].mxu0
        %v630 = vadd.f32 0.0, %v629
        %631 = vmatprep.mubr.f32.mxu0 0.0
        %632 = vmatmul.mubr.f32.gmra.mrb[0].mxu0 %v338
        %v633 = vpop.f32.mrb[0].mxu0
        %v634 = vadd.f32 0.0, %v633
        %v635 = vpop.f32.mrb[0].mxu0
        %v636 = vadd.f32 0.0, %v635
        %637 = vmatprep.mubr.f32.mxu0 0.0
        %638 = vmatmul.mubr.f32.gmra.mrb[0].mxu0 %v341
        %v639 = vpop.f32.mrb[0].mxu0
        %v640 = vadd.f32 0.0, %v639
        %v641 = vpop.f32.mrb[0].mxu0
        %v642 = vadd.f32 0.0, %v641
        %643 = vmatprep.mubr.f32.mxu0 0.0
        %644 = vmatmul.mubr.f32.gmra.mrb[0].mxu0 %v344
        %v645 = vpop.f32.mrb[0].mxu0
        %v646 = vadd.f32 0.0, %v645
        %v647 = vpop.f32.mrb[0].mxu0
        %v648 = vadd.f32 0.0, %v647
        %649 = vmatprep.mubr.f32.mxu0 0.0
        %650 = vmatmul.mubr.f32.gmra.mrb[0].mxu0 %v347
        %v651 = vpop.f32.mrb[0].mxu0
        %v652 = vadd.f32 0.0, %v651
        %v653 = vpop.f32.mrb[0].mxu0
        %v654 = vadd.f32 0.0, %v653
        %655 = vmatprep.mubr.f32.mxu0 0.0
        %656 = vmatmul.mubr.f32.gmra.mrb[0].mxu0 %v350
        %v657 = vpop.f32.mrb[0].mxu0
        %v658 = vadd.f32 0.0, %v657
        %v659 = vpop.f32.mrb[0].mxu0
        %v660 = vadd.f32 0.0, %v659
        %661 = vmatprep.mubr.f32.mxu0 0.0
        %662 = vmatmul.mubr.f32.gmra.mrb[0].mxu0 %v353
        %v663 = vpop.f32.mrb[0].mxu0
        %v664 = vadd.f32 0.0, %v663
        %v665 = vpop.f32.mrb[0].mxu0
        %v666 = vadd.f32 0.0, %v665
        %667 = vmatprep.mubr.f32.mxu0 0.0
        %668 = vmatmul.mubr.f32.gmra.mrb[0].mxu0 %v356
        %v669 = vpop.f32.mrb[0].mxu0
        %v670 = vadd.f32 0.0, %v669
        %v671 = vpop.f32.mrb[0].mxu0
        %v672 = vadd.f32 0.0, %v671
        %673 = vmatprep.mubr.f32.mxu0 0.0
        %674 = vmatmul.mubr.f32.gmra.mrb[0].mxu0 %v359
        %v675 = vpop.f32.mrb[0].mxu0
        %v676 = vadd.f32 0.0, %v675
        %v677 = vpop.f32.mrb[0].mxu0
        %v678 = vadd.f32 0.0, %v677
        %679 = vmatprep.mubr.f32.mxu0 0.0
        %680 = vmatmul.mubr.f32.gmra.mrb[0].mxu0 %v362
        %v681 = vpop.f32.mrb[0].mxu0
        %v682 = vadd.f32 0.0, %v681
        %v683 = vpop.f32.mrb[0].mxu0
        %v684 = vadd.f32 0.0, %v683
        %685 = vdwg.mxu0
        %v686 = vld [vmem:[%s3] sm:$0xff]
        %v687 = vld [vmem:[%s3 + $0x8] sm:$0xff]
        %v688 = vld [vmem:[%s3 + $0x10] sm:$0xff]
        %v689 = vld [vmem:[%s3 + $0x18] sm:$0xff]
        %v690 = vld [vmem:[%s3 + $0x20] sm:$0xff]
        %v691 = vld [vmem:[%s3 + $0x28] sm:$0xff]
        %v692 = vld [vmem:[%s3 + $0x30] sm:$0xff]
        %v693 = vld [vmem:[%s3 + $0x38] sm:$0xff]
        %v694 = vld [vmem:[%s3 + $0x40] sm:$0xff]
        %v695 = vld [vmem:[%s3 + $0x48] sm:$0xff]
        %v696 = vld [vmem:[%s3 + $0x50] sm:$0xff]
        %v697 = vld [vmem:[%s3 + $0x58] sm:$0xff]
        %v698 = vld [vmem:[%s3 + $0x60] sm:$0xff]
        %v699 = vld [vmem:[%s3 + $0x68] sm:$0xff]
        %v700 = vld [vmem:[%s3 + $0x70] sm:$0xff]
        %v701 = vld [vmem:[%s3 + $0x78] sm:$0xff]
        %v702 = vld [vmem:[%s3 + $0x80] sm:$0xff]
        %v703 = vld [vmem:[%s3 + $0x88] sm:$0xff]
        %v704 = vld [vmem:[%s3 + $0x90] sm:$0xff]
        %v705 = vld [vmem:[%s3 + $0x98] sm:$0xff]
        %v706 = vld [vmem:[%s3 + $0xa0] sm:$0xff]
        %v707 = vld [vmem:[%s3 + $0xa8] sm:$0xff]
        %v708 = vld [vmem:[%s3 + $0xb0] sm:$0xff]
        %v709 = vld [vmem:[%s3 + $0xb8] sm:$0xff]
        %v710 = vld [vmem:[%s3 + $0xc0] sm:$0xff]
        %v711 = vld [vmem:[%s3 + $0xc8] sm:$0xff]
        %v712 = vld [vmem:[%s3 + $0xd0] sm:$0xff]
        %v713 = vld [vmem:[%s3 + $0xd8] sm:$0xff]
        %v714 = vld [vmem:[%s3 + $0xe0] sm:$0xff]
        %v715 = vld [vmem:[%s3 + $0xe8] sm:$0xff]
        %v716 = vld [vmem:[%s3 + $0xf0] sm:$0xff]
        %v717 = vld [vmem:[%s3 + $0xf8] sm:$0xff]
        %v719 = vsel %vm315, %v686, 0
        %v722 = vsel %vm315, %v687, 0
        %v725 = vsel %vm315, %v688, 0
        %v728 = vsel %vm315, %v689, 0
        %v731 = vsel %vm315, %v690, 0
        %v734 = vsel %vm315, %v691, 0
        %v737 = vsel %vm315, %v692, 0
        %v740 = vsel %vm315, %v693, 0
        %v743 = vsel %vm315, %v694, 0
        %v746 = vsel %vm315, %v695, 0
        %v749 = vsel %vm315, %v696, 0
        %v752 = vsel %vm315, %v697, 0
        %v755 = vsel %vm315, %v698, 0
        %v758 = vsel %vm315, %v699, 0
        %v761 = vsel %vm315, %v700, 0
        %v764 = vsel %vm315, %v701, 0
        %v767 = vsel %vm315, %v702, 0
        %v770 = vsel %vm315, %v703, 0
        %v773 = vsel %vm315, %v704, 0
        %v776 = vsel %vm315, %v705, 0
        %v779 = vsel %vm315, %v706, 0
        %v782 = vsel %vm315, %v707, 0
        %v785 = vsel %vm315, %v708, 0
        %v788 = vsel %vm315, %v709, 0
        %v791 = vsel %vm315, %v710, 0
        %v794 = vsel %vm315, %v711, 0
        %v797 = vsel %vm315, %v712, 0
        %v800 = vsel %vm315, %v713, 0
        %v803 = vsel %vm315, %v714, 0
        %v806 = vsel %vm315, %v715, 0
        %v809 = vsel %vm315, %v716, 0
        %v812 = vsel %vm315, %v717, 0
        %814 = vmatprep.subr.mxu0 0.0
        %815 = vmatpush1.msra.mxu0 %v298
        %816 = vmatprep.subr.mxu0 0.0
        %817 = vmatpush1.msra.mxu0 0.0
        %818 = vmatprep.subr.mxu0 0.0
        %819 = vmatpush1.msra.mxu0 0.0
        %820 = vmatprep.subr.mxu0 0.0
        %821 = vmatpush1.msra.mxu0 0.0
        %822 = vmatprep.subr.mxu0 0.0
        %823 = vmatpush1.msra.mxu0 0.0
        %824 = vmatprep.subr.mxu0 0.0
        %825 = vmatpush1.msra.mxu0 0.0
        %826 = vmatprep.subr.mxu0 0.0
        %827 = vmatpush1.msra.mxu0 0.0
        %828 = vmatprep.subr.mxu0 0.0
        %829 = vmatpush1.msra.mxu0 0.0
        %830 = vmatprep.subr.mxu0 0.0
        %831 = vmatpush1.msra.mxu0 0.0
        %832 = vmatprep.subr.mxu0 0.0
        %833 = vmatpush1.msra.mxu0 0.0
        %834 = vmatprep.subr.mxu0 0.0
        %835 = vmatpush1.msra.mxu0 0.0
        %836 = vmatprep.subr.mxu0 0.0
        %837 = vmatpush1.msra.mxu0 0.0
        %838 = vmatprep.subr.mxu0 0.0
        %839 = vmatpush1.msra.mxu0 0.0
        %840 = vmatprep.subr.mxu0 0.0
        %841 = vmatpush1.msra.mxu0 0.0
        %842 = vmatprep.subr.mxu0 0.0
        %843 = vmatpush1.msra.mxu0 0.0
        %844 = vmatprep.subr.mxu0 0.0
        %845 = vmatpush1.msra.mxu0 0.0
        %846 = vmatprep.subr.mxu0 0.0
        %847 = vmatpush1.msra.mxu0 0.0
        %848 = vmatprep.subr.mxu0 0.0
        %849 = vmatpush1.msra.mxu0 0.0
        %850 = vmatprep.subr.mxu0 0.0
        %851 = vmatpush1.msra.mxu0 0.0
        %852 = vmatprep.subr.mxu0 0.0
        %853 = vmatpush1.msra.mxu0 0.0
        %854 = vmatprep.subr.mxu0 0.0
        %855 = vmatpush1.msra.mxu0 0.0
        %856 = vmatprep.subr.mxu0 0.0
        %857 = vmatpush1.msra.mxu0 0.0
        %858 = vmatprep.subr.mxu0 0.0
        %859 = vmatpush1.msra.mxu0 0.0
        %860 = vmatprep.subr.mxu0 0.0
        %861 = vmatpush1.msra.mxu0 0.0
        %862 = vmatprep.subr.mxu0 0.0
        %863 = vmatpush1.msra.mxu0 0.0
        %864 = vmatprep.subr.mxu0 0.0
        %865 = vmatpush1.msra.mxu0 0.0
        %866 = vmatprep.subr.mxu0 0.0
        %867 = vmatpush1.msra.mxu0 0.0
        %868 = vmatprep.subr.mxu0 0.0
        %869 = vmatpush1.msra.mxu0 0.0
        %870 = vmatprep.subr.mxu0 0.0
        %871 = vmatpush1.msra.mxu0 0.0
        %872 = vmatprep.subr.mxu0 0.0
        %873 = vmatpush1.msra.mxu0 0.0
        %874 = vmatprep.subr.mxu0 0.0
        %875 = vmatpush1.msra.mxu0 0.0
        %876 = vmatprep.subr.mxu0 0.0
        %877 = vmatpush1.msra.mxu0 0.0
        %878 = vmatprep.mubr.f32.mxu0 0.0
        %879 = vmatmul.mubr.f32.gmra.mrb[0].mxu0 %v719
        %v880 = vpop.f32.mrb[0].mxu0
        %v881 = vadd.f32 0.0, %v880
        %v882 = vpop.f32.mrb[0].mxu0
        %883 = vmatprep.mubr.f32.mxu0 0.0
        %884 = vmatmul.mubr.f32.gmra.mrb[0].mxu0 %v722
        %v885 = vpop.f32.mrb[0].mxu0
        %v886 = vadd.f32 0.0, %v885
        %v887 = vpop.f32.mrb[0].mxu0
        %888 = vmatprep.mubr.f32.mxu0 0.0
        %889 = vmatmul.mubr.f32.gmra.mrb[0].mxu0 %v725
        %v890 = vpop.f32.mrb[0].mxu0
        %v891 = vadd.f32 0.0, %v890
        %v892 = vpop.f32.mrb[0].mxu0
        %893 = vmatprep.mubr.f32.mxu0 0.0
        %894 = vmatmul.mubr.f32.gmra.mrb[0].mxu0 %v728
        %v895 = vpop.f32.mrb[0].mxu0
        %v896 = vadd.f32 0.0, %v895
        %v897 = vpop.f32.mrb[0].mxu0
        %898 = vmatprep.mubr.f32.mxu0 0.0
        %899 = vmatmul.mubr.f32.gmra.mrb[0].mxu0 %v731
        %v900 = vpop.f32.mrb[0].mxu0
        %v901 = vadd.f32 0.0, %v900
        %v902 = vpop.f32.mrb[0].mxu0
        %903 = vmatprep.mubr.f32.mxu0 0.0
        %904 = vmatmul.mubr.f32.gmra.mrb[0].mxu0 %v734
        %v905 = vpop.f32.mrb[0].mxu0
        %v906 = vadd.f32 0.0, %v905
        %v907 = vpop.f32.mrb[0].mxu0
        %908 = vmatprep.mubr.f32.mxu0 0.0
        %909 = vmatmul.mubr.f32.gmra.mrb[0].mxu0 %v737
        %v910 = vpop.f32.mrb[0].mxu0
        %v911 = vadd.f32 0.0, %v910
        %v912 = vpop.f32.mrb[0].mxu0
        %913 = vmatprep.mubr.f32.mxu0 0.0
        %914 = vmatmul.mubr.f32.gmra.mrb[0].mxu0 %v740
        %v915 = vpop.f32.mrb[0].mxu0
        %v916 = vadd.f32 0.0, %v915
        %v917 = vpop.f32.mrb[0].mxu0
        %918 = vmatprep.mubr.f32.mxu0 0.0
        %919 = vmatmul.mubr.f32.gmra.mrb[0].mxu0 %v743
        %v920 = vpop.f32.mrb[0].mxu0
        %v921 = vadd.f32 0.0, %v920
        %v922 = vpop.f32.mrb[0].mxu0
        %923 = vmatprep.mubr.f32.mxu0 0.0
        %924 = vmatmul.mubr.f32.gmra.mrb[0].mxu0 %v746
        %v925 = vpop.f32.mrb[0].mxu0
        %v926 = vadd.f32 0.0, %v925
        %v927 = vpop.f32.mrb[0].mxu0
        %928 = vmatprep.mubr.f32.mxu0 0.0
        %929 = vmatmul.mubr.f32.gmra.mrb[0].mxu0 %v749
        %v930 = vpop.f32.mrb[0].mxu0
        %v931 = vadd.f32 0.0, %v930
        %v932 = vpop.f32.mrb[0].mxu0
        %933 = vmatprep.mubr.f32.mxu0 0.0
        %934 = vmatmul.mubr.f32.gmra.mrb[0].mxu0 %v752
        %v935 = vpop.f32.mrb[0].mxu0
        %v936 = vadd.f32 0.0, %v935
        %v937 = vpop.f32.mrb[0].mxu0
        %938 = vmatprep.mubr.f32.mxu0 0.0
        %939 = vmatmul.mubr.f32.gmra.mrb[0].mxu0 %v755
        %v940 = vpop.f32.mrb[0].mxu0
        %v941 = vadd.f32 0.0, %v940
        %v942 = vpop.f32.mrb[0].mxu0
        %943 = vmatprep.mubr.f32.mxu0 0.0
        %944 = vmatmul.mubr.f32.gmra.mrb[0].mxu0 %v758
        %v945 = vpop.f32.mrb[0].mxu0
        %v946 = vadd.f32 0.0, %v945
        %v947 = vpop.f32.mrb[0].mxu0
        %948 = vmatprep.mubr.f32.mxu0 0.0
        %949 = vmatmul.mubr.f32.gmra.mrb[0].mxu0 %v761
        %v950 = vpop.f32.mrb[0].mxu0
        %v951 = vadd.f32 0.0, %v950
        %v952 = vpop.f32.mrb[0].mxu0
        %953 = vmatprep.mubr.f32.mxu0 0.0
        %954 = vmatmul.mubr.f32.gmra.mrb[0].mxu0 %v764
        %v955 = vpop.f32.mrb[0].mxu0
        %v956 = vadd.f32 0.0, %v955
        %v957 = vpop.f32.mrb[0].mxu0
        %958 = vmatprep.mubr.f32.mxu0 0.0
        %959 = vmatmul.mubr.f32.gmra.mrb[0].mxu0 %v767
        %v960 = vpop.f32.mrb[0].mxu0
        %v961 = vadd.f32 0.0, %v960
        %v962 = vpop.f32.mrb[0].mxu0
        %963 = vmatprep.mubr.f32.mxu0 0.0
        %964 = vmatmul.mubr.f32.gmra.mrb[0].mxu0 %v770
        %v965 = vpop.f32.mrb[0].mxu0
        %v966 = vadd.f32 0.0, %v965
        %v967 = vpop.f32.mrb[0].mxu0
        %968 = vmatprep.mubr.f32.mxu0 0.0
        %969 = vmatmul.mubr.f32.gmra.mrb[0].mxu0 %v773
        %v970 = vpop.f32.mrb[0].mxu0
        %v971 = vadd.f32 0.0, %v970
        %v972 = vpop.f32.mrb[0].mxu0
        %973 = vmatprep.mubr.f32.mxu0 0.0
        %974 = vmatmul.mubr.f32.gmra.mrb[0].mxu0 %v776
        %v975 = vpop.f32.mrb[0].mxu0
        %v976 = vadd.f32 0.0, %v975
        %v977 = vpop.f32.mrb[0].mxu0
        %978 = vmatprep.mubr.f32.mxu0 0.0
        %979 = vmatmul.mubr.f32.gmra.mrb[0].mxu0 %v779
        %v980 = vpop.f32.mrb[0].mxu0
        %v981 = vadd.f32 0.0, %v980
        %v982 = vpop.f32.mrb[0].mxu0
        %983 = vmatprep.mubr.f32.mxu0 0.0
        %984 = vmatmul.mubr.f32.gmra.mrb[0].mxu0 %v782
        %v985 = vpop.f32.mrb[0].mxu0
        %v986 = vadd.f32 0.0, %v985
        %v987 = vpop.f32.mrb[0].mxu0
        %988 = vmatprep.mubr.f32.mxu0 0.0
        %989 = vmatmul.mubr.f32.gmra.mrb[0].mxu0 %v785
        %v990 = vpop.f32.mrb[0].mxu0
        %v991 = vadd.f32 0.0, %v990
        %v992 = vpop.f32.mrb[0].mxu0
        %993 = vmatprep.mubr.f32.mxu0 0.0
        %994 = vmatmul.mubr.f32.gmra.mrb[0].mxu0 %v788
        %v995 = vpop.f32.mrb[0].mxu0
        %v996 = vadd.f32 0.0, %v995
        %v997 = vpop.f32.mrb[0].mxu0
        %998 = vmatprep.mubr.f32.mxu0 0.0
        %999 = vmatmul.mubr.f32.gmra.mrb[0].mxu0 %v791
        %v1000 = vpop.f32.mrb[0].mxu0
        %v1001 = vadd.f32 0.0, %v1000
        %v1002 = vpop.f32.mrb[0].mxu0
        %1003 = vmatprep.mubr.f32.mxu0 0.0
        %1004 = vmatmul.mubr.f32.gmra.mrb[0].mxu0 %v794
        %v1005 = vpop.f32.mrb[0].mxu0
        %v1006 = vadd.f32 0.0, %v1005
        %v1007 = vpop.f32.mrb[0].mxu0
        %1008 = vmatprep.mubr.f32.mxu0 0.0
        %1009 = vmatmul.mubr.f32.gmra.mrb[0].mxu0 %v797
        %v1010 = vpop.f32.mrb[0].mxu0
        %v1011 = vadd.f32 0.0, %v1010
        %v1012 = vpop.f32.mrb[0].mxu0
        %1013 = vmatprep.mubr.f32.mxu0 0.0
        %1014 = vmatmul.mubr.f32.gmra.mrb[0].mxu0 %v800
        %v1015 = vpop.f32.mrb[0].mxu0
        %v1016 = vadd.f32 0.0, %v1015
        %v1017 = vpop.f32.mrb[0].mxu0
        %1018 = vmatprep.mubr.f32.mxu0 0.0
        %1019 = vmatmul.mubr.f32.gmra.mrb[0].mxu0 %v803
        %v1020 = vpop.f32.mrb[0].mxu0
        %v1021 = vadd.f32 0.0, %v1020
        %v1022 = vpop.f32.mrb[0].mxu0
        %1023 = vmatprep.mubr.f32.mxu0 0.0
        %1024 = vmatmul.mubr.f32.gmra.mrb[0].mxu0 %v806
        %v1025 = vpop.f32.mrb[0].mxu0
        %v1026 = vadd.f32 0.0, %v1025
        %v1027 = vpop.f32.mrb[0].mxu0
        %1028 = vmatprep.mubr.f32.mxu0 0.0
        %1029 = vmatmul.mubr.f32.gmra.mrb[0].mxu0 %v809
        %v1030 = vpop.f32.mrb[0].mxu0
        %v1031 = vadd.f32 0.0, %v1030
        %v1032 = vpop.f32.mrb[0].mxu0
        %1033 = vmatprep.mubr.f32.mxu0 0.0
        %1034 = vmatmul.mubr.f32.gmra.mrb[0].mxu0 %v812
        %v1035 = vpop.f32.mrb[0].mxu0
        %v1036 = vadd.f32 0.0, %v1035
        %v1037 = vpop.f32.mrb[0].mxu0
        %1038 = vdwg.mxu0
        %vm1039 = vcmask 523264
        %v1040 = vsel %vm1039, %v881, -inf
        %1041 = vmax.xlane.f32.xlu0 %v1040
        %v1042 = vpop.xlane.xlu0 %1041
        %v1043 = vsel %vm1039, %v886, -inf
        %1044 = vmax.xlane.f32.xlu0 %v1043
        %v1045 = vpop.xlane.xlu0 %1044
        %v1046 = vsel %vm1039, %v891, -inf
        %1047 = vmax.xlane.f32.xlu0 %v1046
        %v1048 = vpop.xlane.xlu0 %1047
        %v1049 = vsel %vm1039, %v896, -inf
        %1050 = vmax.xlane.f32.xlu0 %v1049
        %v1051 = vpop.xlane.xlu0 %1050
        %v1052 = vsel %vm1039, %v901, -inf
        %1053 = vmax.xlane.f32.xlu0 %v1052
        %v1054 = vpop.xlane.xlu0 %1053
        %v1055 = vsel %vm1039, %v906, -inf
        %1056 = vmax.xlane.f32.xlu0 %v1055
        %v1057 = vpop.xlane.xlu0 %1056
        %v1058 = vsel %vm1039, %v911, -inf
        %1059 = vmax.xlane.f32.xlu0 %v1058
        %v1060 = vpop.xlane.xlu0 %1059
        %v1061 = vsel %vm1039, %v916, -inf
        %1062 = vmax.xlane.f32.xlu0 %v1061
        %v1063 = vpop.xlane.xlu0 %1062
        %v1064 = vsel %vm1039, %v921, -inf
        %1065 = vmax.xlane.f32.xlu0 %v1064
        %v1066 = vpop.xlane.xlu0 %1065
        %v1067 = vsel %vm1039, %v926, -inf
        %1068 = vmax.xlane.f32.xlu0 %v1067
        %v1069 = vpop.xlane.xlu0 %1068
        %v1070 = vsel %vm1039, %v931, -inf
        %1071 = vmax.xlane.f32.xlu0 %v1070
        %v1072 = vpop.xlane.xlu0 %1071
        %v1073 = vsel %vm1039, %v936, -inf
        %1074 = vmax.xlane.f32.xlu0 %v1073
        %v1075 = vpop.xlane.xlu0 %1074
        %v1076 = vsel %vm1039, %v941, -inf
        %1077 = vmax.xlane.f32.xlu0 %v1076
        %v1078 = vpop.xlane.xlu0 %1077
        %v1079 = vsel %vm1039, %v946, -inf
        %1080 = vmax.xlane.f32.xlu0 %v1079
        %v1081 = vpop.xlane.xlu0 %1080
        %v1082 = vsel %vm1039, %v951, -inf
        %1083 = vmax.xlane.f32.xlu0 %v1082
        %v1084 = vpop.xlane.xlu0 %1083
        %v1085 = vsel %vm1039, %v956, -inf
        %1086 = vmax.xlane.f32.xlu0 %v1085
        %v1087 = vpop.xlane.xlu0 %1086
        %v1088 = vsub.f32 %v881, %v1042
        %v1089 = vsub.f32 %v886, %v1045
        %v1090 = vsub.f32 %v891, %v1048
        %v1091 = vsub.f32 %v896, %v1051
        %v1092 = vsub.f32 %v901, %v1054
        %v1093 = vsub.f32 %v906, %v1057
        %v1094 = vsub.f32 %v911, %v1060
        %v1095 = vsub.f32 %v916, %v1063
        %v1096 = vsub.f32 %v921, %v1066
        %v1097 = vsub.f32 %v926, %v1069
        %v1098 = vsub.f32 %v931, %v1072
        %v1099 = vsub.f32 %v936, %v1075
        %v1100 = vsub.f32 %v941, %v1078
        %v1101 = vsub.f32 %v946, %v1081
        %v1102 = vsub.f32 %v951, %v1084
        %v1103 = vsub.f32 %v956, %v1087
        %v1104 = vmul.f32 %v1088, 1.442695
        %v1105 = vpow.pop %v1104
        %v1106 = vmul.f32 %v1089, 1.442695
        %v1107 = vpow.pop %v1106
        %v1108 = vmul.f32 %v1090, 1.442695
        %v1109 = vpow.pop %v1108
        %v1110 = vmul.f32 %v1091, 1.442695
        %v1111 = vpow.pop %v1110
        %v1112 = vmul.f32 %v1092, 1.442695
        %v1113 = vpow.pop %v1112
        %v1114 = vmul.f32 %v1093, 1.442695
        %v1115 = vpow.pop %v1114
        %v1116 = vmul.f32 %v1094, 1.442695
        %v1117 = vpow.pop %v1116
        %v1118 = vmul.f32 %v1095, 1.442695
        %v1119 = vpow.pop %v1118
        %v1120 = vmul.f32 %v1096, 1.442695
        %v1121 = vpow.pop %v1120
        %v1122 = vmul.f32 %v1097, 1.442695
        %v1123 = vpow.pop %v1122
        %v1124 = vmul.f32 %v1098, 1.442695
        %v1125 = vpow.pop %v1124
        %v1126 = vmul.f32 %v1099, 1.442695
        %v1127 = vpow.pop %v1126
        %v1128 = vmul.f32 %v1100, 1.442695
        %v1129 = vpow.pop %v1128
        %v1130 = vmul.f32 %v1101, 1.442695
        %v1131 = vpow.pop %v1130
        %v1132 = vmul.f32 %v1102, 1.442695
        %v1133 = vpow.pop %v1132
        %v1134 = vmul.f32 %v1103, 1.442695
        %v1135 = vpow.pop %v1134
        %v1136 = vsel %vm1039, %v1105, 0.0
        %1137 = vadd.xlane.f32.xlu0 %v1136
        %v1138 = vpop.xlane.xlu0 %1137
        %v1139 = vsel %vm1039, %v1107, 0.0
        %1140 = vadd.xlane.f32.xlu0 %v1139
        %v1141 = vpop.xlane.xlu0 %1140
        %v1142 = vsel %vm1039, %v1109, 0.0
        %1143 = vadd.xlane.f32.xlu0 %v1142
        %v1144 = vpop.xlane.xlu0 %1143
        %v1145 = vsel %vm1039, %v1111, 0.0
        %1146 = vadd.xlane.f32.xlu0 %v1145
        %v1147 = vpop.xlane.xlu0 %1146
        %v1148 = vsel %vm1039, %v1113, 0.0
        %1149 = vadd.xlane.f32.xlu0 %v1148
        %v1150 = vpop.xlane.xlu0 %1149
        %v1151 = vsel %vm1039, %v1115, 0.0
        %1152 = vadd.xlane.f32.xlu0 %v1151
        %v1153 = vpop.xlane.xlu0 %1152
        %v1154 = vsel %vm1039, %v1117, 0.0
        %1155 = vadd.xlane.f32.xlu0 %v1154
        %v1156 = vpop.xlane.xlu0 %1155
        %v1157 = vsel %vm1039, %v1119, 0.0
        %1158 = vadd.xlane.f32.xlu0 %v1157
        %v1159 = vpop.xlane.xlu0 %1158
        %v1160 = vsel %vm1039, %v1121, 0.0
        %1161 = vadd.xlane.f32.xlu0 %v1160
        %v1162 = vpop.xlane.xlu0 %1161
        %v1163 = vsel %vm1039, %v1123, 0.0
        %1164 = vadd.xlane.f32.xlu0 %v1163
        %v1165 = vpop.xlane.xlu0 %1164
        %v1166 = vsel %vm1039, %v1125, 0.0
        %1167 = vadd.xlane.f32.xlu0 %v1166
        %v1168 = vpop.xlane.xlu0 %1167
        %v1169 = vsel %vm1039, %v1127, 0.0
        %1170 = vadd.xlane.f32.xlu0 %v1169
        %v1171 = vpop.xlane.xlu0 %1170
        %v1172 = vsel %vm1039, %v1129, 0.0
        %1173 = vadd.xlane.f32.xlu0 %v1172
        %v1174 = vpop.xlane.xlu0 %1173
        %v1175 = vsel %vm1039, %v1131, 0.0
        %1176 = vadd.xlane.f32.xlu0 %v1175
        %v1177 = vpop.xlane.xlu0 %1176
        %v1178 = vsel %vm1039, %v1133, 0.0
        %1179 = vadd.xlane.f32.xlu0 %v1178
        %v1180 = vpop.xlane.xlu0 %1179
        %v1181 = vsel %vm1039, %v1135, 0.0
        %1182 = vadd.xlane.f32.xlu0 %v1181
        %v1183 = vpop.xlane.xlu0 %1182
        %v1184 = vrcp.pop %v1138
        %v1185 = vmul.f32 %v1105, %v1184
        %v1186 = vrcp.pop %v1141
        %v1187 = vmul.f32 %v1107, %v1186
        %v1188 = vrcp.pop %v1144
        %v1189 = vmul.f32 %v1109, %v1188
        %v1190 = vrcp.pop %v1147
        %v1191 = vmul.f32 %v1111, %v1190
        %v1192 = vrcp.pop %v1150
        %v1193 = vmul.f32 %v1113, %v1192
        %v1194 = vrcp.pop %v1153
        %v1195 = vmul.f32 %v1115, %v1194
        %v1196 = vrcp.pop %v1156
        %v1197 = vmul.f32 %v1117, %v1196
        %v1198 = vrcp.pop %v1159
        %v1199 = vmul.f32 %v1119, %v1198
        %v1200 = vrcp.pop %v1162
        %v1201 = vmul.f32 %v1121, %v1200
        %v1202 = vrcp.pop %v1165
        %v1203 = vmul.f32 %v1123, %v1202
        %v1204 = vrcp.pop %v1168
        %v1205 = vmul.f32 %v1125, %v1204
        %v1206 = vrcp.pop %v1171
        %v1207 = vmul.f32 %v1127, %v1206
        %v1208 = vrcp.pop %v1174
        %v1209 = vmul.f32 %v1129, %v1208
        %v1210 = vrcp.pop %v1177
        %v1211 = vmul.f32 %v1131, %v1210
        %v1212 = vrcp.pop %v1180
        %v1213 = vmul.f32 %v1133, %v1212
        %v1214 = vrcp.pop %v1183
        %v1215 = vmul.f32 %v1135, %v1214
        %v1216 = vmax.f32 %v431, %v437
        %v1217 = vmax.f32 %v1216, %v443
        %v1218 = vmax.f32 %v1217, %v449
        %v1219 = vrot.slane %v1218, 4
        %v1220 = vmax.f32 %v1218, %v1219
        %v1221 = vrot.slane %v1220, 2
        %v1222 = vmax.f32 %v1220, %v1221
        %v1223 = vrot.slane %v1222, 1
        %v1224 = vmax.f32 %v1222, %v1223
        %v1225 = vmax.f32 %v433, %v439
        %v1226 = vmax.f32 %v1225, %v445
        %v1227 = vmax.f32 %v1226, %v451
        %v1228 = vrot.slane %v1227, 4
        %v1229 = vmax.f32 %v1227, %v1228
        %v1230 = vrot.slane %v1229, 2
        %v1231 = vmax.f32 %v1229, %v1230
        %v1232 = vrot.slane %v1231, 1
        %v1233 = vmax.f32 %v1231, %v1232
        %v1234 = vmax.f32 %v592, %v598
        %v1235 = vmax.f32 %v1234, %v604
        %v1236 = vmax.f32 %v1235, %v610
        %v1237 = vrot.slane %v1236, 4
        %v1238 = vmax.f32 %v1236, %v1237
        %v1239 = vrot.slane %v1238, 2
        %v1240 = vmax.f32 %v1238, %v1239
        %v1241 = vrot.slane %v1240, 1
        %v1242 = vmax.f32 %v1240, %v1241
        %v1243 = vmax.f32 %v594, %v600
        %v1244 = vmax.f32 %v1243, %v606
        %v1245 = vmax.f32 %v1244, %v612
        %v1246 = vrot.slane %v1245, 4
        %v1247 = vmax.f32 %v1245, %v1246
        %v1248 = vrot.slane %v1247, 2
        %v1249 = vmax.f32 %v1247, %v1248
        %v1250 = vrot.slane %v1249, 1
        %v1251 = vmax.f32 %v1249, %v1250
        %v1252 = vmax.f32 %v455, %v461
        %v1253 = vmax.f32 %v1252, %v467
        %v1254 = vmax.f32 %v1253, %v473
        %v1255 = vrot.slane %v1254, 4
        %v1256 = vmax.f32 %v1254, %v1255
        %v1257 = vrot.slane %v1256, 2
        %v1258 = vmax.f32 %v1256, %v1257
        %v1259 = vrot.slane %v1258, 1
        %v1260 = vmax.f32 %v1258, %v1259
        %v1261 = vmax.f32 %v457, %v463
        %v1262 = vmax.f32 %v1261, %v469
        %v1263 = vmax.f32 %v1262, %v475
        %v1264 = vrot.slane %v1263, 4
        %v1265 = vmax.f32 %v1263, %v1264
        %v1266 = vrot.slane %v1265, 2
        %v1267 = vmax.f32 %v1265, %v1266
        %v1268 = vrot.slane %v1267, 1
        %v1269 = vmax.f32 %v1267, %v1268
        %v1270 = vmax.f32 %v616, %v622
        %v1271 = vmax.f32 %v1270, %v628
        %v1272 = vmax.f32 %v1271, %v634
        %v1273 = vrot.slane %v1272, 4
        %v1274 = vmax.f32 %v1272, %v1273
        %v1275 = vrot.slane %v1274, 2
        %v1276 = vmax.f32 %v1274, %v1275
        %v1277 = vrot.slane %v1276, 1
        %v1278 = vmax.f32 %v1276, %v1277
        %v1279 = vmax.f32 %v618, %v624
        %v1280 = vmax.f32 %v1279, %v630
        %v1281 = vmax.f32 %v1280, %v636
        %v1282 = vrot.slane %v1281, 4
        %v1283 = vmax.f32 %v1281, %v1282
        %v1284 = vrot.slane %v1283, 2
        %v1285 = vmax.f32 %v1283, %v1284
        %v1286 = vrot.slane %v1285, 1
        %v1287 = vmax.f32 %v1285, %v1286
        %v1288 = vmax.f32 %v479, %v485
        %v1289 = vmax.f32 %v1288, %v491
        %v1290 = vmax.f32 %v1289, %v497
        %v1291 = vrot.slane %v1290, 4
        %v1292 = vmax.f32 %v1290, %v1291
        %v1293 = vrot.slane %v1292, 2
        %v1294 = vmax.f32 %v1292, %v1293
        %v1295 = vrot.slane %v1294, 1
        %v1296 = vmax.f32 %v1294, %v1295
        %v1297 = vmax.f32 %v481, %v487
        %v1298 = vmax.f32 %v1297, %v493
        %v1299 = vmax.f32 %v1298, %v499
        %v1300 = vrot.slane %v1299, 4
        %v1301 = vmax.f32 %v1299, %v1300
        %v1302 = vrot.slane %v1301, 2
        %v1303 = vmax.f32 %v1301, %v1302
        %v1304 = vrot.slane %v1303, 1
        %v1305 = vmax.f32 %v1303, %v1304
        %v1306 = vmax.f32 %v640, %v646
        %v1307 = vmax.f32 %v1306, %v652
        %v1308 = vmax.f32 %v1307, %v658
        %v1309 = vrot.slane %v1308, 4
        %v1310 = vmax.f32 %v1308, %v1309
        %v1311 = vrot.slane %v1310, 2
        %v1312 = vmax.f32 %v1310, %v1311
        %v1313 = vrot.slane %v1312, 1
        %v1314 = vmax.f32 %v1312, %v1313
        %v1315 = vmax.f32 %v642, %v648
        %v1316 = vmax.f32 %v1315, %v654
        %v1317 = vmax.f32 %v1316, %v660
        %v1318 = vrot.slane %v1317, 4
        %v1319 = vmax.f32 %v1317, %v1318
        %v1320 = vrot.slane %v1319, 2
        %v1321 = vmax.f32 %v1319, %v1320
        %v1322 = vrot.slane %v1321, 1
        %v1323 = vmax.f32 %v1321, %v1322
        %v1324 = vmax.f32 %v503, %v509
        %v1325 = vmax.f32 %v1324, %v515
        %v1326 = vmax.f32 %v1325, %v521
        %v1327 = vrot.slane %v1326, 4
        %v1328 = vmax.f32 %v1326, %v1327
        %v1329 = vrot.slane %v1328, 2
        %v1330 = vmax.f32 %v1328, %v1329
        %v1331 = vrot.slane %v1330, 1
        %v1332 = vmax.f32 %v1330, %v1331
        %v1333 = vmax.f32 %v505, %v511
        %v1334 = vmax.f32 %v1333, %v517
        %v1335 = vmax.f32 %v1334, %v523
        %v1336 = vrot.slane %v1335, 4
        %v1337 = vmax.f32 %v1335, %v1336
        %v1338 = vrot.slane %v1337, 2
        %v1339 = vmax.f32 %v1337, %v1338
        %v1340 = vrot.slane %v1339, 1
        %v1341 = vmax.f32 %v1339, %v1340
        %v1342 = vmax.f32 %v664, %v670
        %v1343 = vmax.f32 %v1342, %v676
        %v1344 = vmax.f32 %v1343, %v682
        %v1345 = vrot.slane %v1344, 4
        %v1346 = vmax.f32 %v1344, %v1345
        %v1347 = vrot.slane %v1346, 2
        %v1348 = vmax.f32 %v1346, %v1347
        %v1349 = vrot.slane %v1348, 1
        %v1350 = vmax.f32 %v1348, %v1349
        %v1351 = vmax.f32 %v666, %v672
        %v1352 = vmax.f32 %v1351, %v678
        %v1353 = vmax.f32 %v1352, %v684
        %v1354 = vrot.slane %v1353, 4
        %v1355 = vmax.f32 %v1353, %v1354
        %v1356 = vrot.slane %v1355, 2
        %v1357 = vmax.f32 %v1355, %v1356
        %v1358 = vrot.slane %v1357, 1
        %v1359 = vmax.f32 %v1357, %v1358
        %v1360 = vsub.f32 %v431, %v1224
        %v1361 = vsub.f32 %v433, %v1233
        %v1362 = vsub.f32 %v592, %v1242
        %v1363 = vsub.f32 %v594, %v1251
        %v1364 = vsub.f32 %v437, %v1224
        %v1365 = vsub.f32 %v439, %v1233
        %v1366 = vsub.f32 %v598, %v1242
        %v1367 = vsub.f32 %v600, %v1251
        %v1368 = vsub.f32 %v443, %v1224
        %v1369 = vsub.f32 %v445, %v1233
        %v1370 = vsub.f32 %v604, %v1242
        %v1371 = vsub.f32 %v606, %v1251
        %v1372 = vsub.f32 %v449, %v1224
        %v1373 = vsub.f32 %v451, %v1233
        %v1374 = vsub.f32 %v610, %v1242
        %v1375 = vsub.f32 %v612, %v1251
        %v1376 = vsub.f32 %v455, %v1260
        %v1377 = vsub.f32 %v457, %v1269
        %v1378 = vsub.f32 %v616, %v1278
        %v1379 = vsub.f32 %v618, %v1287
        %v1380 = vsub.f32 %v461, %v1260
        %v1381 = vsub.f32 %v463, %v1269
        %v1382 = vsub.f32 %v622, %v1278
        %v1383 = vsub.f32 %v624, %v1287
        %v1384 = vsub.f32 %v467, %v1260
        %v1385 = vsub.f32 %v469, %v1269
        %v1386 = vsub.f32 %v628, %v1278
        %v1387 = vsub.f32 %v630, %v1287
        %v1388 = vsub.f32 %v473, %v1260
        %v1389 = vsub.f32 %v475, %v1269
        %v1390 = vsub.f32 %v634, %v1278
        %v1391 = vsub.f32 %v636, %v1287
        %v1392 = vsub.f32 %v479, %v1296
        %v1393 = vsub.f32 %v481, %v1305
        %v1394 = vsub.f32 %v640, %v1314
        %v1395 = vsub.f32 %v642, %v1323
        %v1396 = vsub.f32 %v485, %v1296
        %v1397 = vsub.f32 %v487, %v1305
        %v1398 = vsub.f32 %v646, %v1314
        %v1399 = vsub.f32 %v648, %v1323
        %v1400 = vsub.f32 %v491, %v1296
        %v1401 = vsub.f32 %v493, %v1305
        %v1402 = vsub.f32 %v652, %v1314
        %v1403 = vsub.f32 %v654, %v1323
        %v1404 = vsub.f32 %v497, %v1296
        %v1405 = vsub.f32 %v499, %v1305
        %v1406 = vsub.f32 %v658, %v1314
        %v1407 = vsub.f32 %v660, %v1323
        %v1408 = vsub.f32 %v503, %v1332
        %v1409 = vsub.f32 %v505, %v1341
        %v1410 = vsub.f32 %v664, %v1350
        %v1411 = vsub.f32 %v666, %v1359
        %v1412 = vsub.f32 %v509, %v1332
        %v1413 = vsub.f32 %v511, %v1341
        %v1414 = vsub.f32 %v670, %v1350
        %v1415 = vsub.f32 %v672, %v1359
        %v1416 = vsub.f32 %v515, %v1332
        %v1417 = vsub.f32 %v517, %v1341
        %v1418 = vsub.f32 %v676, %v1350
        %v1419 = vsub.f32 %v678, %v1359
        %v1420 = vsub.f32 %v521, %v1332
        %v1421 = vsub.f32 %v523, %v1341
        %v1422 = vsub.f32 %v682, %v1350
        %v1423 = vsub.f32 %v684, %v1359
        %v1424 = vmul.f32 %v1360, 1.442695
        %v1425 = vpow.pop %v1424
        %v1426 = vmul.f32 %v1361, 1.442695
        %v1427 = vpow.pop %v1426
        %v1428 = vmul.f32 %v1362, 1.442695
        %v1429 = vpow.pop %v1428
        %v1430 = vmul.f32 %v1363, 1.442695
        %v1431 = vpow.pop %v1430
        %v1432 = vmul.f32 %v1364, 1.442695
        %v1433 = vpow.pop %v1432
        %v1434 = vmul.f32 %v1365, 1.442695
        %v1435 = vpow.pop %v1434
        %v1436 = vmul.f32 %v1366, 1.442695
        %v1437 = vpow.pop %v1436
        %v1438 = vmul.f32 %v1367, 1.442695
        %v1439 = vpow.pop %v1438
        %v1440 = vmul.f32 %v1368, 1.442695
        %v1441 = vpow.pop %v1440
        %v1442 = vmul.f32 %v1369, 1.442695
        %v1443 = vpow.pop %v1442
        %v1444 = vmul.f32 %v1370, 1.442695
        %v1445 = vpow.pop %v1444
        %v1446 = vmul.f32 %v1371, 1.442695
        %v1447 = vpow.pop %v1446
        %v1448 = vmul.f32 %v1372, 1.442695
        %v1449 = vpow.pop %v1448
        %v1450 = vmul.f32 %v1373, 1.442695
        %v1451 = vpow.pop %v1450
        %v1452 = vmul.f32 %v1374, 1.442695
        %v1453 = vpow.pop %v1452
        %v1454 = vmul.f32 %v1375, 1.442695
        %v1455 = vpow.pop %v1454
        %v1456 = vmul.f32 %v1376, 1.442695
        %v1457 = vpow.pop %v1456
        %v1458 = vmul.f32 %v1377, 1.442695
        %v1459 = vpow.pop %v1458
        %v1460 = vmul.f32 %v1378, 1.442695
        %v1461 = vpow.pop %v1460
        %v1462 = vmul.f32 %v1379, 1.442695
        %v1463 = vpow.pop %v1462
        %v1464 = vmul.f32 %v1380, 1.442695
        %v1465 = vpow.pop %v1464
        %v1466 = vmul.f32 %v1381, 1.442695
        %v1467 = vpow.pop %v1466
        %v1468 = vmul.f32 %v1382, 1.442695
        %v1469 = vpow.pop %v1468
        %v1470 = vmul.f32 %v1383, 1.442695
        %v1471 = vpow.pop %v1470
        %v1472 = vmul.f32 %v1384, 1.442695
        %v1473 = vpow.pop %v1472
        %v1474 = vmul.f32 %v1385, 1.442695
        %v1475 = vpow.pop %v1474
        %v1476 = vmul.f32 %v1386, 1.442695
        %v1477 = vpow.pop %v1476
        %v1478 = vmul.f32 %v1387, 1.442695
        %v1479 = vpow.pop %v1478
        %v1480 = vmul.f32 %v1388, 1.442695
        %v1481 = vpow.pop %v1480
        %v1482 = vmul.f32 %v1389, 1.442695
        %v1483 = vpow.pop %v1482
        %v1484 = vmul.f32 %v1390, 1.442695
        %v1485 = vpow.pop %v1484
        %v1486 = vmul.f32 %v1391, 1.442695
        %v1487 = vpow.pop %v1486
        %v1488 = vmul.f32 %v1392, 1.442695
        %v1489 = vpow.pop %v1488
        %v1490 = vmul.f32 %v1393, 1.442695
        %v1491 = vpow.pop %v1490
        %v1492 = vmul.f32 %v1394, 1.442695
        %v1493 = vpow.pop %v1492
        %v1494 = vmul.f32 %v1395, 1.442695
        %v1495 = vpow.pop %v1494
        %v1496 = vmul.f32 %v1396, 1.442695
        %v1497 = vpow.pop %v1496
        %v1498 = vmul.f32 %v1397, 1.442695
        %v1499 = vpow.pop %v1498
        %v1500 = vmul.f32 %v1398, 1.442695
        %v1501 = vpow.pop %v1500
        %v1502 = vmul.f32 %v1399, 1.442695
        %v1503 = vpow.pop %v1502
        %v1504 = vmul.f32 %v1400, 1.442695
        %v1505 = vpow.pop %v1504
        %v1506 = vmul.f32 %v1401, 1.442695
        %v1507 = vpow.pop %v1506
        %v1508 = vmul.f32 %v1402, 1.442695
        %v1509 = vpow.pop %v1508
        %v1510 = vmul.f32 %v1403, 1.442695
        %v1511 = vpow.pop %v1510
        %v1512 = vmul.f32 %v1404, 1.442695
        %v1513 = vpow.pop %v1512
        %v1514 = vmul.f32 %v1405, 1.442695
        %v1515 = vpow.pop %v1514
        %v1516 = vmul.f32 %v1406, 1.442695
        %v1517 = vpow.pop %v1516
        %v1518 = vmul.f32 %v1407, 1.442695
        %v1519 = vpow.pop %v1518
        %v1520 = vmul.f32 %v1408, 1.442695
        %v1521 = vpow.pop %v1520
        %v1522 = vmul.f32 %v1409, 1.442695
        %v1523 = vpow.pop %v1522
        %v1524 = vmul.f32 %v1410, 1.442695
        %v1525 = vpow.pop %v1524
        %v1526 = vmul.f32 %v1411, 1.442695
        %v1527 = vpow.pop %v1526
        %v1528 = vmul.f32 %v1412, 1.442695
        %v1529 = vpow.pop %v1528
        %v1530 = vmul.f32 %v1413, 1.442695
        %v1531 = vpow.pop %v1530
        %v1532 = vmul.f32 %v1414, 1.442695
        %v1533 = vpow.pop %v1532
        %v1534 = vmul.f32 %v1415, 1.442695
        %v1535 = vpow.pop %v1534
        %v1536 = vmul.f32 %v1416, 1.442695
        %v1537 = vpow.pop %v1536
        %v1538 = vmul.f32 %v1417, 1.442695
        %v1539 = vpow.pop %v1538
        %v1540 = vmul.f32 %v1418, 1.442695
        %v1541 = vpow.pop %v1540
        %v1542 = vmul.f32 %v1419, 1.442695
        %v1543 = vpow.pop %v1542
        %v1544 = vmul.f32 %v1420, 1.442695
        %v1545 = vpow.pop %v1544
        %v1546 = vmul.f32 %v1421, 1.442695
        %v1547 = vpow.pop %v1546
        %v1548 = vmul.f32 %v1422, 1.442695
        %v1549 = vpow.pop %v1548
        %v1550 = vmul.f32 %v1423, 1.442695
        %v1551 = vpow.pop %v1550
        %v1552 = vadd.f32 %v1425, %v1433
        %v1553 = vadd.f32 %v1552, %v1441
        %v1554 = vadd.f32 %v1553, %v1449
        %v1555 = vrot.slane %v1554, 4
        %v1556 = vadd.f32 %v1554, %v1555
        %v1557 = vrot.slane %v1556, 2
        %v1558 = vadd.f32 %v1556, %v1557
        %v1559 = vrot.slane %v1558, 1
        %v1560 = vadd.f32 %v1558, %v1559
        %v1561 = vadd.f32 %v1427, %v1435
        %v1562 = vadd.f32 %v1561, %v1443
        %v1563 = vadd.f32 %v1562, %v1451
        %v1564 = vrot.slane %v1563, 4
        %v1565 = vadd.f32 %v1563, %v1564
        %v1566 = vrot.slane %v1565, 2
        %v1567 = vadd.f32 %v1565, %v1566
        %v1568 = vrot.slane %v1567, 1
        %v1569 = vadd.f32 %v1567, %v1568
        %v1570 = vadd.f32 %v1429, %v1437
        %v1571 = vadd.f32 %v1570, %v1445
        %v1572 = vadd.f32 %v1571, %v1453
        %v1573 = vrot.slane %v1572, 4
        %v1574 = vadd.f32 %v1572, %v1573
        %v1575 = vrot.slane %v1574, 2
        %v1576 = vadd.f32 %v1574, %v1575
        %v1577 = vrot.slane %v1576, 1
        %v1578 = vadd.f32 %v1576, %v1577
        %v1579 = vadd.f32 %v1431, %v1439
        %v1580 = vadd.f32 %v1579, %v1447
        %v1581 = vadd.f32 %v1580, %v1455
        %v1582 = vrot.slane %v1581, 4
        %v1583 = vadd.f32 %v1581, %v1582
        %v1584 = vrot.slane %v1583, 2
        %v1585 = vadd.f32 %v1583, %v1584
        %v1586 = vrot.slane %v1585, 1
        %v1587 = vadd.f32 %v1585, %v1586
        %v1588 = vadd.f32 %v1457, %v1465
        %v1589 = vadd.f32 %v1588, %v1473
        %v1590 = vadd.f32 %v1589, %v1481
        %v1591 = vrot.slane %v1590, 4
        %v1592 = vadd.f32 %v1590, %v1591
        %v1593 = vrot.slane %v1592, 2
        %v1594 = vadd.f32 %v1592, %v1593
        %v1595 = vrot.slane %v1594, 1
        %v1596 = vadd.f32 %v1594, %v1595
        %v1597 = vadd.f32 %v1459, %v1467
        %v1598 = vadd.f32 %v1597, %v1475
        %v1599 = vadd.f32 %v1598, %v1483
        %v1600 = vrot.slane %v1599, 4
        %v1601 = vadd.f32 %v1599, %v1600
        %v1602 = vrot.slane %v1601, 2
        %v1603 = vadd.f32 %v1601, %v1602
        %v1604 = vrot.slane %v1603, 1
        %v1605 = vadd.f32 %v1603, %v1604
        %v1606 = vadd.f32 %v1461, %v1469
        %v1607 = vadd.f32 %v1606, %v1477
        %v1608 = vadd.f32 %v1607, %v1485
        %v1609 = vrot.slane %v1608, 4
        %v1610 = vadd.f32 %v1608, %v1609
        %v1611 = vrot.slane %v1610, 2
        %v1612 = vadd.f32 %v1610, %v1611
        %v1613 = vrot.slane %v1612, 1
        %v1614 = vadd.f32 %v1612, %v1613
        %v1615 = vadd.f32 %v1463, %v1471
        %v1616 = vadd.f32 %v1615, %v1479
        %v1617 = vadd.f32 %v1616, %v1487
        %v1618 = vrot.slane %v1617, 4
        %v1619 = vadd.f32 %v1617, %v1618
        %v1620 = vrot.slane %v1619, 2
        %v1621 = vadd.f32 %v1619, %v1620
        %v1622 = vrot.slane %v1621, 1
        %v1623 = vadd.f32 %v1621, %v1622
        %v1624 = vadd.f32 %v1489, %v1497
        %v1625 = vadd.f32 %v1624, %v1505
        %v1626 = vadd.f32 %v1625, %v1513
        %v1627 = vrot.slane %v1626, 4
        %v1628 = vadd.f32 %v1626, %v1627
        %v1629 = vrot.slane %v1628, 2
        %v1630 = vadd.f32 %v1628, %v1629
        %v1631 = vrot.slane %v1630, 1
        %v1632 = vadd.f32 %v1630, %v1631
        %v1633 = vadd.f32 %v1491, %v1499
        %v1634 = vadd.f32 %v1633, %v1507
        %v1635 = vadd.f32 %v1634, %v1515
        %v1636 = vrot.slane %v1635, 4
        %v1637 = vadd.f32 %v1635, %v1636
        %v1638 = vrot.slane %v1637, 2
        %v1639 = vadd.f32 %v1637, %v1638
        %v1640 = vrot.slane %v1639, 1
        %v1641 = vadd.f32 %v1639, %v1640
        %v1642 = vadd.f32 %v1493, %v1501
        %v1643 = vadd.f32 %v1642, %v1509
        %v1644 = vadd.f32 %v1643, %v1517
        %v1645 = vrot.slane %v1644, 4
        %v1646 = vadd.f32 %v1644, %v1645
        %v1647 = vrot.slane %v1646, 2
        %v1648 = vadd.f32 %v1646, %v1647
        %v1649 = vrot.slane %v1648, 1
        %v1650 = vadd.f32 %v1648, %v1649
        %v1651 = vadd.f32 %v1495, %v1503
        %v1652 = vadd.f32 %v1651, %v1511
        %v1653 = vadd.f32 %v1652, %v1519
        %v1654 = vrot.slane %v1653, 4
        %v1655 = vadd.f32 %v1653, %v1654
        %v1656 = vrot.slane %v1655, 2
        %v1657 = vadd.f32 %v1655, %v1656
        %v1658 = vrot.slane %v1657, 1
        %v1659 = vadd.f32 %v1657, %v1658
        %v1660 = vadd.f32 %v1521, %v1529
        %v1661 = vadd.f32 %v1660, %v1537
        %v1662 = vadd.f32 %v1661, %v1545
        %v1663 = vrot.slane %v1662, 4
        %v1664 = vadd.f32 %v1662, %v1663
        %v1665 = vrot.slane %v1664, 2
        %v1666 = vadd.f32 %v1664, %v1665
        %v1667 = vrot.slane %v1666, 1
        %v1668 = vadd.f32 %v1666, %v1667
        %v1669 = vadd.f32 %v1523, %v1531
        %v1670 = vadd.f32 %v1669, %v1539
        %v1671 = vadd.f32 %v1670, %v1547
        %v1672 = vrot.slane %v1671, 4
        %v1673 = vadd.f32 %v1671, %v1672
        %v1674 = vrot.slane %v1673, 2
        %v1675 = vadd.f32 %v1673, %v1674
        %v1676 = vrot.slane %v1675, 1
        %v1677 = vadd.f32 %v1675, %v1676
        %v1678 = vadd.f32 %v1525, %v1533
        %v1679 = vadd.f32 %v1678, %v1541
        %v1680 = vadd.f32 %v1679, %v1549
        %v1681 = vrot.slane %v1680, 4
        %v1682 = vadd.f32 %v1680, %v1681
        %v1683 = vrot.slane %v1682, 2
        %v1684 = vadd.f32 %v1682, %v1683
        %v1685 = vrot.slane %v1684, 1
        %v1686 = vadd.f32 %v1684, %v1685
        %v1687 = vadd.f32 %v1527, %v1535
        %v1688 = vadd.f32 %v1687, %v1543
        %v1689 = vadd.f32 %v1688, %v1551
        %v1690 = vrot.slane %v1689, 4
        %v1691 = vadd.f32 %v1689, %v1690
        %v1692 = vrot.slane %v1691, 2
        %v1693 = vadd.f32 %v1691, %v1692
        %v1694 = vrot.slane %v1693, 1
        %v1695 = vadd.f32 %v1693, %v1694
        %v1696 = vrcp.pop %v1560
        %v1697 = vmul.f32 0.0027621358, %v1696
        %v1698 = vrcp.pop %v1569
        %v1699 = vmul.f32 0.0027621358, %v1698
        %v1700 = vrcp.pop %v1578
        %v1701 = vmul.f32 0.0027621358, %v1700
        %v1702 = vrcp.pop %v1587
        %v1703 = vmul.f32 0.0027621358, %v1702
        %v1704 = vrcp.pop %v1596
        %v1705 = vmul.f32 0.0027621358, %v1704
        %v1706 = vrcp.pop %v1605
        %v1707 = vmul.f32 0.0027621358, %v1706
        %v1708 = vrcp.pop %v1614
        %v1709 = vmul.f32 0.0027621358, %v1708
        %v1710 = vrcp.pop %v1623
        %v1711 = vmul.f32 0.0027621358, %v1710
        %v1712 = vrcp.pop %v1632
        %v1713 = vmul.f32 0.0027621358, %v1712
        %v1714 = vrcp.pop %v1641
        %v1715 = vmul.f32 0.0027621358, %v1714
        %v1716 = vrcp.pop %v1650
        %v1717 = vmul.f32 0.0027621358, %v1716
        %v1718 = vrcp.pop %v1659
        %v1719 = vmul.f32 0.0027621358, %v1718
        %v1720 = vrcp.pop %v1668
        %v1721 = vmul.f32 0.0027621358, %v1720
        %v1722 = vrcp.pop %v1677
        %v1723 = vmul.f32 0.0027621358, %v1722
        %v1724 = vrcp.pop %v1686
        %v1725 = vmul.f32 0.0027621358, %v1724
        %v1726 = vrcp.pop %v1695
        %v1727 = vmul.f32 0.0027621358, %v1726
        %v1728 = vmul.f32 %v1425, %v1697
        %v1729 = vmul.f32 %v1427, %v1699
        %v1730 = vmul.f32 %v1429, %v1701
        %v1731 = vmul.f32 %v1431, %v1703
        %v1732 = vmul.f32 %v1433, %v1697
        %v1733 = vmul.f32 %v1435, %v1699
        %v1734 = vmul.f32 %v1437, %v1701
        %v1735 = vmul.f32 %v1439, %v1703
        %v1736 = vmul.f32 %v1441, %v1697
        %v1737 = vmul.f32 %v1443, %v1699
        %v1738 = vmul.f32 %v1445, %v1701
        %v1739 = vmul.f32 %v1447, %v1703
        %v1740 = vmul.f32 %v1449, %v1697
        %v1741 = vmul.f32 %v1451, %v1699
        %v1742 = vmul.f32 %v1453, %v1701
        %v1743 = vmul.f32 %v1455, %v1703
        %v1744 = vmul.f32 %v1457, %v1705
        %v1745 = vmul.f32 %v1459, %v1707
        %v1746 = vmul.f32 %v1461, %v1709
        %v1747 = vmul.f32 %v1463, %v1711
        %v1748 = vmul.f32 %v1465, %v1705
        %v1749 = vmul.f32 %v1467, %v1707
        %v1750 = vmul.f32 %v1469, %v1709
        %v1751 = vmul.f32 %v1471, %v1711
        %v1752 = vmul.f32 %v1473, %v1705
        %v1753 = vmul.f32 %v1475, %v1707
        %v1754 = vmul.f32 %v1477, %v1709
        %v1755 = vmul.f32 %v1479, %v1711
        %v1756 = vmul.f32 %v1481, %v1705
        %v1757 = vmul.f32 %v1483, %v1707
        %v1758 = vmul.f32 %v1485, %v1709
        %v1759 = vmul.f32 %v1487, %v1711
        %v1760 = vmul.f32 %v1489, %v1713
        %v1761 = vmul.f32 %v1491, %v1715
        %v1762 = vmul.f32 %v1493, %v1717
        %v1763 = vmul.f32 %v1495, %v1719
        %v1764 = vmul.f32 %v1497, %v1713
        %v1765 = vmul.f32 %v1499, %v1715
        %v1766 = vmul.f32 %v1501, %v1717
        %v1767 = vmul.f32 %v1503, %v1719
        %v1768 = vmul.f32 %v1505, %v1713
        %v1769 = vmul.f32 %v1507, %v1715
        %v1770 = vmul.f32 %v1509, %v1717
        %v1771 = vmul.f32 %v1511, %v1719
        %v1772 = vmul.f32 %v1513, %v1713
        %v1773 = vmul.f32 %v1515, %v1715
        %v1774 = vmul.f32 %v1517, %v1717
        %v1775 = vmul.f32 %v1519, %v1719
        %v1776 = vmul.f32 %v1521, %v1721
        %v1777 = vmul.f32 %v1523, %v1723
        %v1778 = vmul.f32 %v1525, %v1725
        %v1779 = vmul.f32 %v1527, %v1727
        %v1780 = vmul.f32 %v1529, %v1721
        %v1781 = vmul.f32 %v1531, %v1723
        %v1782 = vmul.f32 %v1533, %v1725
        %v1783 = vmul.f32 %v1535, %v1727
        %v1784 = vmul.f32 %v1537, %v1721
        %v1785 = vmul.f32 %v1539, %v1723
        %v1786 = vmul.f32 %v1541, %v1725
        %v1787 = vmul.f32 %v1543, %v1727
        %v1788 = vmul.f32 %v1545, %v1721
        %v1789 = vmul.f32 %v1547, %v1723
        %v1790 = vmul.f32 %v1549, %v1725
        %v1791 = vmul.f32 %v1551, %v1727
        %v1793 = vsel %vm1039, %v961, 0
        %v1796 = vsel %vm1039, %v966, 0
        %v1799 = vsel %vm1039, %v971, 0
        %v1802 = vsel %vm1039, %v976, 0
        %v1805 = vsel %vm1039, %v1185, 0
        %v1808 = vsel %vm1039, %v1187, 0
        %v1811 = vsel %vm1039, %v1189, 0
        %v1814 = vsel %vm1039, %v1191, 0
        %1816 = vmatprep.subr.mxu0 0.0
        %1817 = vmatpush1.xpose.msra.mxu0 %v1805
        %1818 = vmatprep.subr.mxu0 0.0
        %1819 = vmatpush1.xpose.msra.mxu0 %v1808
        %1820 = vmatprep.subr.mxu0 0.0
        %1821 = vmatpush1.xpose.msra.mxu0 %v1811
        %1822 = vmatprep.subr.mxu0 0.0
        %1823 = vmatpush1.xpose.msra.mxu0 %v1814
        %1824 = vmatprep.subr.mxu0 0.0
        %1825 = vmatpush1.xpose.msra.mxu0 0.0
        %1826 = vmatprep.subr.mxu0 0.0
        %1827 = vmatpush1.xpose.msra.mxu0 0.0
        %1828 = vmatprep.subr.mxu0 0.0
        %1829 = vmatpush1.xpose.msra.mxu0 0.0
        %1830 = vmatprep.subr.mxu0 0.0
        %1831 = vmatpush1.xpose.msra.mxu0 0.0
        %1832 = vmatprep.subr.mxu0 0.0
        %1833 = vmatpush1.xpose.msra.mxu0 0.0
        %1834 = vmatprep.subr.mxu0 0.0
        %1835 = vmatpush1.xpose.msra.mxu0 0.0
        %1836 = vmatprep.subr.mxu0 0.0
        %1837 = vmatpush1.xpose.msra.mxu0 0.0
        %1838 = vmatprep.subr.mxu0 0.0
        %1839 = vmatpush1.xpose.msra.mxu0 0.0
        %1840 = vmatprep.subr.mxu0 0.0
        %1841 = vmatpush1.xpose.msra.mxu0 0.0
        %1842 = vmatprep.subr.mxu0 0.0
        %1843 = vmatpush1.xpose.msra.mxu0 0.0
        %1844 = vmatprep.subr.mxu0 0.0
        %1845 = vmatpush1.xpose.msra.mxu0 0.0
        %1846 = vmatprep.subr.mxu0 0.0
        %1847 = vmatpush1.xpose.msra.mxu0 0.0
        %1848 = vmatprep.subr.mxu0 0.0
        %1849 = vmatpush1.xpose.msra.mxu0 0.0
        %1850 = vmatprep.subr.mxu0 0.0
        %1851 = vmatpush1.xpose.msra.mxu0 0.0
        %1852 = vmatprep.subr.mxu0 0.0
        %1853 = vmatpush1.xpose.msra.mxu0 0.0
        %1854 = vmatprep.subr.mxu0 0.0
        %1855 = vmatpush1.xpose.msra.mxu0 0.0
        %1856 = vmatprep.subr.mxu0 0.0
        %1857 = vmatpush1.xpose.msra.mxu0 0.0
        %1858 = vmatprep.subr.mxu0 0.0
        %1859 = vmatpush1.xpose.msra.mxu0 0.0
        %1860 = vmatprep.subr.mxu0 0.0
        %1861 = vmatpush1.xpose.msra.mxu0 0.0
        %1862 = vmatprep.subr.mxu0 0.0
        %1863 = vmatpush1.xpose.msra.mxu0 0.0
        %1864 = vmatprep.subr.mxu0 0.0
        %1865 = vmatpush1.xpose.msra.mxu0 0.0
        %1866 = vmatprep.subr.mxu0 0.0
        %1867 = vmatpush1.xpose.msra.mxu0 0.0
        %1868 = vmatprep.subr.mxu0 0.0
        %1869 = vmatpush1.xpose.msra.mxu0 0.0
        %1870 = vmatprep.subr.mxu0 0.0
        %1871 = vmatpush1.xpose.msra.mxu0 0.0
        %1872 = vmatprep.subr.mxu0 0.0
        %1873 = vmatpush1.xpose.msra.mxu0 0.0
        %1874 = vmatprep.subr.mxu0 0.0
        %1875 = vmatpush1.xpose.msra.mxu0 0.0
        %1876 = vmatprep.subr.mxu0 0.0
        %1877 = vmatpush1.xpose.msra.mxu0 0.0
        %1878 = vmatprep.subr.mxu0 0.0
        %1879 = vmatpush1.xpose.msra.mxu0 0.0
        %1880 = vmatprep.mubr.f32.mxu0 0.0
        %1881 = vmatmul.mubr.f32.gmra.mrb[0].mxu0 %v1793
        %v1882 = vpop.f32.mrb[0].mxu0
        %v1883 = vadd.f32 0.0, %v1882
        %v1884 = vpop.f32.mrb[0].mxu0
        %1885 = vmatprep.mubr.f32.mxu0 0.0
        %1886 = vmatmul.mubr.f32.gmra.mrb[0].mxu0 %v1796
        %v1887 = vpop.f32.mrb[0].mxu0
        %v1888 = vadd.f32 0.0, %v1887
        %v1889 = vpop.f32.mrb[0].mxu0
        %1890 = vmatprep.mubr.f32.mxu0 0.0
        %1891 = vmatmul.mubr.f32.gmra.mrb[0].mxu0 %v1799
        %v1892 = vpop.f32.mrb[0].mxu0
        %v1893 = vadd.f32 0.0, %v1892
        %v1894 = vpop.f32.mrb[0].mxu0
        %1895 = vmatprep.mubr.f32.mxu0 0.0
        %1896 = vmatmul.mubr.f32.gmra.mrb[0].mxu0 %v1802
        %v1897 = vpop.f32.mrb[0].mxu0
        %v1898 = vadd.f32 0.0, %v1897
        %v1899 = vpop.f32.mrb[0].mxu0
        %1900 = vdwg.mxu0
        %v1902 = vsel %vm1039, %v981, 0
        %v1905 = vsel %vm1039, %v986, 0
        %v1908 = vsel %vm1039, %v991, 0
        %v1911 = vsel %vm1039, %v996, 0
        %v1914 = vsel %vm1039, %v1193, 0
        %v1917 = vsel %vm1039, %v1195, 0
        %v1920 = vsel %vm1039, %v1197, 0
        %v1923 = vsel %vm1039, %v1199, 0
        %1925 = vmatprep.subr.mxu0 0.0
        %1926 = vmatpush1.xpose.msra.mxu0 %v1914
        %1927 = vmatprep.subr.mxu0 0.0
        %1928 = vmatpush1.xpose.msra.mxu0 %v1917
        %1929 = vmatprep.subr.mxu0 0.0
        %1930 = vmatpush1.xpose.msra.mxu0 %v1920
        %1931 = vmatprep.subr.mxu0 0.0
        %1932 = vmatpush1.xpose.msra.mxu0 %v1923
        %1933 = vmatprep.subr.mxu0 0.0
        %1934 = vmatpush1.xpose.msra.mxu0 0.0
        %1935 = vmatprep.subr.mxu0 0.0
        %1936 = vmatpush1.xpose.msra.mxu0 0.0
        %1937 = vmatprep.subr.mxu0 0.0
        %1938 = vmatpush1.xpose.msra.mxu0 0.0
        %1939 = vmatprep.subr.mxu0 0.0
        %1940 = vmatpush1.xpose.msra.mxu0 0.0
        %1941 = vmatprep.subr.mxu0 0.0
        %1942 = vmatpush1.xpose.msra.mxu0 0.0
        %1943 = vmatprep.subr.mxu0 0.0
        %1944 = vmatpush1.xpose.msra.mxu0 0.0
        %1945 = vmatprep.subr.mxu0 0.0
        %1946 = vmatpush1.xpose.msra.mxu0 0.0
        %1947 = vmatprep.subr.mxu0 0.0
        %1948 = vmatpush1.xpose.msra.mxu0 0.0
        %1949 = vmatprep.subr.mxu0 0.0
        %1950 = vmatpush1.xpose.msra.mxu0 0.0
        %1951 = vmatprep.subr.mxu0 0.0
        %1952 = vmatpush1.xpose.msra.mxu0 0.0
        %1953 = vmatprep.subr.mxu0 0.0
        %1954 = vmatpush1.xpose.msra.mxu0 0.0
        %1955 = vmatprep.subr.mxu0 0.0
        %1956 = vmatpush1.xpose.msra.mxu0 0.0
        %1957 = vmatprep.subr.mxu0 0.0
        %1958 = vmatpush1.xpose.msra.mxu0 0.0
        %1959 = vmatprep.subr.mxu0 0.0
        %1960 = vmatpush1.xpose.msra.mxu0 0.0
        %1961 = vmatprep.subr.mxu0 0.0
        %1962 = vmatpush1.xpose.msra.mxu0 0.0
        %1963 = vmatprep.subr.mxu0 0.0
        %1964 = vmatpush1.xpose.msra.mxu0 0.0
        %1965 = vmatprep.subr.mxu0 0.0
        %1966 = vmatpush1.xpose.msra.mxu0 0.0
        %1967 = vmatprep.subr.mxu0 0.0
        %1968 = vmatpush1.xpose.msra.mxu0 0.0
        %1969 = vmatprep.subr.mxu0 0.0
        %1970 = vmatpush1.xpose.msra.mxu0 0.0
        %1971 = vmatprep.subr.mxu0 0.0
        %1972 = vmatpush1.xpose.msra.mxu0 0.0
        %1973 = vmatprep.subr.mxu0 0.0
        %1974 = vmatpush1.xpose.msra.mxu0 0.0
        %1975 = vmatprep.subr.mxu0 0.0
        %1976 = vmatpush1.xpose.msra.mxu0 0.0
        %1977 = vmatprep.subr.mxu0 0.0
        %1978 = vmatpush1.xpose.msra.mxu0 0.0
        %1979 = vmatprep.subr.mxu0 0.0
        %1980 = vmatpush1.xpose.msra.mxu0 0.0
        %1981 = vmatprep.subr.mxu0 0.0
        %1982 = vmatpush1.xpose.msra.mxu0 0.0
        %1983 = vmatprep.subr.mxu0 0.0
        %1984 = vmatpush1.xpose.msra.mxu0 0.0
        %1985 = vmatprep.subr.mxu0 0.0
        %1986 = vmatpush1.xpose.msra.mxu0 0.0
        %1987 = vmatprep.subr.mxu0 0.0
        %1988 = vmatpush1.xpose.msra.mxu0 0.0
        %1989 = vmatprep.mubr.f32.mxu0 0.0
        %1990 = vmatmul.mubr.f32.gmra.mrb[0].mxu0 %v1902
        %v1991 = vpop.f32.mrb[0].mxu0
        %v1992 = vadd.f32 0.0, %v1991
        %v1993 = vpop.f32.mrb[0].mxu0
        %1994 = vmatprep.mubr.f32.mxu0 0.0
        %1995 = vmatmul.mubr.f32.gmra.mrb[0].mxu0 %v1905
        %v1996 = vpop.f32.mrb[0].mxu0
        %v1997 = vadd.f32 0.0, %v1996
        %v1998 = vpop.f32.mrb[0].mxu0
        %1999 = vmatprep.mubr.f32.mxu0 0.0
        %2000 = vmatmul.mubr.f32.gmra.mrb[0].mxu0 %v1908
        %v2001 = vpop.f32.mrb[0].mxu0
        %v2002 = vadd.f32 0.0, %v2001
        %v2003 = vpop.f32.mrb[0].mxu0
        %2004 = vmatprep.mubr.f32.mxu0 0.0
        %2005 = vmatmul.mubr.f32.gmra.mrb[0].mxu0 %v1911
        %v2006 = vpop.f32.mrb[0].mxu0
        %v2007 = vadd.f32 0.0, %v2006
        %v2008 = vpop.f32.mrb[0].mxu0
        %2009 = vdwg.mxu0
        %v2011 = vsel %vm1039, %v1001, 0
        %v2014 = vsel %vm1039, %v1006, 0
        %v2017 = vsel %vm1039, %v1011, 0
        %v2020 = vsel %vm1039, %v1016, 0
        %v2023 = vsel %vm1039, %v1201, 0
        %v2026 = vsel %vm1039, %v1203, 0
        %v2029 = vsel %vm1039, %v1205, 0
        %v2032 = vsel %vm1039, %v1207, 0
        %2034 = vmatprep.subr.mxu0 0.0
        %2035 = vmatpush1.xpose.msra.mxu0 %v2023
        %2036 = vmatprep.subr.mxu0 0.0
        %2037 = vmatpush1.xpose.msra.mxu0 %v2026
        %2038 = vmatprep.subr.mxu0 0.0
        %2039 = vmatpush1.xpose.msra.mxu0 %v2029
        %2040 = vmatprep.subr.mxu0 0.0
        %2041 = vmatpush1.xpose.msra.mxu0 %v2032
        %2042 = vmatprep.subr.mxu0 0.0
        %2043 = vmatpush1.xpose.msra.mxu0 0.0
        %2044 = vmatprep.subr.mxu0 0.0
        %2045 = vmatpush1.xpose.msra.mxu0 0.0
        %2046 = vmatprep.subr.mxu0 0.0
        %2047 = vmatpush1.xpose.msra.mxu0 0.0
        %2048 = vmatprep.subr.mxu0 0.0
        %2049 = vmatpush1.xpose.msra.mxu0 0.0
        %2050 = vmatprep.subr.mxu0 0.0
        %2051 = vmatpush1.xpose.msra.mxu0 0.0
        %2052 = vmatprep.subr.mxu0 0.0
        %2053 = vmatpush1.xpose.msra.mxu0 0.0
        %2054 = vmatprep.subr.mxu0 0.0
        %2055 = vmatpush1.xpose.msra.mxu0 0.0
        %2056 = vmatprep.subr.mxu0 0.0
        %2057 = vmatpush1.xpose.msra.mxu0 0.0
        %2058 = vmatprep.subr.mxu0 0.0
        %2059 = vmatpush1.xpose.msra.mxu0 0.0
        %2060 = vmatprep.subr.mxu0 0.0
        %2061 = vmatpush1.xpose.msra.mxu0 0.0
        %2062 = vmatprep.subr.mxu0 0.0
        %2063 = vmatpush1.xpose.msra.mxu0 0.0
        %2064 = vmatprep.subr.mxu0 0.0
        %2065 = vmatpush1.xpose.msra.mxu0 0.0
        %2066 = vmatprep.subr.mxu0 0.0
        %2067 = vmatpush1.xpose.msra.mxu0 0.0
        %2068 = vmatprep.subr.mxu0 0.0
        %2069 = vmatpush1.xpose.msra.mxu0 0.0
        %2070 = vmatprep.subr.mxu0 0.0
        %2071 = vmatpush1.xpose.msra.mxu0 0.0
        %2072 = vmatprep.subr.mxu0 0.0
        %2073 = vmatpush1.xpose.msra.mxu0 0.0
        %2074 = vmatprep.subr.mxu0 0.0
        %2075 = vmatpush1.xpose.msra.mxu0 0.0
        %2076 = vmatprep.subr.mxu0 0.0
        %2077 = vmatpush1.xpose.msra.mxu0 0.0
        %2078 = vmatprep.subr.mxu0 0.0
        %2079 = vmatpush1.xpose.msra.mxu0 0.0
        %2080 = vmatprep.subr.mxu0 0.0
        %2081 = vmatpush1.xpose.msra.mxu0 0.0
        %2082 = vmatprep.subr.mxu0 0.0
        %2083 = vmatpush1.xpose.msra.mxu0 0.0
        %2084 = vmatprep.subr.mxu0 0.0
        %2085 = vmatpush1.xpose.msra.mxu0 0.0
        %2086 = vmatprep.subr.mxu0 0.0
        %2087 = vmatpush1.xpose.msra.mxu0 0.0
        %2088 = vmatprep.subr.mxu0 0.0
        %2089 = vmatpush1.xpose.msra.mxu0 0.0
        %2090 = vmatprep.subr.mxu0 0.0
        %2091 = vmatpush1.xpose.msra.mxu0 0.0
        %2092 = vmatprep.subr.mxu0 0.0
        %2093 = vmatpush1.xpose.msra.mxu0 0.0
        %2094 = vmatprep.subr.mxu0 0.0
        %2095 = vmatpush1.xpose.msra.mxu0 0.0
        %2096 = vmatprep.subr.mxu0 0.0
        %2097 = vmatpush1.xpose.msra.mxu0 0.0
        %2098 = vmatprep.mubr.f32.mxu0 0.0
        %2099 = vmatmul.mubr.f32.gmra.mrb[0].mxu0 %v2011
        %v2100 = vpop.f32.mrb[0].mxu0
        %v2101 = vadd.f32 0.0, %v2100
        %v2102 = vpop.f32.mrb[0].mxu0
        %2103 = vmatprep.mubr.f32.mxu0 0.0
        %2104 = vmatmul.mubr.f32.gmra.mrb[0].mxu0 %v2014
        %v2105 = vpop.f32.mrb[0].mxu0
        %v2106 = vadd.f32 0.0, %v2105
        %v2107 = vpop.f32.mrb[0].mxu0
        %2108 = vmatprep.mubr.f32.mxu0 0.0
        %2109 = vmatmul.mubr.f32.gmra.mrb[0].mxu0 %v2017
        %v2110 = vpop.f32.mrb[0].mxu0
        %v2111 = vadd.f32 0.0, %v2110
        %v2112 = vpop.f32.mrb[0].mxu0
        %2113 = vmatprep.mubr.f32.mxu0 0.0
        %2114 = vmatmul.mubr.f32.gmra.mrb[0].mxu0 %v2020
        %v2115 = vpop.f32.mrb[0].mxu0
        %v2116 = vadd.f32 0.0, %v2115
        %v2117 = vpop.f32.mrb[0].mxu0
        %2118 = vdwg.mxu0
        %v2120 = vsel %vm1039, %v1021, 0
        %v2123 = vsel %vm1039, %v1026, 0
        %v2126 = vsel %vm1039, %v1031, 0
        %v2129 = vsel %vm1039, %v1036, 0
        %v2132 = vsel %vm1039, %v1209, 0
        %v2135 = vsel %vm1039, %v1211, 0
        %v2138 = vsel %vm1039, %v1213, 0
        %v2141 = vsel %vm1039, %v1215, 0
        %2143 = vmatprep.subr.mxu0 0.0
        %2144 = vmatpush1.xpose.msra.mxu0 %v2132
        %2145 = vmatprep.subr.mxu0 0.0
        %2146 = vmatpush1.xpose.msra.mxu0 %v2135
        %2147 = vmatprep.subr.mxu0 0.0
        %2148 = vmatpush1.xpose.msra.mxu0 %v2138
        %2149 = vmatprep.subr.mxu0 0.0
        %2150 = vmatpush1.xpose.msra.mxu0 %v2141
        %2151 = vmatprep.subr.mxu0 0.0
        %2152 = vmatpush1.xpose.msra.mxu0 0.0
        %2153 = vmatprep.subr.mxu0 0.0
        %2154 = vmatpush1.xpose.msra.mxu0 0.0
        %2155 = vmatprep.subr.mxu0 0.0
        %2156 = vmatpush1.xpose.msra.mxu0 0.0
        %2157 = vmatprep.subr.mxu0 0.0
        %2158 = vmatpush1.xpose.msra.mxu0 0.0
        %2159 = vmatprep.subr.mxu0 0.0
        %2160 = vmatpush1.xpose.msra.mxu0 0.0
        %2161 = vmatprep.subr.mxu0 0.0
        %2162 = vmatpush1.xpose.msra.mxu0 0.0
        %2163 = vmatprep.subr.mxu0 0.0
        %2164 = vmatpush1.xpose.msra.mxu0 0.0
        %2165 = vmatprep.subr.mxu0 0.0
        %2166 = vmatpush1.xpose.msra.mxu0 0.0
        %2167 = vmatprep.subr.mxu0 0.0
        %2168 = vmatpush1.xpose.msra.mxu0 0.0
        %2169 = vmatprep.subr.mxu0 0.0
        %2170 = vmatpush1.xpose.msra.mxu0 0.0
        %2171 = vmatprep.subr.mxu0 0.0
        %2172 = vmatpush1.xpose.msra.mxu0 0.0
        %2173 = vmatprep.subr.mxu0 0.0
        %2174 = vmatpush1.xpose.msra.mxu0 0.0
        %2175 = vmatprep.subr.mxu0 0.0
        %2176 = vmatpush1.xpose.msra.mxu0 0.0
        %2177 = vmatprep.subr.mxu0 0.0
        %2178 = vmatpush1.xpose.msra.mxu0 0.0
        %2179 = vmatprep.subr.mxu0 0.0
        %2180 = vmatpush1.xpose.msra.mxu0 0.0
        %2181 = vmatprep.subr.mxu0 0.0
        %2182 = vmatpush1.xpose.msra.mxu0 0.0
        %2183 = vmatprep.subr.mxu0 0.0
        %2184 = vmatpush1.xpose.msra.mxu0 0.0
        %2185 = vmatprep.subr.mxu0 0.0
        %2186 = vmatpush1.xpose.msra.mxu0 0.0
        %2187 = vmatprep.subr.mxu0 0.0
        %2188 = vmatpush1.xpose.msra.mxu0 0.0
        %2189 = vmatprep.subr.mxu0 0.0
        %2190 = vmatpush1.xpose.msra.mxu0 0.0
        %2191 = vmatprep.subr.mxu0 0.0
        %2192 = vmatpush1.xpose.msra.mxu0 0.0
        %2193 = vmatprep.subr.mxu0 0.0
        %2194 = vmatpush1.xpose.msra.mxu0 0.0
        %2195 = vmatprep.subr.mxu0 0.0
        %2196 = vmatpush1.xpose.msra.mxu0 0.0
        %2197 = vmatprep.subr.mxu0 0.0
        %2198 = vmatpush1.xpose.msra.mxu0 0.0
        %2199 = vmatprep.subr.mxu0 0.0
        %2200 = vmatpush1.xpose.msra.mxu0 0.0
        %2201 = vmatprep.subr.mxu0 0.0
        %2202 = vmatpush1.xpose.msra.mxu0 0.0
        %2203 = vmatprep.subr.mxu0 0.0
        %2204 = vmatpush1.xpose.msra.mxu0 0.0
        %2205 = vmatprep.subr.mxu0 0.0
        %2206 = vmatpush1.xpose.msra.mxu0 0.0
        %2207 = vmatprep.mubr.f32.mxu0 0.0
        %2208 = vmatmul.mubr.f32.gmra.mrb[0].mxu0 %v2120
        %v2209 = vpop.f32.mrb[0].mxu0
        %v2210 = vadd.f32 0.0, %v2209
        %v2211 = vpop.f32.mrb[0].mxu0
        %2212 = vmatprep.mubr.f32.mxu0 0.0
        %2213 = vmatmul.mubr.f32.gmra.mrb[0].mxu0 %v2123
        %v2214 = vpop.f32.mrb[0].mxu0
        %v2215 = vadd.f32 0.0, %v2214
        %v2216 = vpop.f32.mrb[0].mxu0
        %2217 = vmatprep.mubr.f32.mxu0 0.0
        %2218 = vmatmul.mubr.f32.gmra.mrb[0].mxu0 %v2126
        %v2219 = vpop.f32.mrb[0].mxu0
        %v2220 = vadd.f32 0.0, %v2219
        %v2221 = vpop.f32.mrb[0].mxu0
        %2222 = vmatprep.mubr.f32.mxu0 0.0
        %2223 = vmatmul.mubr.f32.gmra.mrb[0].mxu0 %v2129
        %v2224 = vpop.f32.mrb[0].mxu0
        %v2225 = vadd.f32 0.0, %v2224
        %v2226 = vpop.f32.mrb[0].mxu0
        %2227 = vdwg.mxu0
        %vm2228 = vcmask 261120
        %v2230 = vsel %vm2228, %v1883, 0
        %v2233 = vsel %vm2228, %v1888, 0
        %v2236 = vsel %vm2228, %v1893, 0
        %v2239 = vsel %vm2228, %v1898, 0
        %2241 = vmatprep.subr.mxu0 %v1729
        %2242 = vmatpush1.msra.mxu0 %v1728
        %2243 = vmatprep.subr.mxu0 %v1733
        %2244 = vmatpush1.msra.mxu0 %v1732
        %2245 = vmatprep.subr.mxu0 %v1737
        %2246 = vmatpush1.msra.mxu0 %v1736
        %2247 = vmatprep.subr.mxu0 %v1741
        %2248 = vmatpush1.msra.mxu0 %v1740
        %2249 = vmatprep.subr.mxu0 0.0
        %2250 = vmatpush1.msra.mxu0 0.0
        %2251 = vmatprep.subr.mxu0 0.0
        %2252 = vmatpush1.msra.mxu0 0.0
        %2253 = vmatprep.subr.mxu0 0.0
        %2254 = vmatpush1.msra.mxu0 0.0
        %2255 = vmatprep.subr.mxu0 0.0
        %2256 = vmatpush1.msra.mxu0 0.0
        %2257 = vmatprep.subr.mxu0 0.0
        %2258 = vmatpush1.msra.mxu0 0.0
        %2259 = vmatprep.subr.mxu0 0.0
        %2260 = vmatpush1.msra.mxu0 0.0
        %2261 = vmatprep.subr.mxu0 0.0
        %2262 = vmatpush1.msra.mxu0 0.0
        %2263 = vmatprep.subr.mxu0 0.0
        %2264 = vmatpush1.msra.mxu0 0.0
        %2265 = vmatprep.subr.mxu0 0.0
        %2266 = vmatpush1.msra.mxu0 0.0
        %2267 = vmatprep.subr.mxu0 0.0
        %2268 = vmatpush1.msra.mxu0 0.0
        %2269 = vmatprep.subr.mxu0 0.0
        %2270 = vmatpush1.msra.mxu0 0.0
        %2271 = vmatprep.subr.mxu0 0.0
        %2272 = vmatpush1.msra.mxu0 0.0
        %2273 = vmatprep.subr.mxu0 0.0
        %2274 = vmatpush1.msra.mxu0 0.0
        %2275 = vmatprep.subr.mxu0 0.0
        %2276 = vmatpush1.msra.mxu0 0.0
        %2277 = vmatprep.subr.mxu0 0.0
        %2278 = vmatpush1.msra.mxu0 0.0
        %2279 = vmatprep.subr.mxu0 0.0
        %2280 = vmatpush1.msra.mxu0 0.0
        %2281 = vmatprep.subr.mxu0 0.0
        %2282 = vmatpush1.msra.mxu0 0.0
        %2283 = vmatprep.subr.mxu0 0.0
        %2284 = vmatpush1.msra.mxu0 0.0
        %2285 = vmatprep.subr.mxu0 0.0
        %2286 = vmatpush1.msra.mxu0 0.0
        %2287 = vmatprep.subr.mxu0 0.0
        %2288 = vmatpush1.msra.mxu0 0.0
        %2289 = vmatprep.subr.mxu0 0.0
        %2290 = vmatpush1.msra.mxu0 0.0
        %2291 = vmatprep.subr.mxu0 0.0
        %2292 = vmatpush1.msra.mxu0 0.0
        %2293 = vmatprep.subr.mxu0 0.0
        %2294 = vmatpush1.msra.mxu0 0.0
        %2295 = vmatprep.subr.mxu0 0.0
        %2296 = vmatpush1.msra.mxu0 0.0
        %2297 = vmatprep.subr.mxu0 0.0
        %2298 = vmatpush1.msra.mxu0 0.0
        %2299 = vmatprep.subr.mxu0 0.0
        %2300 = vmatpush1.msra.mxu0 0.0
        %2301 = vmatprep.subr.mxu0 0.0
        %2302 = vmatpush1.msra.mxu0 0.0
        %2303 = vmatprep.subr.mxu0 0.0
        %2304 = vmatpush1.msra.mxu0 0.0
        %2305 = vmatprep.mubr.f32.mxu0 0.0
        %2306 = vmatmul.mubr.f32.gmra.mrb[0].mxu0 %v2230
        %v2307 = vpop.f32.mrb[0].mxu0
        %v2308 = vadd.f32 0.0, %v2307
        %v2309 = vpop.f32.mrb[0].mxu0
        %v2310 = vadd.f32 0.0, %v2309
        %2311 = vmatprep.mubr.f32.mxu0 0.0
        %2312 = vmatmul.mubr.f32.gmra.mrb[0].mxu0 %v2233
        %v2313 = vpop.f32.mrb[0].mxu0
        %v2314 = vadd.f32 0.0, %v2313
        %v2315 = vpop.f32.mrb[0].mxu0
        %v2316 = vadd.f32 0.0, %v2315
        %2317 = vmatprep.mubr.f32.mxu0 0.0
        %2318 = vmatmul.mubr.f32.gmra.mrb[0].mxu0 %v2236
        %v2319 = vpop.f32.mrb[0].mxu0
        %v2320 = vadd.f32 0.0, %v2319
        %v2321 = vpop.f32.mrb[0].mxu0
        %v2322 = vadd.f32 0.0, %v2321
        %2323 = vmatprep.mubr.f32.mxu0 0.0
        %2324 = vmatmul.mubr.f32.gmra.mrb[0].mxu0 %v2239
        %v2325 = vpop.f32.mrb[0].mxu0
        %v2326 = vadd.f32 0.0, %v2325
        %v2327 = vpop.f32.mrb[0].mxu0
        %v2328 = vadd.f32 0.0, %v2327
        %2329 = vdwg.mxu0
        %2330 = vmatprep.subr.mxu0 %v1731
        %2331 = vmatpush1.msra.mxu0 %v1730
        %2332 = vmatprep.subr.mxu0 %v1735
        %2333 = vmatpush1.msra.mxu0 %v1734
        %2334 = vmatprep.subr.mxu0 %v1739
        %2335 = vmatpush1.msra.mxu0 %v1738
        %2336 = vmatprep.subr.mxu0 %v1743
        %2337 = vmatpush1.msra.mxu0 %v1742
        %2338 = vmatprep.subr.mxu0 0.0
        %2339 = vmatpush1.msra.mxu0 0.0
        %2340 = vmatprep.subr.mxu0 0.0
        %2341 = vmatpush1.msra.mxu0 0.0
        %2342 = vmatprep.subr.mxu0 0.0
        %2343 = vmatpush1.msra.mxu0 0.0
        %2344 = vmatprep.subr.mxu0 0.0
        %2345 = vmatpush1.msra.mxu0 0.0
        %2346 = vmatprep.subr.mxu0 0.0
        %2347 = vmatpush1.msra.mxu0 0.0
        %2348 = vmatprep.subr.mxu0 0.0
        %2349 = vmatpush1.msra.mxu0 0.0
        %2350 = vmatprep.subr.mxu0 0.0
        %2351 = vmatpush1.msra.mxu0 0.0
        %2352 = vmatprep.subr.mxu0 0.0
        %2353 = vmatpush1.msra.mxu0 0.0
        %2354 = vmatprep.subr.mxu0 0.0
        %2355 = vmatpush1.msra.mxu0 0.0
        %2356 = vmatprep.subr.mxu0 0.0
        %2357 = vmatpush1.msra.mxu0 0.0
        %2358 = vmatprep.subr.mxu0 0.0
        %2359 = vmatpush1.msra.mxu0 0.0
        %2360 = vmatprep.subr.mxu0 0.0
        %2361 = vmatpush1.msra.mxu0 0.0
        %2362 = vmatprep.subr.mxu0 0.0
        %2363 = vmatpush1.msra.mxu0 0.0
        %2364 = vmatprep.subr.mxu0 0.0
        %2365 = vmatpush1.msra.mxu0 0.0
        %2366 = vmatprep.subr.mxu0 0.0
        %2367 = vmatpush1.msra.mxu0 0.0
        %2368 = vmatprep.subr.mxu0 0.0
        %2369 = vmatpush1.msra.mxu0 0.0
        %2370 = vmatprep.subr.mxu0 0.0
        %2371 = vmatpush1.msra.mxu0 0.0
        %2372 = vmatprep.subr.mxu0 0.0
        %2373 = vmatpush1.msra.mxu0 0.0
        %2374 = vmatprep.subr.mxu0 0.0
        %2375 = vmatpush1.msra.mxu0 0.0
        %2376 = vmatprep.subr.mxu0 0.0
        %2377 = vmatpush1.msra.mxu0 0.0
        %2378 = vmatprep.subr.mxu0 0.0
        %2379 = vmatpush1.msra.mxu0 0.0
        %2380 = vmatprep.subr.mxu0 0.0
        %2381 = vmatpush1.msra.mxu0 0.0
        %2382 = vmatprep.subr.mxu0 0.0
        %2383 = vmatpush1.msra.mxu0 0.0
        %2384 = vmatprep.subr.mxu0 0.0
        %2385 = vmatpush1.msra.mxu0 0.0
        %2386 = vmatprep.subr.mxu0 0.0
        %2387 = vmatpush1.msra.mxu0 0.0
        %2388 = vmatprep.subr.mxu0 0.0
        %2389 = vmatpush1.msra.mxu0 0.0
        %2390 = vmatprep.subr.mxu0 0.0
        %2391 = vmatpush1.msra.mxu0 0.0
        %2392 = vmatprep.subr.mxu0 0.0
        %2393 = vmatpush1.msra.mxu0 0.0
        %2394 = vmatprep.mubr.f32.mxu0 0.0
        %2395 = vmatmul.mubr.f32.gmra.mrb[0].mxu0 %v2230
        %v2396 = vpop.f32.mrb[0].mxu0
        %v2397 = vadd.f32 0.0, %v2396
        %v2398 = vpop.f32.mrb[0].mxu0
        %v2399 = vadd.f32 0.0, %v2398
        %2400 = vmatprep.mubr.f32.mxu0 0.0
        %2401 = vmatmul.mubr.f32.gmra.mrb[0].mxu0 %v2233
        %v2402 = vpop.f32.mrb[0].mxu0
        %v2403 = vadd.f32 0.0, %v2402
        %v2404 = vpop.f32.mrb[0].mxu0
        %v2405 = vadd.f32 0.0, %v2404
        %2406 = vmatprep.mubr.f32.mxu0 0.0
        %2407 = vmatmul.mubr.f32.gmra.mrb[0].mxu0 %v2236
        %v2408 = vpop.f32.mrb[0].mxu0
        %v2409 = vadd.f32 0.0, %v2408
        %v2410 = vpop.f32.mrb[0].mxu0
        %v2411 = vadd.f32 0.0, %v2410
        %2412 = vmatprep.mubr.f32.mxu0 0.0
        %2413 = vmatmul.mubr.f32.gmra.mrb[0].mxu0 %v2239
        %v2414 = vpop.f32.mrb[0].mxu0
        %v2415 = vadd.f32 0.0, %v2414
        %v2416 = vpop.f32.mrb[0].mxu0
        %v2417 = vadd.f32 0.0, %v2416
        %2418 = vdwg.mxu0
        %v2420 = vsel %vm2228, %v1992, 0
        %v2423 = vsel %vm2228, %v1997, 0
        %v2426 = vsel %vm2228, %v2002, 0
        %v2429 = vsel %vm2228, %v2007, 0
        %2431 = vmatprep.subr.mxu0 %v1745
        %2432 = vmatpush1.msra.mxu0 %v1744
        %2433 = vmatprep.subr.mxu0 %v1749
        %2434 = vmatpush1.msra.mxu0 %v1748
        %2435 = vmatprep.subr.mxu0 %v1753
        %2436 = vmatpush1.msra.mxu0 %v1752
        %2437 = vmatprep.subr.mxu0 %v1757
        %2438 = vmatpush1.msra.mxu0 %v1756
        %2439 = vmatprep.subr.mxu0 0.0
        %2440 = vmatpush1.msra.mxu0 0.0
        %2441 = vmatprep.subr.mxu0 0.0
        %2442 = vmatpush1.msra.mxu0 0.0
        %2443 = vmatprep.subr.mxu0 0.0
        %2444 = vmatpush1.msra.mxu0 0.0
        %2445 = vmatprep.subr.mxu0 0.0
        %2446 = vmatpush1.msra.mxu0 0.0
        %2447 = vmatprep.subr.mxu0 0.0
        %2448 = vmatpush1.msra.mxu0 0.0
        %2449 = vmatprep.subr.mxu0 0.0
        %2450 = vmatpush1.msra.mxu0 0.0
        %2451 = vmatprep.subr.mxu0 0.0
        %2452 = vmatpush1.msra.mxu0 0.0
        %2453 = vmatprep.subr.mxu0 0.0
        %2454 = vmatpush1.msra.mxu0 0.0
        %2455 = vmatprep.subr.mxu0 0.0
        %2456 = vmatpush1.msra.mxu0 0.0
        %2457 = vmatprep.subr.mxu0 0.0
        %2458 = vmatpush1.msra.mxu0 0.0
        %2459 = vmatprep.subr.mxu0 0.0
        %2460 = vmatpush1.msra.mxu0 0.0
        %2461 = vmatprep.subr.mxu0 0.0
        %2462 = vmatpush1.msra.mxu0 0.0
        %2463 = vmatprep.subr.mxu0 0.0
        %2464 = vmatpush1.msra.mxu0 0.0
        %2465 = vmatprep.subr.mxu0 0.0
        %2466 = vmatpush1.msra.mxu0 0.0
        %2467 = vmatprep.subr.mxu0 0.0
        %2468 = vmatpush1.msra.mxu0 0.0
        %2469 = vmatprep.subr.mxu0 0.0
        %2470 = vmatpush1.msra.mxu0 0.0
        %2471 = vmatprep.subr.mxu0 0.0
        %2472 = vmatpush1.msra.mxu0 0.0
        %2473 = vmatprep.subr.mxu0 0.0
        %2474 = vmatpush1.msra.mxu0 0.0
        %2475 = vmatprep.subr.mxu0 0.0
        %2476 = vmatpush1.msra.mxu0 0.0
        %2477 = vmatprep.subr.mxu0 0.0
        %2478 = vmatpush1.msra.mxu0 0.0
        %2479 = vmatprep.subr.mxu0 0.0
        %2480 = vmatpush1.msra.mxu0 0.0
        %2481 = vmatprep.subr.mxu0 0.0
        %2482 = vmatpush1.msra.mxu0 0.0
        %2483 = vmatprep.subr.mxu0 0.0
        %2484 = vmatpush1.msra.mxu0 0.0
        %2485 = vmatprep.subr.mxu0 0.0
        %2486 = vmatpush1.msra.mxu0 0.0
        %2487 = vmatprep.subr.mxu0 0.0
        %2488 = vmatpush1.msra.mxu0 0.0
        %2489 = vmatprep.subr.mxu0 0.0
        %2490 = vmatpush1.msra.mxu0 0.0
        %2491 = vmatprep.subr.mxu0 0.0
        %2492 = vmatpush1.msra.mxu0 0.0
        %2493 = vmatprep.subr.mxu0 0.0
        %2494 = vmatpush1.msra.mxu0 0.0
        %2495 = vmatprep.mubr.f32.mxu0 0.0
        %2496 = vmatmul.mubr.f32.gmra.mrb[0].mxu0 %v2420
        %v2497 = vpop.f32.mrb[0].mxu0
        %v2498 = vadd.f32 0.0, %v2497
        %v2499 = vpop.f32.mrb[0].mxu0
        %v2500 = vadd.f32 0.0, %v2499
        %2501 = vmatprep.mubr.f32.mxu0 0.0
        %2502 = vmatmul.mubr.f32.gmra.mrb[0].mxu0 %v2423
        %v2503 = vpop.f32.mrb[0].mxu0
        %v2504 = vadd.f32 0.0, %v2503
        %v2505 = vpop.f32.mrb[0].mxu0
        %v2506 = vadd.f32 0.0, %v2505
        %2507 = vmatprep.mubr.f32.mxu0 0.0
        %2508 = vmatmul.mubr.f32.gmra.mrb[0].mxu0 %v2426
        %v2509 = vpop.f32.mrb[0].mxu0
        %v2510 = vadd.f32 0.0, %v2509
        %v2511 = vpop.f32.mrb[0].mxu0
        %v2512 = vadd.f32 0.0, %v2511
        %2513 = vmatprep.mubr.f32.mxu0 0.0
        %2514 = vmatmul.mubr.f32.gmra.mrb[0].mxu0 %v2429
        %v2515 = vpop.f32.mrb[0].mxu0
        %v2516 = vadd.f32 0.0, %v2515
        %v2517 = vpop.f32.mrb[0].mxu0
        %v2518 = vadd.f32 0.0, %v2517
        %2519 = vdwg.mxu0
        %2520 = vmatprep.subr.mxu0 %v1747
        %2521 = vmatpush1.msra.mxu0 %v1746
        %2522 = vmatprep.subr.mxu0 %v1751
        %2523 = vmatpush1.msra.mxu0 %v1750
        %2524 = vmatprep.subr.mxu0 %v1755
        %2525 = vmatpush1.msra.mxu0 %v1754
        %2526 = vmatprep.subr.mxu0 %v1759
        %2527 = vmatpush1.msra.mxu0 %v1758
        %2528 = vmatprep.subr.mxu0 0.0
        %2529 = vmatpush1.msra.mxu0 0.0
        %2530 = vmatprep.subr.mxu0 0.0
        %2531 = vmatpush1.msra.mxu0 0.0
        %2532 = vmatprep.subr.mxu0 0.0
        %2533 = vmatpush1.msra.mxu0 0.0
        %2534 = vmatprep.subr.mxu0 0.0
        %2535 = vmatpush1.msra.mxu0 0.0
        %2536 = vmatprep.subr.mxu0 0.0
        %2537 = vmatpush1.msra.mxu0 0.0
        %2538 = vmatprep.subr.mxu0 0.0
        %2539 = vmatpush1.msra.mxu0 0.0
        %2540 = vmatprep.subr.mxu0 0.0
        %2541 = vmatpush1.msra.mxu0 0.0
        %2542 = vmatprep.subr.mxu0 0.0
        %2543 = vmatpush1.msra.mxu0 0.0
        %2544 = vmatprep.subr.mxu0 0.0
        %2545 = vmatpush1.msra.mxu0 0.0
        %2546 = vmatprep.subr.mxu0 0.0
        %2547 = vmatpush1.msra.mxu0 0.0
        %2548 = vmatprep.subr.mxu0 0.0
        %2549 = vmatpush1.msra.mxu0 0.0
        %2550 = vmatprep.subr.mxu0 0.0
        %2551 = vmatpush1.msra.mxu0 0.0
        %2552 = vmatprep.subr.mxu0 0.0
        %2553 = vmatpush1.msra.mxu0 0.0
        %2554 = vmatprep.subr.mxu0 0.0
        %2555 = vmatpush1.msra.mxu0 0.0
        %2556 = vmatprep.subr.mxu0 0.0
        %2557 = vmatpush1.msra.mxu0 0.0
        %2558 = vmatprep.subr.mxu0 0.0
        %2559 = vmatpush1.msra.mxu0 0.0
        %2560 = vmatprep.subr.mxu0 0.0
        %2561 = vmatpush1.msra.mxu0 0.0
        %2562 = vmatprep.subr.mxu0 0.0
        %2563 = vmatpush1.msra.mxu0 0.0
        %2564 = vmatprep.subr.mxu0 0.0
        %2565 = vmatpush1.msra.mxu0 0.0
        %2566 = vmatprep.subr.mxu0 0.0
        %2567 = vmatpush1.msra.mxu0 0.0
        %2568 = vmatprep.subr.mxu0 0.0
        %2569 = vmatpush1.msra.mxu0 0.0
        %2570 = vmatprep.subr.mxu0 0.0
        %2571 = vmatpush1.msra.mxu0 0.0
        %2572 = vmatprep.subr.mxu0 0.0
        %2573 = vmatpush1.msra.mxu0 0.0
        %2574 = vmatprep.subr.mxu0 0.0
        %2575 = vmatpush1.msra.mxu0 0.0
        %2576 = vmatprep.subr.mxu0 0.0
        %2577 = vmatpush1.msra.mxu0 0.0
        %2578 = vmatprep.subr.mxu0 0.0
        %2579 = vmatpush1.msra.mxu0 0.0
        %2580 = vmatprep.subr.mxu0 0.0
        %2581 = vmatpush1.msra.mxu0 0.0
        %2582 = vmatprep.subr.mxu0 0.0
        %2583 = vmatpush1.msra.mxu0 0.0
        %2584 = vmatprep.mubr.f32.mxu0 0.0
        %2585 = vmatmul.mubr.f32.gmra.mrb[0].mxu0 %v2420
        %v2586 = vpop.f32.mrb[0].mxu0
        %v2587 = vadd.f32 0.0, %v2586
        %v2588 = vpop.f32.mrb[0].mxu0
        %v2589 = vadd.f32 0.0, %v2588
        %2590 = vmatprep.mubr.f32.mxu0 0.0
        %2591 = vmatmul.mubr.f32.gmra.mrb[0].mxu0 %v2423
        %v2592 = vpop.f32.mrb[0].mxu0
        %v2593 = vadd.f32 0.0, %v2592
        %v2594 = vpop.f32.mrb[0].mxu0
        %v2595 = vadd.f32 0.0, %v2594
        %2596 = vmatprep.mubr.f32.mxu0 0.0
        %2597 = vmatmul.mubr.f32.gmra.mrb[0].mxu0 %v2426
        %v2598 = vpop.f32.mrb[0].mxu0
        %v2599 = vadd.f32 0.0, %v2598
        %v2600 = vpop.f32.mrb[0].mxu0
        %v2601 = vadd.f32 0.0, %v2600
        %2602 = vmatprep.mubr.f32.mxu0 0.0
        %2603 = vmatmul.mubr.f32.gmra.mrb[0].mxu0 %v2429
        %v2604 = vpop.f32.mrb[0].mxu0
        %v2605 = vadd.f32 0.0, %v2604
        %v2606 = vpop.f32.mrb[0].mxu0
        %v2607 = vadd.f32 0.0, %v2606
        %2608 = vdwg.mxu0
        %v2610 = vsel %vm2228, %v2101, 0
        %v2613 = vsel %vm2228, %v2106, 0
        %v2616 = vsel %vm2228, %v2111, 0
        %v2619 = vsel %vm2228, %v2116, 0
        %2621 = vmatprep.subr.mxu0 %v1761
        %2622 = vmatpush1.msra.mxu0 %v1760
        %2623 = vmatprep.subr.mxu0 %v1765
        %2624 = vmatpush1.msra.mxu0 %v1764
        %2625 = vmatprep.subr.mxu0 %v1769
        %2626 = vmatpush1.msra.mxu0 %v1768
        %2627 = vmatprep.subr.mxu0 %v1773
        %2628 = vmatpush1.msra.mxu0 %v1772
        %2629 = vmatprep.subr.mxu0 0.0
        %2630 = vmatpush1.msra.mxu0 0.0
        %2631 = vmatprep.subr.mxu0 0.0
        %2632 = vmatpush1.msra.mxu0 0.0
        %2633 = vmatprep.subr.mxu0 0.0
        %2634 = vmatpush1.msra.mxu0 0.0
        %2635 = vmatprep.subr.mxu0 0.0
        %2636 = vmatpush1.msra.mxu0 0.0
        %2637 = vmatprep.subr.mxu0 0.0
        %2638 = vmatpush1.msra.mxu0 0.0
        %2639 = vmatprep.subr.mxu0 0.0
        %2640 = vmatpush1.msra.mxu0 0.0
        %2641 = vmatprep.subr.mxu0 0.0
        %2642 = vmatpush1.msra.mxu0 0.0
        %2643 = vmatprep.subr.mxu0 0.0
        %2644 = vmatpush1.msra.mxu0 0.0
        %2645 = vmatprep.subr.mxu0 0.0
        %2646 = vmatpush1.msra.mxu0 0.0
        %2647 = vmatprep.subr.mxu0 0.0
        %2648 = vmatpush1.msra.mxu0 0.0
        %2649 = vmatprep.subr.mxu0 0.0
        %2650 = vmatpush1.msra.mxu0 0.0
        %2651 = vmatprep.subr.mxu0 0.0
        %2652 = vmatpush1.msra.mxu0 0.0
        %2653 = vmatprep.subr.mxu0 0.0
        %2654 = vmatpush1.msra.mxu0 0.0
        %2655 = vmatprep.subr.mxu0 0.0
        %2656 = vmatpush1.msra.mxu0 0.0
        %2657 = vmatprep.subr.mxu0 0.0
        %2658 = vmatpush1.msra.mxu0 0.0
        %2659 = vmatprep.subr.mxu0 0.0
        %2660 = vmatpush1.msra.mxu0 0.0
        %2661 = vmatprep.subr.mxu0 0.0
        %2662 = vmatpush1.msra.mxu0 0.0
        %2663 = vmatprep.subr.mxu0 0.0
        %2664 = vmatpush1.msra.mxu0 0.0
        %2665 = vmatprep.subr.mxu0 0.0
        %2666 = vmatpush1.msra.mxu0 0.0
        %2667 = vmatprep.subr.mxu0 0.0
        %2668 = vmatpush1.msra.mxu0 0.0
        %2669 = vmatprep.subr.mxu0 0.0
        %2670 = vmatpush1.msra.mxu0 0.0
        %2671 = vmatprep.subr.mxu0 0.0
        %2672 = vmatpush1.msra.mxu0 0.0
        %2673 = vmatprep.subr.mxu0 0.0
        %2674 = vmatpush1.msra.mxu0 0.0
        %2675 = vmatprep.subr.mxu0 0.0
        %2676 = vmatpush1.msra.mxu0 0.0
        %2677 = vmatprep.subr.mxu0 0.0
        %2678 = vmatpush1.msra.mxu0 0.0
        %2679 = vmatprep.subr.mxu0 0.0
        %2680 = vmatpush1.msra.mxu0 0.0
        %2681 = vmatprep.subr.mxu0 0.0
        %2682 = vmatpush1.msra.mxu0 0.0
        %2683 = vmatprep.subr.mxu0 0.0
        %2684 = vmatpush1.msra.mxu0 0.0
        %2685 = vmatprep.mubr.f32.mxu0 0.0
        %2686 = vmatmul.mubr.f32.gmra.mrb[0].mxu0 %v2610
        %v2687 = vpop.f32.mrb[0].mxu0
        %v2688 = vadd.f32 0.0, %v2687
        %v2689 = vpop.f32.mrb[0].mxu0
        %v2690 = vadd.f32 0.0, %v2689
        %2691 = vmatprep.mubr.f32.mxu0 0.0
        %2692 = vmatmul.mubr.f32.gmra.mrb[0].mxu0 %v2613
        %v2693 = vpop.f32.mrb[0].mxu0
        %v2694 = vadd.f32 0.0, %v2693
        %v2695 = vpop.f32.mrb[0].mxu0
        %v2696 = vadd.f32 0.0, %v2695
        %2697 = vmatprep.mubr.f32.mxu0 0.0
        %2698 = vmatmul.mubr.f32.gmra.mrb[0].mxu0 %v2616
        %v2699 = vpop.f32.mrb[0].mxu0
        %v2700 = vadd.f32 0.0, %v2699
        %v2701 = vpop.f32.mrb[0].mxu0
        %v2702 = vadd.f32 0.0, %v2701
        %2703 = vmatprep.mubr.f32.mxu0 0.0
        %2704 = vmatmul.mubr.f32.gmra.mrb[0].mxu0 %v2619
        %v2705 = vpop.f32.mrb[0].mxu0
        %v2706 = vadd.f32 0.0, %v2705
        %v2707 = vpop.f32.mrb[0].mxu0
        %v2708 = vadd.f32 0.0, %v2707
        %2709 = vdwg.mxu0
        %2710 = vmatprep.subr.mxu0 %v1763
        %2711 = vmatpush1.msra.mxu0 %v1762
        %2712 = vmatprep.subr.mxu0 %v1767
        %2713 = vmatpush1.msra.mxu0 %v1766
        %2714 = vmatprep.subr.mxu0 %v1771
        %2715 = vmatpush1.msra.mxu0 %v1770
        %2716 = vmatprep.subr.mxu0 %v1775
        %2717 = vmatpush1.msra.mxu0 %v1774
        %2718 = vmatprep.subr.mxu0 0.0
        %2719 = vmatpush1.msra.mxu0 0.0
        %2720 = vmatprep.subr.mxu0 0.0
        %2721 = vmatpush1.msra.mxu0 0.0
        %2722 = vmatprep.subr.mxu0 0.0
        %2723 = vmatpush1.msra.mxu0 0.0
        %2724 = vmatprep.subr.mxu0 0.0
        %2725 = vmatpush1.msra.mxu0 0.0
        %2726 = vmatprep.subr.mxu0 0.0
        %2727 = vmatpush1.msra.mxu0 0.0
        %2728 = vmatprep.subr.mxu0 0.0
        %2729 = vmatpush1.msra.mxu0 0.0
        %2730 = vmatprep.subr.mxu0 0.0
        %2731 = vmatpush1.msra.mxu0 0.0
        %2732 = vmatprep.subr.mxu0 0.0
        %2733 = vmatpush1.msra.mxu0 0.0
        %2734 = vmatprep.subr.mxu0 0.0
        %2735 = vmatpush1.msra.mxu0 0.0
        %2736 = vmatprep.subr.mxu0 0.0
        %2737 = vmatpush1.msra.mxu0 0.0
        %2738 = vmatprep.subr.mxu0 0.0
        %2739 = vmatpush1.msra.mxu0 0.0
        %2740 = vmatprep.subr.mxu0 0.0
        %2741 = vmatpush1.msra.mxu0 0.0
        %2742 = vmatprep.subr.mxu0 0.0
        %2743 = vmatpush1.msra.mxu0 0.0
        %2744 = vmatprep.subr.mxu0 0.0
        %2745 = vmatpush1.msra.mxu0 0.0
        %2746 = vmatprep.subr.mxu0 0.0
        %2747 = vmatpush1.msra.mxu0 0.0
        %2748 = vmatprep.subr.mxu0 0.0
        %2749 = vmatpush1.msra.mxu0 0.0
        %2750 = vmatprep.subr.mxu0 0.0
        %2751 = vmatpush1.msra.mxu0 0.0
        %2752 = vmatprep.subr.mxu0 0.0
        %2753 = vmatpush1.msra.mxu0 0.0
        %2754 = vmatprep.subr.mxu0 0.0
        %2755 = vmatpush1.msra.mxu0 0.0
        %2756 = vmatprep.subr.mxu0 0.0
        %2757 = vmatpush1.msra.mxu0 0.0
        %2758 = vmatprep.subr.mxu0 0.0
        %2759 = vmatpush1.msra.mxu0 0.0
        %2760 = vmatprep.subr.mxu0 0.0
        %2761 = vmatpush1.msra.mxu0 0.0
        %2762 = vmatprep.subr.mxu0 0.0
        %2763 = vmatpush1.msra.mxu0 0.0
        %2764 = vmatprep.subr.mxu0 0.0
        %2765 = vmatpush1.msra.mxu0 0.0
        %2766 = vmatprep.subr.mxu0 0.0
        %2767 = vmatpush1.msra.mxu0 0.0
        %2768 = vmatprep.subr.mxu0 0.0
        %2769 = vmatpush1.msra.mxu0 0.0
        %2770 = vmatprep.subr.mxu0 0.0
        %2771 = vmatpush1.msra.mxu0 0.0
        %2772 = vmatprep.subr.mxu0 0.0
        %2773 = vmatpush1.msra.mxu0 0.0
        %2774 = vmatprep.mubr.f32.mxu0 0.0
        %2775 = vmatmul.mubr.f32.gmra.mrb[0].mxu0 %v2610
        %v2776 = vpop.f32.mrb[0].mxu0
        %v2777 = vadd.f32 0.0, %v2776
        %v2778 = vpop.f32.mrb[0].mxu0
        %v2779 = vadd.f32 0.0, %v2778
        %2780 = vmatprep.mubr.f32.mxu0 0.0
        %2781 = vmatmul.mubr.f32.gmra.mrb[0].mxu0 %v2613
        %v2782 = vpop.f32.mrb[0].mxu0
        %v2783 = vadd.f32 0.0, %v2782
        %v2784 = vpop.f32.mrb[0].mxu0
        %v2785 = vadd.f32 0.0, %v2784
        %2786 = vmatprep.mubr.f32.mxu0 0.0
        %2787 = vmatmul.mubr.f32.gmra.mrb[0].mxu0 %v2616
        %v2788 = vpop.f32.mrb[0].mxu0
        %v2789 = vadd.f32 0.0, %v2788
        %v2790 = vpop.f32.mrb[0].mxu0
        %v2791 = vadd.f32 0.0, %v2790
        %2792 = vmatprep.mubr.f32.mxu0 0.0
        %2793 = vmatmul.mubr.f32.gmra.mrb[0].mxu0 %v2619
        %v2794 = vpop.f32.mrb[0].mxu0
        %v2795 = vadd.f32 0.0, %v2794
        %v2796 = vpop.f32.mrb[0].mxu0
        %v2797 = vadd.f32 0.0, %v2796
        %2798 = vdwg.mxu0
        %v2800 = vsel %vm2228, %v2210, 0
        %v2803 = vsel %vm2228, %v2215, 0
        %v2806 = vsel %vm2228, %v2220, 0
        %v2809 = vsel %vm2228, %v2225, 0
        %2811 = vmatprep.subr.mxu0 %v1777
        %2812 = vmatpush1.msra.mxu0 %v1776
        %2813 = vmatprep.subr.mxu0 %v1781
        %2814 = vmatpush1.msra.mxu0 %v1780
        %2815 = vmatprep.subr.mxu0 %v1785
        %2816 = vmatpush1.msra.mxu0 %v1784
        %2817 = vmatprep.subr.mxu0 %v1789
        %2818 = vmatpush1.msra.mxu0 %v1788
        %2819 = vmatprep.subr.mxu0 0.0
        %2820 = vmatpush1.msra.mxu0 0.0
        %2821 = vmatprep.subr.mxu0 0.0
        %2822 = vmatpush1.msra.mxu0 0.0
        %2823 = vmatprep.subr.mxu0 0.0
        %2824 = vmatpush1.msra.mxu0 0.0
        %2825 = vmatprep.subr.mxu0 0.0
        %2826 = vmatpush1.msra.mxu0 0.0
        %2827 = vmatprep.subr.mxu0 0.0
        %2828 = vmatpush1.msra.mxu0 0.0
        %2829 = vmatprep.subr.mxu0 0.0
        %2830 = vmatpush1.msra.mxu0 0.0
        %2831 = vmatprep.subr.mxu0 0.0
        %2832 = vmatpush1.msra.mxu0 0.0
        %2833 = vmatprep.subr.mxu0 0.0
        %2834 = vmatpush1.msra.mxu0 0.0
        %2835 = vmatprep.subr.mxu0 0.0
        %2836 = vmatpush1.msra.mxu0 0.0
        %2837 = vmatprep.subr.mxu0 0.0
        %2838 = vmatpush1.msra.mxu0 0.0
        %2839 = vmatprep.subr.mxu0 0.0
        %2840 = vmatpush1.msra.mxu0 0.0
        %2841 = vmatprep.subr.mxu0 0.0
        %2842 = vmatpush1.msra.mxu0 0.0
        %2843 = vmatprep.subr.mxu0 0.0
        %2844 = vmatpush1.msra.mxu0 0.0
        %2845 = vmatprep.subr.mxu0 0.0
        %2846 = vmatpush1.msra.mxu0 0.0
        %2847 = vmatprep.subr.mxu0 0.0
        %2848 = vmatpush1.msra.mxu0 0.0
        %2849 = vmatprep.subr.mxu0 0.0
        %2850 = vmatpush1.msra.mxu0 0.0
        %2851 = vmatprep.subr.mxu0 0.0
        %2852 = vmatpush1.msra.mxu0 0.0
        %2853 = vmatprep.subr.mxu0 0.0
        %2854 = vmatpush1.msra.mxu0 0.0
        %2855 = vmatprep.subr.mxu0 0.0
        %2856 = vmatpush1.msra.mxu0 0.0
        %2857 = vmatprep.subr.mxu0 0.0
        %2858 = vmatpush1.msra.mxu0 0.0
        %2859 = vmatprep.subr.mxu0 0.0
        %2860 = vmatpush1.msra.mxu0 0.0
        %2861 = vmatprep.subr.mxu0 0.0
        %2862 = vmatpush1.msra.mxu0 0.0
        %2863 = vmatprep.subr.mxu0 0.0
        %2864 = vmatpush1.msra.mxu0 0.0
        %2865 = vmatprep.subr.mxu0 0.0
        %2866 = vmatpush1.msra.mxu0 0.0
        %2867 = vmatprep.subr.mxu0 0.0
        %2868 = vmatpush1.msra.mxu0 0.0
        %2869 = vmatprep.subr.mxu0 0.0
        %2870 = vmatpush1.msra.mxu0 0.0
        %2871 = vmatprep.subr.mxu0 0.0
        %2872 = vmatpush1.msra.mxu0 0.0
        %2873 = vmatprep.subr.mxu0 0.0
        %2874 = vmatpush1.msra.mxu0 0.0
        %2875 = vmatprep.mubr.f32.mxu0 0.0
        %2876 = vmatmul.mubr.f32.gmra.mrb[0].mxu0 %v2800
        %v2877 = vpop.f32.mrb[0].mxu0
        %v2878 = vadd.f32 0.0, %v2877
        %v2879 = vpop.f32.mrb[0].mxu0
        %v2880 = vadd.f32 0.0, %v2879
        %2881 = vmatprep.mubr.f32.mxu0 0.0
        %2882 = vmatmul.mubr.f32.gmra.mrb[0].mxu0 %v2803
        %v2883 = vpop.f32.mrb[0].mxu0
        %v2884 = vadd.f32 0.0, %v2883
        %v2885 = vpop.f32.mrb[0].mxu0
        %v2886 = vadd.f32 0.0, %v2885
        %2887 = vmatprep.mubr.f32.mxu0 0.0
        %2888 = vmatmul.mubr.f32.gmra.mrb[0].mxu0 %v2806
        %v2889 = vpop.f32.mrb[0].mxu0
        %v2890 = vadd.f32 0.0, %v2889
        %v2891 = vpop.f32.mrb[0].mxu0
        %v2892 = vadd.f32 0.0, %v2891
        %2893 = vmatprep.mubr.f32.mxu0 0.0
        %2894 = vmatmul.mubr.f32.gmra.mrb[0].mxu0 %v2809
        %v2895 = vpop.f32.mrb[0].mxu0
        %v2896 = vadd.f32 0.0, %v2895
        %v2897 = vpop.f32.mrb[0].mxu0
        %v2898 = vadd.f32 0.0, %v2897
        %2899 = vdwg.mxu0
        %2900 = vmatprep.subr.mxu0 %v1779
        %2901 = vmatpush1.msra.mxu0 %v1778
        %2902 = vmatprep.subr.mxu0 %v1783
        %2903 = vmatpush1.msra.mxu0 %v1782
        %2904 = vmatprep.subr.mxu0 %v1787
        %2905 = vmatpush1.msra.mxu0 %v1786
        %2906 = vmatprep.subr.mxu0 %v1791
        %2907 = vmatpush1.msra.mxu0 %v1790
        %2908 = vmatprep.subr.mxu0 0.0
        %2909 = vmatpush1.msra.mxu0 0.0
        %2910 = vmatprep.subr.mxu0 0.0
        %2911 = vmatpush1.msra.mxu0 0.0
        %2912 = vmatprep.subr.mxu0 0.0
        %2913 = vmatpush1.msra.mxu0 0.0
        %2914 = vmatprep.subr.mxu0 0.0
        %2915 = vmatpush1.msra.mxu0 0.0
        %2916 = vmatprep.subr.mxu0 0.0
        %2917 = vmatpush1.msra.mxu0 0.0
        %2918 = vmatprep.subr.mxu0 0.0
        %2919 = vmatpush1.msra.mxu0 0.0
        %2920 = vmatprep.subr.mxu0 0.0
        %2921 = vmatpush1.msra.mxu0 0.0
        %2922 = vmatprep.subr.mxu0 0.0
        %2923 = vmatpush1.msra.mxu0 0.0
        %2924 = vmatprep.subr.mxu0 0.0
        %2925 = vmatpush1.msra.mxu0 0.0
        %2926 = vmatprep.subr.mxu0 0.0
        %2927 = vmatpush1.msra.mxu0 0.0
        %2928 = vmatprep.subr.mxu0 0.0
        %2929 = vmatpush1.msra.mxu0 0.0
        %2930 = vmatprep.subr.mxu0 0.0
        %2931 = vmatpush1.msra.mxu0 0.0
        %2932 = vmatprep.subr.mxu0 0.0
        %2933 = vmatpush1.msra.mxu0 0.0
        %2934 = vmatprep.subr.mxu0 0.0
        %2935 = vmatpush1.msra.mxu0 0.0
        %2936 = vmatprep.subr.mxu0 0.0
        %2937 = vmatpush1.msra.mxu0 0.0
        %2938 = vmatprep.subr.mxu0 0.0
        %2939 = vmatpush1.msra.mxu0 0.0
        %2940 = vmatprep.subr.mxu0 0.0
        %2941 = vmatpush1.msra.mxu0 0.0
        %2942 = vmatprep.subr.mxu0 0.0
        %2943 = vmatpush1.msra.mxu0 0.0
        %2944 = vmatprep.subr.mxu0 0.0
        %2945 = vmatpush1.msra.mxu0 0.0
        %2946 = vmatprep.subr.mxu0 0.0
        %2947 = vmatpush1.msra.mxu0 0.0
        %2948 = vmatprep.subr.mxu0 0.0
        %2949 = vmatpush1.msra.mxu0 0.0
        %2950 = vmatprep.subr.mxu0 0.0
        %2951 = vmatpush1.msra.mxu0 0.0
        %2952 = vmatprep.subr.mxu0 0.0
        %2953 = vmatpush1.msra.mxu0 0.0
        %2954 = vmatprep.subr.mxu0 0.0
        %2955 = vmatpush1.msra.mxu0 0.0
        %2956 = vmatprep.subr.mxu0 0.0
        %2957 = vmatpush1.msra.mxu0 0.0
        %2958 = vmatprep.subr.mxu0 0.0
        %2959 = vmatpush1.msra.mxu0 0.0
        %2960 = vmatprep.subr.mxu0 0.0
        %2961 = vmatpush1.msra.mxu0 0.0
        %2962 = vmatprep.subr.mxu0 0.0
        %2963 = vmatpush1.msra.mxu0 0.0
        %2964 = vmatprep.mubr.f32.mxu0 0.0
        %2965 = vmatmul.mubr.f32.gmra.mrb[0].mxu0 %v2800
        %v2966 = vpop.f32.mrb[0].mxu0
        %v2967 = vadd.f32 0.0, %v2966
        %v2968 = vpop.f32.mrb[0].mxu0
        %v2969 = vadd.f32 0.0, %v2968
        %2970 = vmatprep.mubr.f32.mxu0 0.0
        %2971 = vmatmul.mubr.f32.gmra.mrb[0].mxu0 %v2803
        %v2972 = vpop.f32.mrb[0].mxu0
        %v2973 = vadd.f32 0.0, %v2972
        %v2974 = vpop.f32.mrb[0].mxu0
        %v2975 = vadd.f32 0.0, %v2974
        %2976 = vmatprep.mubr.f32.mxu0 0.0
        %2977 = vmatmul.mubr.f32.gmra.mrb[0].mxu0 %v2806
        %v2978 = vpop.f32.mrb[0].mxu0
        %v2979 = vadd.f32 0.0, %v2978
        %v2980 = vpop.f32.mrb[0].mxu0
        %v2981 = vadd.f32 0.0, %v2980
        %2982 = vmatprep.mubr.f32.mxu0 0.0
        %2983 = vmatmul.mubr.f32.gmra.mrb[0].mxu0 %v2809
        %v2984 = vpop.f32.mrb[0].mxu0
        %v2985 = vadd.f32 0.0, %v2984
        %v2986 = vpop.f32.mrb[0].mxu0
        %v2987 = vadd.f32 0.0, %v2986
        %2988 = vdwg.mxu0
        %v2989 = vld [vmem:[%s4] sm:$0xff]
        %v2990 = vld [vmem:[%s5] sm:$0xff]
        %2992 = vset.pattern.permute.xlu0 0
        %2993 = vperm.xlu0 %2992, %v2990
        %v2994 = vpop.permute.xlu0 %2993
        %2996 = vmatprep.subr.mxu0 %v2310
        %2997 = vmatpush1.msra.mxu0 %v2308
        %2998 = vmatprep.subr.mxu0 %v2316
        %2999 = vmatpush1.msra.mxu0 %v2314
        %3000 = vmatprep.subr.mxu0 %v2322
        %3001 = vmatpush1.msra.mxu0 %v2320
        %3002 = vmatprep.subr.mxu0 %v2328
        %3003 = vmatpush1.msra.mxu0 %v2326
        %3004 = vmatprep.subr.mxu0 %v2500
        %3005 = vmatpush1.msra.mxu0 %v2498
        %3006 = vmatprep.subr.mxu0 %v2506
        %3007 = vmatpush1.msra.mxu0 %v2504
        %3008 = vmatprep.subr.mxu0 %v2512
        %3009 = vmatpush1.msra.mxu0 %v2510
        %3010 = vmatprep.subr.mxu0 %v2518
        %3011 = vmatpush1.msra.mxu0 %v2516
        %3012 = vmatprep.subr.mxu0 %v2690
        %3013 = vmatpush1.msra.mxu0 %v2688
        %3014 = vmatprep.subr.mxu0 %v2696
        %3015 = vmatpush1.msra.mxu0 %v2694
        %3016 = vmatprep.subr.mxu0 %v2702
        %3017 = vmatpush1.msra.mxu0 %v2700
        %3018 = vmatprep.subr.mxu0 %v2708
        %3019 = vmatpush1.msra.mxu0 %v2706
        %3020 = vmatprep.subr.mxu0 %v2880
        %3021 = vmatpush1.msra.mxu0 %v2878
        %3022 = vmatprep.subr.mxu0 %v2886
        %3023 = vmatpush1.msra.mxu0 %v2884
        %3024 = vmatprep.subr.mxu0 %v2892
        %3025 = vmatpush1.msra.mxu0 %v2890
        %3026 = vmatprep.subr.mxu0 %v2898
        %3027 = vmatpush1.msra.mxu0 %v2896
        %3028 = vmatprep.subr.mxu0 0.0
        %3029 = vmatpush1.msra.mxu0 0.0
        %3030 = vmatprep.subr.mxu0 0.0
        %3031 = vmatpush1.msra.mxu0 0.0
        %3032 = vmatprep.subr.mxu0 0.0
        %3033 = vmatpush1.msra.mxu0 0.0
        %3034 = vmatprep.subr.mxu0 0.0
        %3035 = vmatpush1.msra.mxu0 0.0
        %3036 = vmatprep.subr.mxu0 0.0
        %3037 = vmatpush1.msra.mxu0 0.0
        %3038 = vmatprep.subr.mxu0 0.0
        %3039 = vmatpush1.msra.mxu0 0.0
        %3040 = vmatprep.subr.mxu0 0.0
        %3041 = vmatpush1.msra.mxu0 0.0
        %3042 = vmatprep.subr.mxu0 0.0
        %3043 = vmatpush1.msra.mxu0 0.0
        %3044 = vmatprep.subr.mxu0 0.0
        %3045 = vmatpush1.msra.mxu0 0.0
        %3046 = vmatprep.subr.mxu0 0.0
        %3047 = vmatpush1.msra.mxu0 0.0
        %3048 = vmatprep.subr.mxu0 0.0
        %3049 = vmatpush1.msra.mxu0 0.0
        %3050 = vmatprep.subr.mxu0 0.0
        %3051 = vmatpush1.msra.mxu0 0.0
        %3052 = vmatprep.subr.mxu0 0.0
        %3053 = vmatpush1.msra.mxu0 0.0
        %3054 = vmatprep.subr.mxu0 0.0
        %3055 = vmatpush1.msra.mxu0 0.0
        %3056 = vmatprep.subr.mxu0 0.0
        %3057 = vmatpush1.msra.mxu0 0.0
        %3058 = vmatprep.subr.mxu0 0.0
        %3059 = vmatpush1.msra.mxu0 0.0
        %3060 = vmatprep.mubr.f32.mxu0 0.0
        %3061 = vmatmul.mubr.f32.gmra.mrb[0].mxu0 %v2989
        %v3062 = vpop.f32.mrb[0].mxu0
        %v3063 = vadd.f32 %v2994, %v3062
        %v3064 = vpop.f32.mrb[0].mxu0
        %v3065 = vadd.f32 %v2994, %v3064
        %3066 = vdwg.mxu0
        %3067 = vmatprep.subr.mxu0 %v2399
        %3068 = vmatpush1.msra.mxu0 %v2397
        %3069 = vmatprep.subr.mxu0 %v2405
        %3070 = vmatpush1.msra.mxu0 %v2403
        %3071 = vmatprep.subr.mxu0 %v2411
        %3072 = vmatpush1.msra.mxu0 %v2409
        %3073 = vmatprep.subr.mxu0 %v2417
        %3074 = vmatpush1.msra.mxu0 %v2415
        %3075 = vmatprep.subr.mxu0 %v2589
        %3076 = vmatpush1.msra.mxu0 %v2587
        %3077 = vmatprep.subr.mxu0 %v2595
        %3078 = vmatpush1.msra.mxu0 %v2593
        %3079 = vmatprep.subr.mxu0 %v2601
        %3080 = vmatpush1.msra.mxu0 %v2599
        %3081 = vmatprep.subr.mxu0 %v2607
        %3082 = vmatpush1.msra.mxu0 %v2605
        %3083 = vmatprep.subr.mxu0 %v2779
        %3084 = vmatpush1.msra.mxu0 %v2777
        %3085 = vmatprep.subr.mxu0 %v2785
        %3086 = vmatpush1.msra.mxu0 %v2783
        %3087 = vmatprep.subr.mxu0 %v2791
        %3088 = vmatpush1.msra.mxu0 %v2789
        %3089 = vmatprep.subr.mxu0 %v2797
        %3090 = vmatpush1.msra.mxu0 %v2795
        %3091 = vmatprep.subr.mxu0 %v2969
        %3092 = vmatpush1.msra.mxu0 %v2967
        %3093 = vmatprep.subr.mxu0 %v2975
        %3094 = vmatpush1.msra.mxu0 %v2973
        %3095 = vmatprep.subr.mxu0 %v2981
        %3096 = vmatpush1.msra.mxu0 %v2979
        %3097 = vmatprep.subr.mxu0 %v2987
        %3098 = vmatpush1.msra.mxu0 %v2985
        %3099 = vmatprep.subr.mxu0 0.0
        %3100 = vmatpush1.msra.mxu0 0.0
        %3101 = vmatprep.subr.mxu0 0.0
        %3102 = vmatpush1.msra.mxu0 0.0
        %3103 = vmatprep.subr.mxu0 0.0
        %3104 = vmatpush1.msra.mxu0 0.0
        %3105 = vmatprep.subr.mxu0 0.0
        %3106 = vmatpush1.msra.mxu0 0.0
        %3107 = vmatprep.subr.mxu0 0.0
        %3108 = vmatpush1.msra.mxu0 0.0
        %3109 = vmatprep.subr.mxu0 0.0
        %3110 = vmatpush1.msra.mxu0 0.0
        %3111 = vmatprep.subr.mxu0 0.0
        %3112 = vmatpush1.msra.mxu0 0.0
        %3113 = vmatprep.subr.mxu0 0.0
        %3114 = vmatpush1.msra.mxu0 0.0
        %3115 = vmatprep.subr.mxu0 0.0
        %3116 = vmatpush1.msra.mxu0 0.0
        %3117 = vmatprep.subr.mxu0 0.0
        %3118 = vmatpush1.msra.mxu0 0.0
        %3119 = vmatprep.subr.mxu0 0.0
        %3120 = vmatpush1.msra.mxu0 0.0
        %3121 = vmatprep.subr.mxu0 0.0
        %3122 = vmatpush1.msra.mxu0 0.0
        %3123 = vmatprep.subr.mxu0 0.0
        %3124 = vmatpush1.msra.mxu0 0.0
        %3125 = vmatprep.subr.mxu0 0.0
        %3126 = vmatpush1.msra.mxu0 0.0
        %3127 = vmatprep.subr.mxu0 0.0
        %3128 = vmatpush1.msra.mxu0 0.0
        %3129 = vmatprep.subr.mxu0 0.0
        %3130 = vmatpush1.msra.mxu0 0.0
        %3131 = vmatprep.mubr.f32.mxu0 0.0
        %3132 = vmatmul.mubr.f32.gmra.mrb[0].mxu0 %v2989
        %v3133 = vpop.f32.mrb[0].mxu0
        %v3134 = vadd.f32 %v2994, %v3133
        %v3135 = vpop.f32.mrb[0].mxu0
        %v3136 = vadd.f32 %v2994, %v3135
        %3137 = vdwg.mxu0
        %v3138 = vrot.slane %v3063, 4
        %v3139 = vadd.f32 %v3063, %v3138
        %v3140 = vrot.slane %v3139, 2
        %v3141 = vadd.f32 %v3139, %v3140
        %v3142 = vrot.slane %v3141, 1
        %v3143 = vadd.f32 %v3141, %v3142
        %v3144 = vrot.slane %v3065, 4
        %v3145 = vadd.f32 %v3065, %v3144
        %v3146 = vrot.slane %v3145, 2
        %v3147 = vadd.f32 %v3145, %v3146
        %v3148 = vrot.slane %v3147, 1
        %v3149 = vadd.f32 %v3147, %v3148
        %v3150 = vrot.slane %v3134, 4
        %v3151 = vadd.f32 %v3134, %v3150
        %v3152 = vrot.slane %v3151, 2
        %v3153 = vadd.f32 %v3151, %v3152
        %v3154 = vrot.slane %v3153, 1
        %v3155 = vadd.f32 %v3153, %v3154
        %v3156 = vrot.slane %v3136, 4
        %v3157 = vadd.f32 %v3136, %v3156
        %v3158 = vrot.slane %v3157, 2
        %v3159 = vadd.f32 %v3157, %v3158
        %v3160 = vrot.slane %v3159, 1
        %v3161 = vadd.f32 %v3159, %v3160
        %v3162 = vrcp.pop 8.0
        %v3163 = vmul.f32 %v3143, %v3162
        %v3164 = vmul.f32 %v3149, %v3162
        %v3165 = vmul.f32 %v3155, %v3162
        %v3166 = vmul.f32 %v3161, %v3162
        %v3167 = vsub.f32 %v3063, %v3163
        %v3168 = vsub.f32 %v3065, %v3164
        %v3169 = vsub.f32 %v3134, %v3165
        %v3170 = vsub.f32 %v3136, %v3166
        %v3171 = vmul.f32 %v3167, %v3167
        %v3172 = vmul.f32 %v3168, %v3168
        %v3173 = vmul.f32 %v3169, %v3169
        %v3174 = vmul.f32 %v3170, %v3170
        %v3175 = vrot.slane %v3171, 4
        %v3176 = vadd.f32 %v3171, %v3175
        %v3177 = vrot.slane %v3176, 2
        %v3178 = vadd.f32 %v3176, %v3177
        %v3179 = vrot.slane %v3178, 1
        %v3180 = vadd.f32 %v3178, %v3179
        %v3181 = vrot.slane %v3172, 4
        %v3182 = vadd.f32 %v3172, %v3181
        %v3183 = vrot.slane %v3182, 2
        %v3184 = vadd.f32 %v3182, %v3183
        %v3185 = vrot.slane %v3184, 1
        %v3186 = vadd.f32 %v3184, %v3185
        %v3187 = vrot.slane %v3173, 4
        %v3188 = vadd.f32 %v3173, %v3187
        %v3189 = vrot.slane %v3188, 2
        %v3190 = vadd.f32 %v3188, %v3189
        %v3191 = vrot.slane %v3190, 1
        %v3192 = vadd.f32 %v3190, %v3191
        %v3193 = vrot.slane %v3174, 4
        %v3194 = vadd.f32 %v3174, %v3193
        %v3195 = vrot.slane %v3194, 2
        %v3196 = vadd.f32 %v3194, %v3195
        %v3197 = vrot.slane %v3196, 1
        %v3198 = vadd.f32 %v3196, %v3197
        %v3199 = vmul.f32 %v3180, %v3162
        %v3200 = vmul.f32 %v3186, %v3162
        %v3201 = vmul.f32 %v3192, %v3162
        %v3202 = vmul.f32 %v3198, %v3162
        %v3203 = vadd.f32 %v3199, 1e-05
        %v3204 = vadd.f32 %v3200, 1e-05
        %v3205 = vadd.f32 %v3201, 1e-05
        %v3206 = vadd.f32 %v3202, 1e-05
        %v3207 = vrsqrt.pop %v3203
        %v3208 = vrsqrt.pop %v3204
        %v3209 = vrsqrt.pop %v3205
        %v3210 = vrsqrt.pop %v3206
        %v3211 = vmul.f32 %v3167, %v3207
        %v3212 = vmul.f32 %v3168, %v3208
        %v3213 = vmul.f32 %v3169, %v3209
        %v3214 = vmul.f32 %v3170, %v3210
        %v3215 = vld [vmem:[%s6] sm:$0xff]
        %3217 = vset.pattern.permute.xlu0 0
        %3218 = vperm.xlu0 %3217, %v3215
        %v3219 = vpop.permute.xlu0 %3218
        %v3221 = vmul.f32 %v3211, %v3219
        %v3222 = vmul.f32 %v3212, %v3219
        %v3223 = vmul.f32 %v3213, %v3219
        %v3224 = vmul.f32 %v3214, %v3219
        %3225 = vst [vmem:[%s284] sm:$0xff] %v3221
        %3226 = vst [vmem:[%s284 + $0x8] sm:$0xff] %v3222
        %3227 = vst [vmem:[%s284 + $0x10] sm:$0xff] %v3223
        %3228 = vst [vmem:[%s284 + $0x18] sm:$0xff] %v3224
        %s3229 = sand.u32 %s186, 1
        %s3230 = scalar_lea.sflag [#allocation3], %s3229
        %s3231 = sand.u32 %s186, 1
        %s3232 = smul.addr %s3231, 32
        %s3233 = scalar_lea.vmem [#allocation2], %s3232
        // Predicated region
        $region49: #{tpu_custom_call.1} parent=47 // pred_check
          %p3234 = pneg %p196
        $region50: #{tpu_custom_call.1} parent=47 // pred_check_branch
          %3236 = sbr.rel (%p3234) target = $region52
        $region51: #{tpu_custom_call.1} parent=47 // pred_region
          %s3238 = ssub.s32 512, 512
          %3239 = vsyncadd %s3230, %s3238
          %s3240 = smul.addr %s21, 4
          %s3241 = smul.addr %s3240, 128
          %s3242 = scalar_lea.hbm %s7, %s3241
          %s3244 = sshll.u32 %s3233, 4
          %s3245 = int_to_ptr.vmem [resolvable:$true] %s3244
          %3247 = dma.vmem_to_hbm [thread:$0]  %s3245, 512, %s3242, %s3230
        $region52: #{tpu_custom_call.1} parent=47 // pred_fallthru
          _
      $region48: #{tpu_custom_call.1} parent=5 // pred_fallthru
        _
      %p3248 = scmp.le.s32.totalorder 2, %s16
      // Predicated region
      $region53: #{tpu_custom_call.1} parent=5 // pred_check
        %p3249 = pneg %p3248
      $region54: #{tpu_custom_call.1} parent=5 // pred_check_branch
        %3251 = sbr.rel (%p3249) target = $region56
      $region55: #{tpu_custom_call.1} parent=5 // pred_region
        %s3252 = ssub.s32 %s16, 2
        // Predicated region
        $region57: #{tpu_custom_call.1} parent=55 // pred_check
          %p3253 = pneg %p202
        $region58: #{tpu_custom_call.1} parent=55 // pred_check_branch
          %3255 = sbr.rel (%p3253) target = $region60
        $region59: #{tpu_custom_call.1} parent=55 // pred_region
          %s3256 = sand.u32 %s187, 1
          %s3257 = scalar_lea.sflag [#allocation3], %s3256
          %s3258 = sand.u32 %s187, 1
          %s3259 = smul.addr %s3258, 32
          %s3260 = scalar_lea.vmem [#allocation2], %s3259
          %3261 = dma.done %s3257, 512
        $region60: #{tpu_custom_call.1} parent=55 // pred_fallthru
          _
      $region56: #{tpu_custom_call.1} parent=5 // pred_fallthru
        _
    $region6: #{tpu_custom_call.1} parent=1 // loop_footer
      %s20 = sadd.s32 1, %s16
    $region7: #{tpu_custom_call.1} parent=1 // loop_footer_branch
      %15 = sbr.rel target = $region3
    $region8: #{tpu_custom_call.1} parent=1 // loop_exit
      _
    %3262 = vsyncpa [#allocation3], 1
    %s3263 = scalar_lea.sflag [#allocation3], 1
    %3264 = vsyncpa %s3263, 1

</llo_original>
